<compile_context>
chip_gen: v7x
topology: tpu7x:2x2x1
jax: 0.10.0
libtpu: 0.0.40
codegen_flags: <defaults>
</compile_context>

<pallas_src>
import functools
import math

import jax
import jax.numpy as jnp
from jax.experimental import pallas as pl
from jax.experimental.pallas import tpu as pltpu


def _round_up(x, m):
    return ((x + m - 1) // m) * m


def _vmem_limit_bytes():
    try:
        cap = int(pltpu.get_tpu_info().vmem_capacity_bytes)
    except Exception:
        cap = 128 * 1024 * 1024
    # Leave >=16 MiB head-room for compiler-internal scratch; never above 64 MiB.
    return int(min(64 * 1024 * 1024, max(32 * 1024 * 1024, cap - 16 * 1024 * 1024)))


# --------------------------------------------------------------------------
# Tiled (M,K)@(K,N) + bias kernel — patch embedding and classifier head.
# Rows are tiled over a parallel grid; weights stay resident (index (0,0)).
# --------------------------------------------------------------------------
def _matmul_bias_kernel(x_ref, w_ref, b_ref, o_ref):
    y = jnp.dot(x_ref[...], w_ref[...], preferred_element_type=jnp.float32)
    o_ref[...] = (y + b_ref[...]).astype(o_ref.dtype)


def matmul_bias(x, w, b, *, tile_m=256, out_dtype=jnp.float32):
    """x: (M, K); w: (K, N); b: (1, N). Returns (M, N) in out_dtype."""
    M, K = x.shape
    N = w.shape[1]
    K_pad = _round_up(K, 128)
    N_pad = _round_up(N, 128)
    TM = min(tile_m, _round_up(M, 8))
    M_pad = _round_up(M, TM)

    xb = x.astype(jnp.bfloat16)
    if (M_pad, K_pad) != (M, K):
        xb = jnp.pad(xb, ((0, M_pad - M), (0, K_pad - K)))
    wb = w.astype(jnp.bfloat16)
    if (K_pad, N_pad) != (K, N):
        wb = jnp.pad(wb, ((0, K_pad - K), (0, N_pad - N)))
    bf = b.astype(jnp.float32)
    if N_pad != N:
        bf = jnp.pad(bf, ((0, 0), (0, N_pad - N)))

    out_itemsize = jnp.dtype(out_dtype).itemsize
    out = pl.pallas_call(
        _matmul_bias_kernel,
        out_shape=jax.ShapeDtypeStruct((M_pad, N_pad), out_dtype),
        grid=(M_pad // TM,),
        in_specs=[
            pl.BlockSpec((TM, K_pad), lambda i: (i, 0)),
            pl.BlockSpec((K_pad, N_pad), lambda i: (0, 0)),
            pl.BlockSpec((1, N_pad), lambda i: (0, 0)),
        ],
        out_specs=pl.BlockSpec((TM, N_pad), lambda i: (i, 0)),
        compiler_params=pltpu.CompilerParams(
            dimension_semantics=("parallel",),
            vmem_limit_bytes=_vmem_limit_bytes()),
        cost_estimate=pl.CostEstimate(
            flops=2 * M_pad * K_pad * N_pad,
            transcendentals=0,
            bytes_accessed=2 * (M_pad * K_pad + K_pad * N_pad)
                           + out_itemsize * M_pad * N_pad),
    )(xb, wb, bf)
    return out[:M, :N]


# --------------------------------------------------------------------------
# Fused transformer stack: grid = (B // bb, L, bb).
# Each grid step applies one post-LN TransformerEncoderLayer (PyTorch defaults:
# norm_first=False, ReLU, eps=1e-5, eval mode) to batch element j of the
# resident (bb, S, D) token group.
# --------------------------------------------------------------------------
def _layernorm(h, g, b):
    mu = jnp.mean(h, axis=-1, keepdims=True)
    var = jnp.mean(jnp.square(h - mu), axis=-1, keepdims=True)
    return (h - mu) * jax.lax.rsqrt(var + 1e-5) * g + b


def _transformer_kernel(x_ref,                      # (bb, S, D) f32 layer-0 tokens
                        wqkv_ref, bqkv_ref,         # (D, 3D) bf16, (1, 3D) f32
                        wo_ref, bo_ref,             # (D, D)  bf16, (1, D)  f32
                        g1_ref, be1_ref,            # (1, D) f32 each
                        w1_ref, b1_ref,             # (D, F)  bf16, (1, F)  f32
                        w2_ref, b2_ref,             # (F, D)  bf16, (1, D)  f32
                        g2_ref, be2_ref,            # (1, D) f32 each
                        o_ref,                      # (bb, 8, D) f32  CLS rows
                        tok_ref,                    # VMEM scratch (bb, S, D) f32
                        *, heads, seq_len):
    _, S, D = tok_ref.shape
    Dh = D // heads
    layer = pl.program_id(1)
    j = pl.program_id(2)

    @pl.when(layer == 0)
    def _():
        tok_ref[j] = x_ref[j]

    x = tok_ref[j]                                  # (S, D) f32 residual stream
    xb = x.astype(jnp.bfloat16)

    # ---- fused QKV projection (1/sqrt(Dh) pre-folded into the Q columns) ----
    qkv = jnp.dot(xb, wqkv_ref[...], preferred_element_type=jnp.float32)
    qkv = qkv + bqkv_ref[...]                       # (S, 3D) f32

    # ---- per-head attention; output projection accumulated head by head ----
    attn = jnp.zeros((S, D), jnp.float32)
    for h in range(heads):
        qh = qkv[:, h * Dh:(h + 1) * Dh].astype(jnp.bfloat16)            # (S, Dh)
        kh = qkv[:, D + h * Dh:D + (h + 1) * Dh].astype(jnp.bfloat16)
        vh = qkv[:, 2 * D + h * Dh:2 * D + (h + 1) * Dh].astype(jnp.bfloat16)
        s = jax.lax.dot_general(qh, kh, (((1,), (1,)), ((), ())),
                                preferred_element_type=jnp.float32)      # (S, S)
        if seq_len < S:                             # mask padded key columns
            kidx = jax.lax.broadcasted_iota(jnp.int32, s.shape, 1)
            s = jnp.where(kidx < seq_len, s, -1e30)
        s = s - jnp.max(s, axis=-1, keepdims=True)
        p = jnp.exp(s)
        p = p * pl.reciprocal(jnp.sum(p, axis=-1, keepdims=True), approx=True)
        ctx = jnp.dot(p.astype(jnp.bfloat16), vh,
                      preferred_element_type=jnp.float32)                # (S, Dh)
        attn = attn + jnp.dot(ctx.astype(jnp.bfloat16),
                              wo_ref[h * Dh:(h + 1) * Dh, :],
                              preferred_element_type=jnp.float32)        # (S, D)
    attn = attn + bo_ref[...]

    # ---- residual + LayerNorm 1 (f32) ------------------------------------
    h1 = _layernorm(x + attn, g1_ref[...], be1_ref[...])

    # ---- feed-forward (ReLU) ---------------------------------------------
    f = jnp.dot(h1.astype(jnp.bfloat16), w1_ref[...],
                preferred_element_type=jnp.float32) + b1_ref[...]
    f = jnp.maximum(f, 0.0)
    f = jnp.dot(f.astype(jnp.bfloat16), w2_ref[...],
                preferred_element_type=jnp.float32) + b2_ref[...]

    # ---- residual + LayerNorm 2 (f32) ------------------------------------
    new_tok = _layernorm(h1 + f, g2_ref[...], be2_ref[...])
    tok_ref[j] = new_tok

    @pl.when(layer == pl.num_programs(1) - 1)
    def _():
        o_ref[j] = new_tok[0:8, :]                  # CLS row (+ 7 padding rows)


def _pick_bb(batch, max_bb=8):
    """Largest divisor of batch <= max_bb, preferring >=2 outer batch groups."""
    best = 1
    for cand in range(1, min(batch, max_bb) + 1):
        if batch % cand == 0:
            best = cand
    if best == batch and batch > 1:
        for cand in range(min(batch // 2, max_bb), 0, -1):
            if batch % cand == 0:
                return cand
    return best


def transformer(tok, params, *, heads, seq_len):
    """tok: (B, S_pad, D) f32. Returns (B, 8, D) f32 (row 0 is the CLS token)."""
    B, S_pad, D = tok.shape
    L = params['wqkv'].shape[0]
    F = params['w1'].shape[-1]
    bb = _pick_bb(B)

    def tok_spec():
        return pl.BlockSpec((bb, S_pad, D), lambda bo, l, j: (bo, 0, 0))

    def wspec(shape):
        return pl.BlockSpec((None,) + shape, lambda bo, l, j: (l, 0, 0))

    layer_w_bytes = sum(
        int(params[k][0].size) * params[k].dtype.itemsize
        for k in ('wqkv', 'bqkv', 'wo', 'bo', 'ln1_g', 'ln1_b',
                  'w1', 'b1', 'w2', 'b2', 'ln2_g', 'ln2_b'))
    flops_per_step = (2 * S_pad * D * 3 * D + 4 * S_pad * S_pad * D
                      + 2 * S_pad * D * D + 4 * S_pad * D * F)
    cost = pl.CostEstimate(
        flops=B * L * flops_per_step,
        transcendentals=B * L * heads * S_pad * S_pad,
        bytes_accessed=(B // bb) * L * layer_w_bytes
                       + B * S_pad * D * 4 + B * 8 * D * 4)

    return pl.pallas_call(
        functools.partial(_transformer_kernel, heads=heads, seq_len=seq_len),
        out_shape=jax.ShapeDtypeStruct((B, 8, D), jnp.float32),
        grid=(B // bb, L, bb),
        in_specs=[
            tok_spec(),
            wspec((D, 3 * D)), wspec((1, 3 * D)),
            wspec((D, D)), wspec((1, D)),
            wspec((1, D)), wspec((1, D)),
            wspec((D, F)), wspec((1, F)),
            wspec((F, D)), wspec((1, D)),
            wspec((1, D)), wspec((1, D)),
        ],
        out_specs=pl.BlockSpec((bb, 8, D), lambda bo, l, j: (bo, 0, 0)),
        scratch_shapes=[pltpu.VMEM((bb, S_pad, D), jnp.float32)],
        compiler_params=pltpu.CompilerParams(
            dimension_semantics=("parallel", "arbitrary", "arbitrary"),
            vmem_limit_bytes=_vmem_limit_bytes()),
        cost_estimate=cost,
    )(tok, params['wqkv'], params['bqkv'], params['wo'], params['bo'],
      params['ln1_g'], params['ln1_b'], params['w1'], params['b1'],
      params['w2'], params['b2'], params['ln2_g'], params['ln2_b'])


# --------------------------------------------------------------------------
# Glue: patchify (conv with kernel=stride=patch_size == matmul over patches)
# --------------------------------------------------------------------------
def extract_patches(x, p):
    # x: (B, 3, H, W) NCHW -> (B, Hp*Wp, 3*p*p) with per-patch (c, ph, pw) order
    B, C, H, W = x.shape
    Hp, Wp = H // p, W // p
    x = x.reshape(B, C, Hp, p, Wp, p)
    x = x.transpose(0, 2, 4, 1, 3, 5)            # (B, Hp, Wp, C, p, p)
    return x.reshape(B, Hp * Wp, C * p * p)


def vit_forward(x, params, *, heads, patch_size):
    B = x.shape[0]
    patches = extract_patches(x, patch_size)                      # (B, Np, Cpp)
    Np, Cpp = patches.shape[1], patches.shape[2]
    D = params['conv_w_t'].shape[1]

    emb = matmul_bias(patches.reshape(B * Np, Cpp),
                      params['conv_w_t'], params['conv_b'],
                      out_dtype=jnp.bfloat16)                     # (B*Np, D)
    emb = emb.reshape(B, Np, D)

    cls = jnp.broadcast_to(params['cls_token'], (B, 1, D))
    tok = jnp.concatenate([cls, emb.astype(jnp.float32)], axis=1)
    tok = tok + params['pos_embedding']                           # (B, S, D) f32
    S = tok.shape[1]
    S_pad = _round_up(S, 16)             # sublane / bf16-aligned query axis
    if S_pad != S:
        tok = jnp.pad(tok, ((0, 0), (0, S_pad - S), (0, 0)))

    cls_rows = transformer(tok, params, heads=heads, seq_len=S)   # (B, 8, D)
    cls_out = cls_rows[:, 0]                                      # (B, D)
    return matmul_bias(cls_out, params['head_w_t'], params['head_b'])


# --------------------------------------------------------------------------
# Parameters (f32 master copy; matmul weights cast to bf16 for the kernels).
# --------------------------------------------------------------------------
def init_params(key, *, dim, depth, heads, mlp_dim, patch_size, num_classes,
                image_size, in_ch=3):
    num_patches = (image_size // patch_size) ** 2
    keys = jax.random.split(key, 6 + depth)

    def nrm(k, shape, std=0.02):
        return (std * jax.random.normal(k, shape)).astype(jnp.float32)

    conv_w = nrm(keys[0], (dim, in_ch, patch_size, patch_size))
    params = {
        'conv_w_t': conv_w.reshape(dim, in_ch * patch_size * patch_size).T,
        'conv_b': nrm(keys[1], (1, dim)),
        'cls_token': nrm(keys[2], (1, 1, dim), std=1.0),
        'pos_embedding': nrm(keys[3], (1, num_patches + 1, dim), std=1.0),
        'head_w_t': nrm(keys[4], (num_classes, dim)).T,
        'head_b': nrm(keys[5], (1, num_classes)),
    }
    wqkv, bqkv, wo, bo, ln1b = [], [], [], [], []
    w1, b1, w2, b2, ln2b = [], [], [], [], []
    lkeys = jax.random.split(jax.random.fold_in(key, 7), depth)
    for li in range(depth):
        lk = jax.random.split(lkeys[li], 10)
        wqkv.append(nrm(lk[0], (3 * dim, dim)).T)
        bqkv.append(nrm(lk[1], (1, 3 * dim)))
        wo.append(nrm(lk[2], (dim, dim)).T)
        bo.append(nrm(lk[3], (1, dim)))
        ln1b.append(nrm(lk[4], (1, dim)))
        w1.append(nrm(lk[5], (mlp_dim, dim)).T)
        b1.append(nrm(lk[6], (1, mlp_dim)))
        w2.append(nrm(lk[7], (dim, mlp_dim)).T)
        b2.append(nrm(lk[8], (1, dim)))
        ln2b.append(nrm(lk[9], (1, dim)))
    params.update({
        'wqkv': jnp.stack(wqkv), 'bqkv': jnp.stack(bqkv),
        'wo': jnp.stack(wo), 'bo': jnp.stack(bo),
        'ln1_g': jnp.ones((depth, 1, dim), jnp.float32), 'ln1_b': jnp.stack(ln1b),
        'w1': jnp.stack(w1), 'b1': jnp.stack(b1),
        'w2': jnp.stack(w2), 'b2': jnp.stack(b2),
        'ln2_g': jnp.ones((depth, 1, dim), jnp.float32), 'ln2_b': jnp.stack(ln2b),
    })
    return params


def to_device_params(p, *, heads):
    """bf16 matmul weights + 1/sqrt(Dh) folded into the Q columns of Wqkv/bqkv."""
    out = dict(p)
    D = p['wqkv'].shape[1]
    Dh = D // heads
    scale = 1.0 / math.sqrt(Dh)
    out['wqkv'] = p['wqkv'].at[:, :, :D].multiply(scale).astype(jnp.bfloat16)
    out['bqkv'] = p['bqkv'].at[:, :, :D].multiply(scale)
    for k in ('conv_w_t', 'head_w_t', 'wo', 'w1', 'w2'):
        out[k] = p[k].astype(jnp.bfloat16)
    return out


# --------------------------------------------------------------------------
# Pure-JAX f32 reference (same math as the PyTorch module, eval mode).
# --------------------------------------------------------------------------
def vit_reference(x, params, *, heads, patch_size):
    B = x.shape[0]
    patches = extract_patches(x, patch_size)
    emb = patches @ params['conv_w_t'] + params['conv_b']
    D = emb.shape[-1]
    cls = jnp.broadcast_to(params['cls_token'], (B, 1, D))
    tok = jnp.concatenate([cls, emb], axis=1) + params['pos_embedding']

    def ln(h, g, b):
        mu = jnp.mean(h, axis=-1, keepdims=True)
        var = jnp.mean(jnp.square(h - mu), axis=-1, keepdims=True)
        return (h - mu) * jax.lax.rsqrt(var + 1e-5) * g + b

    S = tok.shape[1]
    Dh = D // heads
    for l in range(params['wqkv'].shape[0]):
        qkv = tok @ params['wqkv'][l] + params['bqkv'][l]
        q, k, v = qkv[..., :D], qkv[..., D:2 * D], qkv[..., 2 * D:]
        q = q.reshape(B, S, heads, Dh).transpose(0, 2, 1, 3) / math.sqrt(Dh)
        k = k.reshape(B, S, heads, Dh).transpose(0, 2, 1, 3)
        v = v.reshape(B, S, heads, Dh).transpose(0, 2, 1, 3)
        s = jnp.einsum('bhqd,bhkd->bhqk', q, k)
        p = jax.nn.softmax(s, axis=-1)
        ctx = jnp.einsum('bhqk,bhkd->bhqd', p, v)
        ctx = ctx.transpose(0, 2, 1, 3).reshape(B, S, D)
        attn = ctx @ params['wo'][l] + params['bo'][l]
        h1 = ln(tok + attn, params['ln1_g'][l], params['ln1_b'][l])
        f = jnp.maximum(h1 @ params['w1'][l] + params['b1'][l], 0.0)
        f = f @ params['w2'][l] + params['b2'][l]
        tok = ln(h1 + f, params['ln2_g'][l], params['ln2_b'][l])

    return tok[:, 0] @ params['head_w_t'] + params['head_b']


if __name__ == "__main__":
    # Small shapes structurally consistent with the module (lane-aligned D).
    B, C, IMG = 4, 3, 32
    PATCH, DIM, DEPTH, HEADS, MLP, NUM_CLASSES = 8, 128, 2, 4, 256, 14

    key = jax.random.PRNGKey(0)
    kx, kp = jax.random.split(key)
    x = jax.random.normal(kx, (B, C, IMG, IMG), dtype=jnp.float32)

    raw = init_params(kp, dim=DIM, depth=DEPTH, heads=HEADS, mlp_dim=MLP,
                      patch_size=PATCH, num_classes=NUM_CLASSES,
                      image_size=IMG, in_ch=C)
    params = to_device_params(raw, heads=HEADS)

    fwd = jax.jit(functools.partial(vit_forward, heads=HEADS, patch_size=PATCH))
    out = jax.block_until_ready(fwd(x, params))

    ref = vit_reference(x, raw, heads=HEADS, patch_size=PATCH)
    assert out.shape == (B, NUM_CLASSES), out.shape
    err = float(jnp.max(jnp.abs(out - ref)))
    # bf16 matmul inputs + approx reciprocal => looser tolerance than pure f32.
    assert jnp.allclose(out, ref, rtol=5e-2, atol=5e-2), f"max abs err {err}"

    print("KERNEL_OK")
</pallas_src>

<mosaic_0001>
module attributes {stable_mosaic.version = 11 : i64} {
  func.func @_matmul_bias_kernel(%arg0: i32, %arg1: memref<64x256xbf16, #tpu.memory_space<vmem>>, %arg2: memref<256x128xbf16, #tpu.memory_space<vmem>>, %arg3: memref<1x128xf32, #tpu.memory_space<vmem>>, %arg4: memref<64x128xbf16, #tpu.memory_space<vmem>>) attributes {dimension_semantics = [#tpu.dimension_semantics<parallel>], iteration_bounds = array<i64: 1>, scalar_prefetch = 0 : i64, scratch_operands = 0 : i64, tpu.core_type = #tpu.core_type<tc>, window_params = [{transform_indices = @transform_0, window_bounds = array<i64: 64, 256>}, {pipeline_mode = #tpu.pipeline_mode<synchronous>, transform_indices = @transform_1, window_bounds = array<i64: 256, 128>}, {pipeline_mode = #tpu.pipeline_mode<synchronous>, transform_indices = @transform_2, window_bounds = array<i64: 1, 128>}, {transform_indices = @transform_3, window_bounds = array<i64: 64, 128>}]} {
    %c0 = arith.constant 0 : index
    %c0_0 = arith.constant 0 : index
    %0 = vector.load %arg1[%c0, %c0_0] : memref<64x256xbf16, #tpu.memory_space<vmem>>, vector<64x256xbf16>
    %c0_1 = arith.constant 0 : index
    %c0_2 = arith.constant 0 : index
    %1 = vector.load %arg2[%c0_1, %c0_2] : memref<256x128xbf16, #tpu.memory_space<vmem>>, vector<256x128xbf16>
    %cst = arith.constant dense<0.000000e+00> : vector<64x128xf32>
    %2 = tpu.matmul %0, %1, %cst {dimension_numbers = #tpu.dot_dimension_numbers<[1], [0], [0], [1], [0, 0, 1, 1], [], []>} : vector<64x256xbf16>, vector<256x128xbf16>, vector<64x128xf32> -> vector<64x128xf32>
    %c0_3 = arith.constant 0 : index
    %c0_4 = arith.constant 0 : index
    %3 = vector.load %arg3[%c0_3, %c0_4] : memref<1x128xf32, #tpu.memory_space<vmem>>, vector<1x128xf32>
    %4 = vector.broadcast %3 : vector<1x128xf32> to vector<64x128xf32>
    %5 = arith.addf %2, %4 : vector<64x128xf32>
    %6 = arith.truncf %5 : vector<64x128xf32> to vector<64x128xbf16>
    %c0_5 = arith.constant 0 : index
    %c0_6 = arith.constant 0 : index
    %7 = vector.load %arg4[%c0_5, %c0_6] : memref<64x128xbf16, #tpu.memory_space<vmem>>, vector<64x128xbf16>
    tpu.vector_store %arg4[%c0_5, %c0_6], %6 {strides = array<i32>} : memref<64x128xbf16, #tpu.memory_space<vmem>>, vector<64x128xbf16>,
    return
  }
  func.func @transform_0(%arg0: i32) -> (i32, i32) {
    %c0_i32 = arith.constant 0 : i32
    %c0_i32_0 = arith.constant 0 : i32
    return %arg0, %c0_i32 : i32, i32
  }
  func.func @transform_1(%arg0: i32) -> (i32, i32) {
    %c0_i32 = arith.constant 0 : i32
    %c0_i32_0 = arith.constant 0 : i32
    %c0_i32_1 = arith.constant 0 : i32
    return %c0_i32, %c0_i32_0 : i32, i32
  }
  func.func @transform_2(%arg0: i32) -> (i32, i32) {
    %c0_i32 = arith.constant 0 : i32
    %c0_i32_0 = arith.constant 0 : i32
    %c0_i32_1 = arith.constant 0 : i32
    return %c0_i32, %c0_i32_0 : i32, i32
  }
  func.func @transform_3(%arg0: i32) -> (i32, i32) {
    %c0_i32 = arith.constant 0 : i32
    %c0_i32_0 = arith.constant 0 : i32
    return %arg0, %c0_i32 : i32, i32
  }
}

module attributes {stable_mosaic.version = 11 : i64} {
  func.func @_transformer_kernel(%arg0: i32, %arg1: i32, %arg2: i32, %arg3: memref<2x32x128xf32, #tpu.memory_space<vmem>>, %arg4: memref<1x128x384xbf16, #tpu.memory_space<vmem>>, %arg5: memref<1x1x384xf32, #tpu.memory_space<vmem>>, %arg6: memref<1x128x128xbf16, #tpu.memory_space<vmem>>, %arg7: memref<1x1x128xf32, #tpu.memory_space<vmem>>, %arg8: memref<1x1x128xf32, #tpu.memory_space<vmem>>, %arg9: memref<1x1x128xf32, #tpu.memory_space<vmem>>, %arg10: memref<1x128x256xbf16, #tpu.memory_space<vmem>>, %arg11: memref<1x1x256xf32, #tpu.memory_space<vmem>>, %arg12: memref<1x256x128xbf16, #tpu.memory_space<vmem>>, %arg13: memref<1x1x128xf32, #tpu.memory_space<vmem>>, %arg14: memref<1x1x128xf32, #tpu.memory_space<vmem>>, %arg15: memref<1x1x128xf32, #tpu.memory_space<vmem>>, %arg16: memref<2x8x128xf32, #tpu.memory_space<vmem>>, %arg17: memref<2x32x128xf32, #tpu.memory_space<vmem>>) attributes {dimension_semantics = [#tpu.dimension_semantics<parallel>, #tpu.dimension_semantics<arbitrary>, #tpu.dimension_semantics<arbitrary>], iteration_bounds = array<i64: 2, 2, 2>, scalar_prefetch = 0 : i64, scratch_operands = 1 : i64, tpu.core_type = #tpu.core_type<tc>, window_params = [{transform_indices = @transform_0, window_bounds = array<i64: 2, 32, 128>}, {transform_indices = @transform_1, window_bounds = array<i64: 1, 128, 384>}, {transform_indices = @transform_2, window_bounds = array<i64: 1, 1, 384>}, {transform_indices = @transform_3, window_bounds = array<i64: 1, 128, 128>}, {transform_indices = @transform_4, window_bounds = array<i64: 1, 1, 128>}, {transform_indices = @transform_5, window_bounds = array<i64: 1, 1, 128>}, {transform_indices = @transform_6, window_bounds = array<i64: 1, 1, 128>}, {transform_indices = @transform_7, window_bounds = array<i64: 1, 128, 256>}, {transform_indices = @transform_8, window_bounds = array<i64: 1, 1, 256>}, {transform_indices = @transform_9, window_bounds = array<i64: 1, 256, 128>}, {transform_indices = @transform_10, window_bounds = array<i64: 1, 1, 128>}, {transform_indices = @transform_11, window_bounds = array<i64: 1, 1, 128>}, {transform_indices = @transform_12, window_bounds = array<i64: 1, 1, 128>}, {transform_indices = @transform_13, window_bounds = array<i64: 2, 8, 128>}]} {
    %c0_i32 = arith.constant 0 : i32
    %0 = arith.cmpi eq, %arg1, %c0_i32 : i32
    %1 = arith.extui %0 : i1 to i32
    %c0_i32_0 = arith.constant 0 : i32
    %2 = arith.cmpi ne, %1, %c0_i32_0 : i32
    scf.if %2 {
      %214 = arith.index_cast %arg2 : i32 to index
      %c0_88 = arith.constant 0 : index
      %c0_89 = arith.constant 0 : index
      %215 = vector.load %arg3[%214, %c0_88, %c0_89] : memref<2x32x128xf32, #tpu.memory_space<vmem>>, vector<1x32x128xf32>
      %216 = vector.shape_cast %215 : vector<1x32x128xf32> to vector<32x128xf32>
      %217 = arith.index_cast %arg2 : i32 to index
      %c0_90 = arith.constant 0 : index
      %c0_91 = arith.constant 0 : index
      %218 = vector.load %arg17[%217, %c0_90, %c0_91] : memref<2x32x128xf32, #tpu.memory_space<vmem>>, vector<1x32x128xf32>
      %219 = vector.shape_cast %218 : vector<1x32x128xf32> to vector<32x128xf32>
      %220 = vector.shape_cast %216 : vector<32x128xf32> to vector<1x32x128xf32>
      tpu.vector_store %arg17[%217, %c0_90, %c0_91], %220 {strides = array<i32>} : memref<2x32x128xf32, #tpu.memory_space<vmem>>, vector<1x32x128xf32>,
    } else {
    }
    %3 = arith.index_cast %arg2 : i32 to index
    %c0 = arith.constant 0 : index
    %c0_1 = arith.constant 0 : index
    %4 = vector.load %arg17[%3, %c0, %c0_1] : memref<2x32x128xf32, #tpu.memory_space<vmem>>, vector<1x32x128xf32>
    %5 = vector.shape_cast %4 : vector<1x32x128xf32> to vector<32x128xf32>
    %6 = arith.truncf %5 : vector<32x128xf32> to vector<32x128xbf16>
    %c0_2 = arith.constant 0 : index
    %c0_3 = arith.constant 0 : index
    %c0_4 = arith.constant 0 : index
    %7 = vector.load %arg4[%c0_2, %c0_3, %c0_4] : memref<1x128x384xbf16, #tpu.memory_space<vmem>>, vector<1x128x384xbf16>
    %8 = vector.shape_cast %7 : vector<1x128x384xbf16> to vector<128x384xbf16>
    %cst = arith.constant dense<0.000000e+00> : vector<32x384xf32>
    %9 = tpu.matmul %6, %8, %cst {dimension_numbers = #tpu.dot_dimension_numbers<[1], [0], [0], [1], [0, 0, 1, 1], [], []>} : vector<32x128xbf16>, vector<128x384xbf16>, vector<32x384xf32> -> vector<32x384xf32>
    %c0_5 = arith.constant 0 : index
    %c0_6 = arith.constant 0 : index
    %c0_7 = arith.constant 0 : index
    %10 = vector.load %arg5[%c0_5, %c0_6, %c0_7] : memref<1x1x384xf32, #tpu.memory_space<vmem>>, vector<1x1x384xf32>
    %11 = vector.shape_cast %10 : vector<1x1x384xf32> to vector<1x384xf32>
    %12 = vector.broadcast %11 : vector<1x384xf32> to vector<32x384xf32>
    %13 = arith.addf %9, %12 : vector<32x384xf32>
    %cst_8 = arith.constant 0.000000e+00 : f32
    %14 = vector.broadcast %cst_8 : f32 to vector<32x128xf32>
    %15 = vector.extract_strided_slice %13 {offsets = [0, 0], sizes = [32, 32], strides = [1, 1]} : vector<32x384xf32> to vector<32x32xf32>
    %16 = arith.truncf %15 : vector<32x32xf32> to vector<32x32xbf16>
    %17 = vector.extract_strided_slice %13 {offsets = [0, 128], sizes = [32, 32], strides = [1, 1]} : vector<32x384xf32> to vector<32x32xf32>
    %18 = arith.truncf %17 : vector<32x32xf32> to vector<32x32xbf16>
    %19 = vector.extract_strided_slice %13 {offsets = [0, 256], sizes = [32, 32], strides = [1, 1]} : vector<32x384xf32> to vector<32x32xf32>
    %20 = arith.truncf %19 : vector<32x32xf32> to vector<32x32xbf16>
    %cst_9 = arith.constant dense<0.000000e+00> : vector<32x32xf32>
    %21 = tpu.matmul %16, %18, %cst_9 {dimension_numbers = #tpu.dot_dimension_numbers<[1], [1], [0], [0], [0, 0, 1, 0], [], []>} : vector<32x32xbf16>, vector<32x32xbf16>, vector<32x32xf32> -> vector<32x32xf32>
    %22 = tpu.iota {dimensions = array<i32: 1>} : vector<32x32xi32>
    %c17_i32 = arith.constant 17 : i32
    %23 = vector.broadcast %c17_i32 : i32 to vector<32x32xi32>
    %24 = arith.cmpi slt, %22, %23 : vector<32x32xi32>
    %cst_10 = arith.constant -1.000000e+30 : f32
    %25 = vector.broadcast %cst_10 : f32 to vector<32x32xf32>
    %26 = arith.select %24, %21, %25 : vector<32x32xi1>, vector<32x32xf32>
    %cst_11 = arith.constant dense<0xFF800000> : vector<32xf32>
    %27 = vector.multi_reduction <maximumf>, %26, %cst_11 [1] : vector<32x32xf32> to vector<32xf32>
    %28 = vector.shape_cast %27 : vector<32xf32> to vector<32x1xf32>
    %29 = vector.broadcast %28 : vector<32x1xf32> to vector<32x32xf32>
    %30 = arith.subf %26, %29 : vector<32x32xf32>
    %31 = math.exp %30 : vector<32x32xf32>
    %cst_12 = arith.constant dense<0.000000e+00> : vector<32xf32>
    %32 = vector.multi_reduction <add>, %31, %cst_12 [1] : vector<32x32xf32> to vector<32xf32>
    %33 = vector.shape_cast %32 : vector<32xf32> to vector<32x1xf32>
    %34 = tpu.reciprocal %33 {approx = true} : vector<32x1xf32> -> vector<32x1xf32>
    %35 = vector.broadcast %34 : vector<32x1xf32> to vector<32x32xf32>
    %36 = arith.mulf %31, %35 : vector<32x32xf32>
    %37 = arith.truncf %36 : vector<32x32xf32> to vector<32x32xbf16>
    %cst_13 = arith.constant dense<0.000000e+00> : vector<32x32xf32>
    %38 = tpu.matmul %37, %20, %cst_13 {dimension_numbers = #tpu.dot_dimension_numbers<[1], [0], [0], [1], [0, 0, 1, 1], [], []>} : vector<32x32xbf16>, vector<32x32xbf16>, vector<32x32xf32> -> vector<32x32xf32>
    %39 = arith.truncf %38 : vector<32x32xf32> to vector<32x32xbf16>
    %c0_14 = arith.constant 0 : index
    %c0_15 = arith.constant 0 : index
    %c0_16 = arith.constant 0 : index
    %40 = vector.load %arg6[%c0_14, %c0_15, %c0_16] : memref<1x128x128xbf16, #tpu.memory_space<vmem>>, vector<1x32x128xbf16>
    %41 = vector.shape_cast %40 : vector<1x32x128xbf16> to vector<32x128xbf16>
    %cst_17 = arith.constant dense<0.000000e+00> : vector<32x128xf32>
    %42 = tpu.matmul %39, %41, %cst_17 {dimension_numbers = #tpu.dot_dimension_numbers<[1], [0], [0], [1], [0, 0, 1, 1], [], []>} : vector<32x32xbf16>, vector<32x128xbf16>, vector<32x128xf32> -> vector<32x128xf32>
    %43 = arith.addf %14, %42 : vector<32x128xf32>
    %44 = vector.extract_strided_slice %13 {offsets = [0, 32], sizes = [32, 32], strides = [1, 1]} : vector<32x384xf32> to vector<32x32xf32>
    %45 = arith.truncf %44 : vector<32x32xf32> to vector<32x32xbf16>
    %46 = vector.extract_strided_slice %13 {offsets = [0, 160], sizes = [32, 32], strides = [1, 1]} : vector<32x384xf32> to vector<32x32xf32>
    %47 = arith.truncf %46 : vector<32x32xf32> to vector<32x32xbf16>
    %48 = vector.extract_strided_slice %13 {offsets = [0, 288], sizes = [32, 32], strides = [1, 1]} : vector<32x384xf32> to vector<32x32xf32>
    %49 = arith.truncf %48 : vector<32x32xf32> to vector<32x32xbf16>
    %cst_18 = arith.constant dense<0.000000e+00> : vector<32x32xf32>
    %50 = tpu.matmul %45, %47, %cst_18 {dimension_numbers = #tpu.dot_dimension_numbers<[1], [1], [0], [0], [0, 0, 1, 0], [], []>} : vector<32x32xbf16>, vector<32x32xbf16>, vector<32x32xf32> -> vector<32x32xf32>
    %51 = tpu.iota {dimensions = array<i32: 1>} : vector<32x32xi32>
    %c17_i32_19 = arith.constant 17 : i32
    %52 = vector.broadcast %c17_i32_19 : i32 to vector<32x32xi32>
    %53 = arith.cmpi slt, %51, %52 : vector<32x32xi32>
    %cst_20 = arith.constant -1.000000e+30 : f32
    %54 = vector.broadcast %cst_20 : f32 to vector<32x32xf32>
    %55 = arith.select %53, %50, %54 : vector<32x32xi1>, vector<32x32xf32>
    %cst_21 = arith.constant dense<0xFF800000> : vector<32xf32>
    %56 = vector.multi_reduction <maximumf>, %55, %cst_21 [1] : vector<32x32xf32> to vector<32xf32>
    %57 = vector.shape_cast %56 : vector<32xf32> to vector<32x1xf32>
    %58 = vector.broadcast %57 : vector<32x1xf32> to vector<32x32xf32>
    %59 = arith.subf %55, %58 : vector<32x32xf32>
    %60 = math.exp %59 : vector<32x32xf32>
    %cst_22 = arith.constant dense<0.000000e+00> : vector<32xf32>
    %61 = vector.multi_reduction <add>, %60, %cst_22 [1] : vector<32x32xf32> to vector<32xf32>
    %62 = vector.shape_cast %61 : vector<32xf32> to vector<32x1xf32>
    %63 = tpu.reciprocal %62 {approx = true} : vector<32x1xf32> -> vector<32x1xf32>
    %64 = vector.broadcast %63 : vector<32x1xf32> to vector<32x32xf32>
    %65 = arith.mulf %60, %64 : vector<32x32xf32>
    %66 = arith.truncf %65 : vector<32x32xf32> to vector<32x32xbf16>
    %cst_23 = arith.constant dense<0.000000e+00> : vector<32x32xf32>
    %67 = tpu.matmul %66, %49, %cst_23 {dimension_numbers = #tpu.dot_dimension_numbers<[1], [0], [0], [1], [0, 0, 1, 1], [], []>} : vector<32x32xbf16>, vector<32x32xbf16>, vector<32x32xf32> -> vector<32x32xf32>
    %68 = arith.truncf %67 : vector<32x32xf32> to vector<32x32xbf16>
    %c0_24 = arith.constant 0 : index
    %c32 = arith.constant 32 : index
    %c0_25 = arith.constant 0 : index
    %69 = vector.load %arg6[%c0_24, %c32, %c0_25] : memref<1x128x128xbf16, #tpu.memory_space<vmem>>, vector<1x32x128xbf16>
    %70 = vector.shape_cast %69 : vector<1x32x128xbf16> to vector<32x128xbf16>
    %cst_26 = arith.constant dense<0.000000e+00> : vector<32x128xf32>
    %71 = tpu.matmul %68, %70, %cst_26 {dimension_numbers = #tpu.dot_dimension_numbers<[1], [0], [0], [1], [0, 0, 1, 1], [], []>} : vector<32x32xbf16>, vector<32x128xbf16>, vector<32x128xf32> -> vector<32x128xf32>
    %72 = arith.addf %43, %71 : vector<32x128xf32>
    %73 = vector.extract_strided_slice %13 {offsets = [0, 64], sizes = [32, 32], strides = [1, 1]} : vector<32x384xf32> to vector<32x32xf32>
    %74 = arith.truncf %73 : vector<32x32xf32> to vector<32x32xbf16>
    %75 = vector.extract_strided_slice %13 {offsets = [0, 192], sizes = [32, 32], strides = [1, 1]} : vector<32x384xf32> to vector<32x32xf32>
    %76 = arith.truncf %75 : vector<32x32xf32> to vector<32x32xbf16>
    %77 = vector.extract_strided_slice %13 {offsets = [0, 320], sizes = [32, 32], strides = [1, 1]} : vector<32x384xf32> to vector<32x32xf32>
    %78 = arith.truncf %77 : vector<32x32xf32> to vector<32x32xbf16>
    %cst_27 = arith.constant dense<0.000000e+00> : vector<32x32xf32>
    %79 = tpu.matmul %74, %76, %cst_27 {dimension_numbers = #tpu.dot_dimension_numbers<[1], [1], [0], [0], [0, 0, 1, 0], [], []>} : vector<32x32xbf16>, vector<32x32xbf16>, vector<32x32xf32> -> vector<32x32xf32>
    %80 = tpu.iota {dimensions = array<i32: 1>} : vector<32x32xi32>
    %c17_i32_28 = arith.constant 17 : i32
    %81 = vector.broadcast %c17_i32_28 : i32 to vector<32x32xi32>
    %82 = arith.cmpi slt, %80, %81 : vector<32x32xi32>
    %cst_29 = arith.constant -1.000000e+30 : f32
    %83 = vector.broadcast %cst_29 : f32 to vector<32x32xf32>
    %84 = arith.select %82, %79, %83 : vector<32x32xi1>, vector<32x32xf32>
    %cst_30 = arith.constant dense<0xFF800000> : vector<32xf32>
    %85 = vector.multi_reduction <maximumf>, %84, %cst_30 [1] : vector<32x32xf32> to vector<32xf32>
    %86 = vector.shape_cast %85 : vector<32xf32> to vector<32x1xf32>
    %87 = vector.broadcast %86 : vector<32x1xf32> to vector<32x32xf32>
    %88 = arith.subf %84, %87 : vector<32x32xf32>
    %89 = math.exp %88 : vector<32x32xf32>
    %cst_31 = arith.constant dense<0.000000e+00> : vector<32xf32>
    %90 = vector.multi_reduction <add>, %89, %cst_31 [1] : vector<32x32xf32> to vector<32xf32>
    %91 = vector.shape_cast %90 : vector<32xf32> to vector<32x1xf32>
    %92 = tpu.reciprocal %91 {approx = true} : vector<32x1xf32> -> vector<32x1xf32>
    %93 = vector.broadcast %92 : vector<32x1xf32> to vector<32x32xf32>
    %94 = arith.mulf %89, %93 : vector<32x32xf32>
    %95 = arith.truncf %94 : vector<32x32xf32> to vector<32x32xbf16>
    %cst_32 = arith.constant dense<0.000000e+00> : vector<32x32xf32>
    %96 = tpu.matmul %95, %78, %cst_32 {dimension_numbers = #tpu.dot_dimension_numbers<[1], [0], [0], [1], [0, 0, 1, 1], [], []>} : vector<32x32xbf16>, vector<32x32xbf16>, vector<32x32xf32> -> vector<32x32xf32>
    %97 = arith.truncf %96 : vector<32x32xf32> to vector<32x32xbf16>
    %c0_33 = arith.constant 0 : index
    %c64 = arith.constant 64 : index
    %c0_34 = arith.constant 0 : index
    %98 = vector.load %arg6[%c0_33, %c64, %c0_34] : memref<1x128x128xbf16, #tpu.memory_space<vmem>>, vector<1x32x128xbf16>
    %99 = vector.shape_cast %98 : vector<1x32x128xbf16> to vector<32x128xbf16>
    %cst_35 = arith.constant dense<0.000000e+00> : vector<32x128xf32>
    %100 = tpu.matmul %97, %99, %cst_35 {dimension_numbers = #tpu.dot_dimension_numbers<[1], [0], [0], [1], [0, 0, 1, 1], [], []>} : vector<32x32xbf16>, vector<32x128xbf16>, vector<32x128xf32> -> vector<32x128xf32>
    %101 = arith.addf %72, %100 : vector<32x128xf32>
    %102 = vector.extract_strided_slice %13 {offsets = [0, 96], sizes = [32, 32], strides = [1, 1]} : vector<32x384xf32> to vector<32x32xf32>
    %103 = arith.truncf %102 : vector<32x32xf32> to vector<32x32xbf16>
    %104 = vector.extract_strided_slice %13 {offsets = [0, 224], sizes = [32, 32], strides = [1, 1]} : vector<32x384xf32> to vector<32x32xf32>
    %105 = arith.truncf %104 : vector<32x32xf32> to vector<32x32xbf16>
    %106 = vector.extract_strided_slice %13 {offsets = [0, 352], sizes = [32, 32], strides = [1, 1]} : vector<32x384xf32> to vector<32x32xf32>
    %107 = arith.truncf %106 : vector<32x32xf32> to vector<32x32xbf16>
    %cst_36 = arith.constant dense<0.000000e+00> : vector<32x32xf32>
    %108 = tpu.matmul %103, %105, %cst_36 {dimension_numbers = #tpu.dot_dimension_numbers<[1], [1], [0], [0], [0, 0, 1, 0], [], []>} : vector<32x32xbf16>, vector<32x32xbf16>, vector<32x32xf32> -> vector<32x32xf32>
    %109 = tpu.iota {dimensions = array<i32: 1>} : vector<32x32xi32>
    %c17_i32_37 = arith.constant 17 : i32
    %110 = vector.broadcast %c17_i32_37 : i32 to vector<32x32xi32>
    %111 = arith.cmpi slt, %109, %110 : vector<32x32xi32>
    %cst_38 = arith.constant -1.000000e+30 : f32
    %112 = vector.broadcast %cst_38 : f32 to vector<32x32xf32>
    %113 = arith.select %111, %108, %112 : vector<32x32xi1>, vector<32x32xf32>
    %cst_39 = arith.constant dense<0xFF800000> : vector<32xf32>
    %114 = vector.multi_reduction <maximumf>, %113, %cst_39 [1] : vector<32x32xf32> to vector<32xf32>
    %115 = vector.shape_cast %114 : vector<32xf32> to vector<32x1xf32>
    %116 = vector.broadcast %115 : vector<32x1xf32> to vector<32x32xf32>
    %117 = arith.subf %113, %116 : vector<32x32xf32>
    %118 = math.exp %117 : vector<32x32xf32>
    %cst_40 = arith.constant dense<0.000000e+00> : vector<32xf32>
    %119 = vector.multi_reduction <add>, %118, %cst_40 [1] : vector<32x32xf32> to vector<32xf32>
    %120 = vector.shape_cast %119 : vector<32xf32> to vector<32x1xf32>
    %121 = tpu.reciprocal %120 {approx = true} : vector<32x1xf32> -> vector<32x1xf32>
    %122 = vector.broadcast %121 : vector<32x1xf32> to vector<32x32xf32>
    %123 = arith.mulf %118, %122 : vector<32x32xf32>
    %124 = arith.truncf %123 : vector<32x32xf32> to vector<32x32xbf16>
    %cst_41 = arith.constant dense<0.000000e+00> : vector<32x32xf32>
    %125 = tpu.matmul %124, %107, %cst_41 {dimension_numbers = #tpu.dot_dimension_numbers<[1], [0], [0], [1], [0, 0, 1, 1], [], []>} : vector<32x32xbf16>, vector<32x32xbf16>, vector<32x32xf32> -> vector<32x32xf32>
    %126 = arith.truncf %125 : vector<32x32xf32> to vector<32x32xbf16>
    %c0_42 = arith.constant 0 : index
    %c96 = arith.constant 96 : index
    %c0_43 = arith.constant 0 : index
    %127 = vector.load %arg6[%c0_42, %c96, %c0_43] : memref<1x128x128xbf16, #tpu.memory_space<vmem>>, vector<1x32x128xbf16>
    %128 = vector.shape_cast %127 : vector<1x32x128xbf16> to vector<32x128xbf16>
    %cst_44 = arith.constant dense<0.000000e+00> : vector<32x128xf32>
    %129 = tpu.matmul %126, %128, %cst_44 {dimension_numbers = #tpu.dot_dimension_numbers<[1], [0], [0], [1], [0, 0, 1, 1], [], []>} : vector<32x32xbf16>, vector<32x128xbf16>, vector<32x128xf32> -> vector<32x128xf32>
    %130 = arith.addf %101, %129 : vector<32x128xf32>
    %c0_45 = arith.constant 0 : index
    %c0_46 = arith.constant 0 : index
    %c0_47 = arith.constant 0 : index
    %131 = vector.load %arg7[%c0_45, %c0_46, %c0_47] : memref<1x1x128xf32, #tpu.memory_space<vmem>>, vector<1x1x128xf32>
    %132 = vector.shape_cast %131 : vector<1x1x128xf32> to vector<1x128xf32>
    %133 = vector.broadcast %132 : vector<1x128xf32> to vector<32x128xf32>
    %134 = arith.addf %130, %133 : vector<32x128xf32>
    %135 = arith.addf %5, %134 : vector<32x128xf32>
    %c0_48 = arith.constant 0 : index
    %c0_49 = arith.constant 0 : index
    %c0_50 = arith.constant 0 : index
    %136 = vector.load %arg8[%c0_48, %c0_49, %c0_50] : memref<1x1x128xf32, #tpu.memory_space<vmem>>, vector<1x1x128xf32>
    %137 = vector.shape_cast %136 : vector<1x1x128xf32> to vector<1x128xf32>
    %c0_51 = arith.constant 0 : index
    %c0_52 = arith.constant 0 : index
    %c0_53 = arith.constant 0 : index
    %138 = vector.load %arg9[%c0_51, %c0_52, %c0_53] : memref<1x1x128xf32, #tpu.memory_space<vmem>>, vector<1x1x128xf32>
    %139 = vector.shape_cast %138 : vector<1x1x128xf32> to vector<1x128xf32>
    %cst_54 = arith.constant dense<0.000000e+00> : vector<32xf32>
    %140 = vector.multi_reduction <add>, %135, %cst_54 [1] : vector<32x128xf32> to vector<32xf32>
    %141 = vector.shape_cast %140 : vector<32xf32> to vector<32x1xf32>
    %cst_55 = arith.constant 1.280000e+02 : f32
    %142 = vector.broadcast %cst_55 : f32 to vector<32x1xf32>
    %143 = arith.divf %141, %142 : vector<32x1xf32>
    %144 = vector.broadcast %143 : vector<32x1xf32> to vector<32x128xf32>
    %145 = arith.subf %135, %144 : vector<32x128xf32>
    %146 = arith.mulf %145, %145 : vector<32x128xf32>
    %cst_56 = arith.constant dense<0.000000e+00> : vector<32xf32>
    %147 = vector.multi_reduction <add>, %146, %cst_56 [1] : vector<32x128xf32> to vector<32xf32>
    %148 = vector.shape_cast %147 : vector<32xf32> to vector<32x1xf32>
    %cst_57 = arith.constant 1.280000e+02 : f32
    %149 = vector.broadcast %cst_57 : f32 to vector<32x1xf32>
    %150 = arith.divf %148, %149 : vector<32x1xf32>
    %151 = vector.broadcast %143 : vector<32x1xf32> to vector<32x128xf32>
    %152 = arith.subf %135, %151 : vector<32x128xf32>
    %cst_58 = arith.constant 9.99999974E-6 : f32
    %153 = vector.broadcast %cst_58 : f32 to vector<32x1xf32>
    %154 = arith.addf %150, %153 : vector<32x1xf32>
    %155 = math.rsqrt %154 : vector<32x1xf32>
    %156 = vector.broadcast %155 : vector<32x1xf32> to vector<32x128xf32>
    %157 = arith.mulf %152, %156 : vector<32x128xf32>
    %158 = vector.broadcast %137 : vector<1x128xf32> to vector<32x128xf32>
    %159 = arith.mulf %157, %158 : vector<32x128xf32>
    %160 = vector.broadcast %139 : vector<1x128xf32> to vector<32x128xf32>
    %161 = arith.addf %159, %160 : vector<32x128xf32>
    %162 = arith.truncf %161 : vector<32x128xf32> to vector<32x128xbf16>
    %c0_59 = arith.constant 0 : index
    %c0_60 = arith.constant 0 : index
    %c0_61 = arith.constant 0 : index
    %163 = vector.load %arg10[%c0_59, %c0_60, %c0_61] : memref<1x128x256xbf16, #tpu.memory_space<vmem>>, vector<1x128x256xbf16>
    %164 = vector.shape_cast %163 : vector<1x128x256xbf16> to vector<128x256xbf16>
    %cst_62 = arith.constant dense<0.000000e+00> : vector<32x256xf32>
    %165 = tpu.matmul %162, %164, %cst_62 {dimension_numbers = #tpu.dot_dimension_numbers<[1], [0], [0], [1], [0, 0, 1, 1], [], []>} : vector<32x128xbf16>, vector<128x256xbf16>, vector<32x256xf32> -> vector<32x256xf32>
    %c0_63 = arith.constant 0 : index
    %c0_64 = arith.constant 0 : index
    %c0_65 = arith.constant 0 : index
    %166 = vector.load %arg11[%c0_63, %c0_64, %c0_65] : memref<1x1x256xf32, #tpu.memory_space<vmem>>, vector<1x1x256xf32>
    %167 = vector.shape_cast %166 : vector<1x1x256xf32> to vector<1x256xf32>
    %168 = vector.broadcast %167 : vector<1x256xf32> to vector<32x256xf32>
    %169 = arith.addf %165, %168 : vector<32x256xf32>
    %cst_66 = arith.constant 0.000000e+00 : f32
    %170 = vector.broadcast %cst_66 : f32 to vector<32x256xf32>
    %171 = arith.maximumf %169, %170 : vector<32x256xf32>
    %172 = arith.truncf %171 : vector<32x256xf32> to vector<32x256xbf16>
    %c0_67 = arith.constant 0 : index
    %c0_68 = arith.constant 0 : index
    %c0_69 = arith.constant 0 : index
    %173 = vector.load %arg12[%c0_67, %c0_68, %c0_69] : memref<1x256x128xbf16, #tpu.memory_space<vmem>>, vector<1x256x128xbf16>
    %174 = vector.shape_cast %173 : vector<1x256x128xbf16> to vector<256x128xbf16>
    %cst_70 = arith.constant dense<0.000000e+00> : vector<32x128xf32>
    %175 = tpu.matmul %172, %174, %cst_70 {dimension_numbers = #tpu.dot_dimension_numbers<[1], [0], [0], [1], [0, 0, 1, 1], [], []>} : vector<32x256xbf16>, vector<256x128xbf16>, vector<32x128xf32> -> vector<32x128xf32>
    %c0_71 = arith.constant 0 : index
    %c0_72 = arith.constant 0 : index
    %c0_73 = arith.constant 0 : index
    %176 = vector.load %arg13[%c0_71, %c0_72, %c0_73] : memref<1x1x128xf32, #tpu.memory_space<vmem>>, vector<1x1x128xf32>
    %177 = vector.shape_cast %176 : vector<1x1x128xf32> to vector<1x128xf32>
    %178 = vector.broadcast %177 : vector<1x128xf32> to vector<32x128xf32>
    %179 = arith.addf %175, %178 : vector<32x128xf32>
    %180 = arith.addf %161, %179 : vector<32x128xf32>
    %c0_74 = arith.constant 0 : index
    %c0_75 = arith.constant 0 : index
    %c0_76 = arith.constant 0 : index
    %181 = vector.load %arg14[%c0_74, %c0_75, %c0_76] : memref<1x1x128xf32, #tpu.memory_space<vmem>>, vector<1x1x128xf32>
    %182 = vector.shape_cast %181 : vector<1x1x128xf32> to vector<1x128xf32>
    %c0_77 = arith.constant 0 : index
    %c0_78 = arith.constant 0 : index
    %c0_79 = arith.constant 0 : index
    %183 = vector.load %arg15[%c0_77, %c0_78, %c0_79] : memref<1x1x128xf32, #tpu.memory_space<vmem>>, vector<1x1x128xf32>
    %184 = vector.shape_cast %183 : vector<1x1x128xf32> to vector<1x128xf32>
    %cst_80 = arith.constant dense<0.000000e+00> : vector<32xf32>
    %185 = vector.multi_reduction <add>, %180, %cst_80 [1] : vector<32x128xf32> to vector<32xf32>
    %186 = vector.shape_cast %185 : vector<32xf32> to vector<32x1xf32>
    %cst_81 = arith.constant 1.280000e+02 : f32
    %187 = vector.broadcast %cst_81 : f32 to vector<32x1xf32>
    %188 = arith.divf %186, %187 : vector<32x1xf32>
    %189 = vector.broadcast %188 : vector<32x1xf32> to vector<32x128xf32>
    %190 = arith.subf %180, %189 : vector<32x128xf32>
    %191 = arith.mulf %190, %190 : vector<32x128xf32>
    %cst_82 = arith.constant dense<0.000000e+00> : vector<32xf32>
    %192 = vector.multi_reduction <add>, %191, %cst_82 [1] : vector<32x128xf32> to vector<32xf32>
    %193 = vector.shape_cast %192 : vector<32xf32> to vector<32x1xf32>
    %cst_83 = arith.constant 1.280000e+02 : f32
    %194 = vector.broadcast %cst_83 : f32 to vector<32x1xf32>
    %195 = arith.divf %193, %194 : vector<32x1xf32>
    %196 = vector.broadcast %188 : vector<32x1xf32> to vector<32x128xf32>
    %197 = arith.subf %180, %196 : vector<32x128xf32>
    %cst_84 = arith.constant 9.99999974E-6 : f32
    %198 = vector.broadcast %cst_84 : f32 to vector<32x1xf32>
    %199 = arith.addf %195, %198 : vector<32x1xf32>
    %200 = math.rsqrt %199 : vector<32x1xf32>
    %201 = vector.broadcast %200 : vector<32x1xf32> to vector<32x128xf32>
    %202 = arith.mulf %197, %201 : vector<32x128xf32>
    %203 = vector.broadcast %182 : vector<1x128xf32> to vector<32x128xf32>
    %204 = arith.mulf %202, %203 : vector<32x128xf32>
    %205 = vector.broadcast %184 : vector<1x128xf32> to vector<32x128xf32>
    %206 = arith.addf %204, %205 : vector<32x128xf32>
    %207 = arith.index_cast %arg2 : i32 to index
    %c0_85 = arith.constant 0 : index
    %c0_86 = arith.constant 0 : index
    %208 = vector.load %arg17[%207, %c0_85, %c0_86] : memref<2x32x128xf32, #tpu.memory_space<vmem>>, vector<1x32x128xf32>
    %209 = vector.shape_cast %208 : vector<1x32x128xf32> to vector<32x128xf32>
    %210 = vector.shape_cast %206 : vector<32x128xf32> to vector<1x32x128xf32>
    tpu.vector_store %arg17[%207, %c0_85, %c0_86], %210 {strides = array<i32>} : memref<2x32x128xf32, #tpu.memory_space<vmem>>, vector<1x32x128xf32>,
    %c1_i32 = arith.constant 1 : i32
    %211 = arith.cmpi eq, %arg1, %c1_i32 : i32
    %212 = arith.extui %211 : i1 to i32
    %c0_i32_87 = arith.constant 0 : i32
    %213 = arith.cmpi ne, %212, %c0_i32_87 : i32
    scf.if %213 {
      %214 = vector.extract_strided_slice %206 {offsets = [0, 0], sizes = [8, 128], strides = [1, 1]} : vector<32x128xf32> to vector<8x128xf32>
      %215 = arith.index_cast %arg2 : i32 to index
      %c0_88 = arith.constant 0 : index
      %c0_89 = arith.constant 0 : index
      %216 = vector.load %arg16[%215, %c0_88, %c0_89] : memref<2x8x128xf32, #tpu.memory_space<vmem>>, vector<1x8x128xf32>
      %217 = vector.shape_cast %216 : vector<1x8x128xf32> to vector<8x128xf32>
      %218 = vector.shape_cast %214 : vector<8x128xf32> to vector<1x8x128xf32>
      tpu.vector_store %arg16[%215, %c0_88, %c0_89], %218 {strides = array<i32>} : memref<2x8x128xf32, #tpu.memory_space<vmem>>, vector<1x8x128xf32>,
    } else {
    }
    return
  }
  func.func @transform_0(%arg0: i32, %arg1: i32, %arg2: i32) -> (i32, i32, i32) {
    %c0_i32 = arith.constant 0 : i32
    %c0_i32_0 = arith.constant 0 : i32
    %c0_i32_1 = arith.constant 0 : i32
    return %arg0, %c0_i32, %c0_i32_0 : i32, i32, i32
  }
  func.func @transform_1(%arg0: i32, %arg1: i32, %arg2: i32) -> (i32, i32, i32) {
    %c0_i32 = arith.constant 0 : i32
    %c0_i32_0 = arith.constant 0 : i32
    %c0_i32_1 = arith.constant 0 : i32
    return %arg1, %c0_i32, %c0_i32_0 : i32, i32, i32
  }
  func.func @transform_2(%arg0: i32, %arg1: i32, %arg2: i32) -> (i32, i32, i32) {
    %c0_i32 = arith.constant 0 : i32
    %c0_i32_0 = arith.constant 0 : i32
    %c0_i32_1 = arith.constant 0 : i32
    return %arg1, %c0_i32, %c0_i32_0 : i32, i32, i32
  }
  func.func @transform_3(%arg0: i32, %arg1: i32, %arg2: i32) -> (i32, i32, i32) {
    %c0_i32 = arith.constant 0 : i32
    %c0_i32_0 = arith.constant 0 : i32
    %c0_i32_1 = arith.constant 0 : i32
    return %arg1, %c0_i32, %c0_i32_0 : i32, i32, i32
  }
  func.func @transform_4(%arg0: i32, %arg1: i32, %arg2: i32) -> (i32, i32, i32) {
    %c0_i32 = arith.constant 0 : i32
    %c0_i32_0 = arith.constant 0 : i32
    %c0_i32_1 = arith.constant 0 : i32
    return %arg1, %c0_i32, %c0_i32_0 : i32, i32, i32
  }
  func.func @transform_5(%arg0: i32, %arg1: i32, %arg2: i32) -> (i32, i32, i32) {
    %c0_i32 = arith.constant 0 : i32
    %c0_i32_0 = arith.constant 0 : i32
    %c0_i32_1 = arith.constant 0 : i32
    return %arg1, %c0_i32, %c0_i32_0 : i32, i32, i32
  }
  func.func @transform_6(%arg0: i32, %arg1: i32, %arg2: i32) -> (i32, i32, i32) {
    %c0_i32 = arith.constant 0 : i32
    %c0_i32_0 = arith.constant 0 : i32
    %c0_i32_1 = arith.constant 0 : i32
    return %arg1, %c0_i32, %c0_i32_0 : i32, i32, i32
  }
  func.func @transform_7(%arg0: i32, %arg1: i32, %arg2: i32) -> (i32, i32, i32) {
    %c0_i32 = arith.constant 0 : i32
    %c0_i32_0 = arith.constant 0 : i32
    %c0_i32_1 = arith.constant 0 : i32
    return %arg1, %c0_i32, %c0_i32_0 : i32, i32, i32
  }
  func.func @transform_8(%arg0: i32, %arg1: i32, %arg2: i32) -> (i32, i32, i32) {
    %c0_i32 = arith.constant 0 : i32
    %c0_i32_0 = arith.constant 0 : i32
    %c0_i32_1 = arith.constant 0 : i32
    return %arg1, %c0_i32, %c0_i32_0 : i32, i32, i32
  }
  func.func @transform_9(%arg0: i32, %arg1: i32, %arg2: i32) -> (i32, i32, i32) {
    %c0_i32 = arith.constant 0 : i32
    %c0_i32_0 = arith.constant 0 : i32
    %c0_i32_1 = arith.constant 0 : i32
    return %arg1, %c0_i32, %c0_i32_0 : i32, i32, i32
  }
  func.func @transform_10(%arg0: i32, %arg1: i32, %arg2: i32) -> (i32, i32, i32) {
    %c0_i32 = arith.constant 0 : i32
    %c0_i32_0 = arith.constant 0 : i32
    %c0_i32_1 = arith.constant 0 : i32
    return %arg1, %c0_i32, %c0_i32_0 : i32, i32, i32
  }
  func.func @transform_11(%arg0: i32, %arg1: i32, %arg2: i32) -> (i32, i32, i32) {
    %c0_i32 = arith.constant 0 : i32
    %c0_i32_0 = arith.constant 0 : i32
    %c0_i32_1 = arith.constant 0 : i32
    return %arg1, %c0_i32, %c0_i32_0 : i32, i32, i32
  }
  func.func @transform_12(%arg0: i32, %arg1: i32, %arg2: i32) -> (i32, i32, i32) {
    %c0_i32 = arith.constant 0 : i32
    %c0_i32_0 = arith.constant 0 : i32
    %c0_i32_1 = arith.constant 0 : i32
    return %arg1, %c0_i32, %c0_i32_0 : i32, i32, i32
  }
  func.func @transform_13(%arg0: i32, %arg1: i32, %arg2: i32) -> (i32, i32, i32) {
    %c0_i32 = arith.constant 0 : i32
    %c0_i32_0 = arith.constant 0 : i32
    %c0_i32_1 = arith.constant 0 : i32
    return %arg0, %c0_i32, %c0_i32_0 : i32, i32, i32
  }
}

module attributes {stable_mosaic.version = 11 : i64} {
  func.func @_matmul_bias_kernel(%arg0: i32, %arg1: memref<8x128xbf16, #tpu.memory_space<vmem>>, %arg2: memref<128x128xbf16, #tpu.memory_space<vmem>>, %arg3: memref<1x128xf32, #tpu.memory_space<vmem>>, %arg4: memref<8x128xf32, #tpu.memory_space<vmem>>) attributes {dimension_semantics = [#tpu.dimension_semantics<parallel>], iteration_bounds = array<i64: 1>, scalar_prefetch = 0 : i64, scratch_operands = 0 : i64, tpu.core_type = #tpu.core_type<tc>, window_params = [{transform_indices = @transform_0, window_bounds = array<i64: 8, 128>}, {pipeline_mode = #tpu.pipeline_mode<synchronous>, transform_indices = @transform_1, window_bounds = array<i64: 128, 128>}, {pipeline_mode = #tpu.pipeline_mode<synchronous>, transform_indices = @transform_2, window_bounds = array<i64: 1, 128>}, {transform_indices = @transform_3, window_bounds = array<i64: 8, 128>}]} {
    %c0 = arith.constant 0 : index
    %c0_0 = arith.constant 0 : index
    %0 = vector.load %arg1[%c0, %c0_0] : memref<8x128xbf16, #tpu.memory_space<vmem>>, vector<8x128xbf16>
    %c0_1 = arith.constant 0 : index
    %c0_2 = arith.constant 0 : index
    %1 = vector.load %arg2[%c0_1, %c0_2] : memref<128x128xbf16, #tpu.memory_space<vmem>>, vector<128x128xbf16>
    %cst = arith.constant dense<0.000000e+00> : vector<8x128xf32>
    %2 = tpu.matmul %0, %1, %cst {dimension_numbers = #tpu.dot_dimension_numbers<[1], [0], [0], [1], [0, 0, 1, 1], [], []>} : vector<8x128xbf16>, vector<128x128xbf16>, vector<8x128xf32> -> vector<8x128xf32>
    %c0_3 = arith.constant 0 : index
    %c0_4 = arith.constant 0 : index
    %3 = vector.load %arg3[%c0_3, %c0_4] : memref<1x128xf32, #tpu.memory_space<vmem>>, vector<1x128xf32>
    %4 = vector.broadcast %3 : vector<1x128xf32> to vector<8x128xf32>
    %5 = arith.addf %2, %4 : vector<8x128xf32>
    %c0_5 = arith.constant 0 : index
    %c0_6 = arith.constant 0 : index
    %6 = vector.load %arg4[%c0_5, %c0_6] : memref<8x128xf32, #tpu.memory_space<vmem>>, vector<8x128xf32>
    tpu.vector_store %arg4[%c0_5, %c0_6], %5 {strides = array<i32>} : memref<8x128xf32, #tpu.memory_space<vmem>>, vector<8x128xf32>,
    return
  }
  func.func @transform_0(%arg0: i32) -> (i32, i32) {
    %c0_i32 = arith.constant 0 : i32
    %c0_i32_0 = arith.constant 0 : i32
    return %arg0, %c0_i32 : i32, i32
  }
  func.func @transform_1(%arg0: i32) -> (i32, i32) {
    %c0_i32 = arith.constant 0 : i32
    %c0_i32_0 = arith.constant 0 : i32
    %c0_i32_1 = arith.constant 0 : i32
    return %c0_i32, %c0_i32_0 : i32, i32
  }
  func.func @transform_2(%arg0: i32) -> (i32, i32) {
    %c0_i32 = arith.constant 0 : i32
    %c0_i32_0 = arith.constant 0 : i32
    %c0_i32_1 = arith.constant 0 : i32
    return %c0_i32, %c0_i32_0 : i32, i32
  }
  func.func @transform_3(%arg0: i32) -> (i32, i32) {
    %c0_i32 = arith.constant 0 : i32
    %c0_i32_0 = arith.constant 0 : i32
    return %arg0, %c0_i32 : i32, i32
  }
}

</mosaic_0001>

<llo_original>
// kernel: vit_forward.3
$region0: #{vit_forward.3}
  #allocation0 [shape = 'u32[]', space=smem, size = 0x4, offset = 0x4, fixed_abs, tag = 'smem constant byte address 0x4 - core index']
  #allocation1 [shape = 'u32[144,128]{1,0:T(1,128)}', space=vmem, size = 0x12000, scoped, tag = 'internal scratch']
  %s0 = inlined_call_operand.hbm [shape: bf16[64,256], index: 0, kind: input, shape index: {}]
  %s1 = inlined_call_operand.hbm [shape: bf16[256,128], index: 1, kind: input, shape index: {}]
  %s2 = inlined_call_operand.hbm [shape: f32[1,128], index: 2, kind: input, shape index: {}]
  %s3 = inlined_call_operand.hbm [shape: bf16[64,128], index: 3, kind: output, shape index: {}]
  %s4 = sld [smem:[#allocation0]]
  $region34: #{vit_forward.3} parent=0
    _
  %s6 = ssub.s32 1, %s4
  %s7 = scalar_select 0, %s6, %s4
  $region1: #{vit_forward.3} parent=0
    #allocation2 [shape = 'u8[32768]{0}', space=vmem, size = 0x8000, scoped, tag = 'input window, operand 0, single buffered']
    #allocation3 [shape = 's32[1]{0}', space=sflag, size = 0x4, scoped, tag = 'scoped memory for vit_forward.3']
    #allocation4 [shape = 's32[1]{0}', space=sflag, size = 0x4, scoped, tag = 'scoped memory for vit_forward.3']
    #allocation5 [shape = 'u8[65536]{0}', space=vmem, size = 0x10000, scoped, tag = 'input window, operand 1, single buffered']
    #allocation6 [shape = 's32[1]{0}', space=sflag, size = 0x4, scoped, tag = 'scoped memory for vit_forward.3']
    #allocation7 [shape = 'u8[512]{0}', space=vmem, size = 0x400, scoped, tag = 'input window, operand 2, single buffered']
    #allocation8 [shape = 'u8[16384]{0}', space=vmem, size = 0x4000, scoped, tag = 'output window, operand 0, single buffered']
    %8 = vsyncpa [#allocation3], 0
    %9 = vsyncpa [#allocation6], 0
    %10 = vsyncpa [#allocation4], 0
    // Predicated region
    $region2: #{vit_forward.3} parent=1 // pred_check
      _
    $region3: #{vit_forward.3} parent=1 // pred_check_branch
      %12 = sbr.rel (0) target = $region5
    $region4: #{vit_forward.3} parent=1 // pred_region
      %s14 = ssub.s32 1024, 1024
      %15 = vsyncadd [#allocation3], %s14
      %s16 = sshll.u32 [#allocation2], 4
      %s17 = int_to_ptr.vmem [resolvable:$true] %s16
      %22 = dma.hbm_to_vmem [thread:$0]  %s0, 1024, %s17, [#allocation3], 128, 128, 8
    $region5: #{vit_forward.3} parent=1 // pred_fallthru
      _
    // Predicated region
    $region6: #{vit_forward.3} parent=1 // pred_check
      _
    $region7: #{vit_forward.3} parent=1 // pred_check_branch
      %24 = sbr.rel (0) target = $region9
    $region8: #{vit_forward.3} parent=1 // pred_region
      %s26 = ssub.s32 2048, 2048
      %27 = vsyncadd [#allocation6], %s26
      %s28 = sshll.u32 [#allocation5], 4
      %s29 = int_to_ptr.vmem [resolvable:$true] %s28
      %34 = dma.hbm_to_vmem [thread:$0]  %s1, 2048, %s29, [#allocation6], 64, 64, 4
    $region9: #{vit_forward.3} parent=1 // pred_fallthru
      _
    // Predicated region
    $region10: #{vit_forward.3} parent=1 // pred_check
      _
    $region11: #{vit_forward.3} parent=1 // pred_check_branch
      %36 = sbr.rel (0) target = $region13
    $region12: #{vit_forward.3} parent=1 // pred_region
      %s38 = ssub.s32 16, 16
      %39 = vsyncadd [#allocation6], %s38
      %s41 = sshll.u32 [#allocation7], 4
      %s42 = int_to_ptr.vmem [resolvable:$true] %s41
      %44 = dma.hbm_to_vmem [thread:$0]  %s2, 16, %s42, [#allocation6]
    $region13: #{vit_forward.3} parent=1 // pred_fallthru
      _
    // Predicated region
    $region14: #{vit_forward.3} parent=1 // pred_check
      _
    $region15: #{vit_forward.3} parent=1 // pred_check_branch
      %46 = sbr.rel (0) target = $region17
    $region16: #{vit_forward.3} parent=1 // pred_region
      %47 = dma.done [#allocation3], 1024
    $region17: #{vit_forward.3} parent=1 // pred_fallthru
      _
    // Predicated region
    $region18: #{vit_forward.3} parent=1 // pred_check
      _
    $region19: #{vit_forward.3} parent=1 // pred_check_branch
      %49 = sbr.rel (0) target = $region21
    $region20: #{vit_forward.3} parent=1 // pred_region
      %50 = dma.done [#allocation6], 2048
    $region21: #{vit_forward.3} parent=1 // pred_fallthru
      _
    // Predicated region
    $region22: #{vit_forward.3} parent=1 // pred_check
      _
    $region23: #{vit_forward.3} parent=1 // pred_check_branch
      %52 = sbr.rel (0) target = $region25
    $region24: #{vit_forward.3} parent=1 // pred_region
      %53 = dma.done [#allocation6], 16
    $region25: #{vit_forward.3} parent=1 // pred_fallthru
      _
    %v55 = vld [vmem:[#allocation2] sm:$0xff]
    %v56 = vld [vmem:[#allocation2 + $0x8] sm:$0xff]
    %v57 = vld [vmem:[#allocation2 + $0x10] sm:$0xff]
    %v58 = vld [vmem:[#allocation2 + $0x18] sm:$0xff]
    %v59 = vld [vmem:[#allocation2 + $0x20] sm:$0xff]
    %v60 = vld [vmem:[#allocation2 + $0x28] sm:$0xff]
    %v61 = vld [vmem:[#allocation2 + $0x30] sm:$0xff]
    %v62 = vld [vmem:[#allocation2 + $0x38] sm:$0xff]
    %v63 = vld [vmem:[#allocation5] sm:$0xf]
    %v64 = vld [vmem:[#allocation5 + $0x4] sm:$0xf]
    %v65 = vld [vmem:[#allocation5 + $0x8] sm:$0xf]
    %v66 = vld [vmem:[#allocation5 + $0xc] sm:$0xf]
    %v67 = vld [vmem:[#allocation5 + $0x10] sm:$0xf]
    %v68 = vld [vmem:[#allocation5 + $0x14] sm:$0xf]
    %v69 = vld [vmem:[#allocation5 + $0x18] sm:$0xf]
    %v70 = vld [vmem:[#allocation5 + $0x1c] sm:$0xf]
    %v71 = vld [vmem:[#allocation5 + $0x20] sm:$0xf]
    %v72 = vld [vmem:[#allocation5 + $0x24] sm:$0xf]
    %v73 = vld [vmem:[#allocation5 + $0x28] sm:$0xf]
    %v74 = vld [vmem:[#allocation5 + $0x2c] sm:$0xf]
    %v75 = vld [vmem:[#allocation5 + $0x30] sm:$0xf]
    %v76 = vld [vmem:[#allocation5 + $0x34] sm:$0xf]
    %v77 = vld [vmem:[#allocation5 + $0x38] sm:$0xf]
    %v78 = vld [vmem:[#allocation5 + $0x3c] sm:$0xf]
    %v79 = vld [vmem:[#allocation5 + $0x40] sm:$0xf]
    %v80 = vld [vmem:[#allocation5 + $0x44] sm:$0xf]
    %v81 = vld [vmem:[#allocation5 + $0x48] sm:$0xf]
    %v82 = vld [vmem:[#allocation5 + $0x4c] sm:$0xf]
    %v83 = vld [vmem:[#allocation5 + $0x50] sm:$0xf]
    %v84 = vld [vmem:[#allocation5 + $0x54] sm:$0xf]
    %v85 = vld [vmem:[#allocation5 + $0x58] sm:$0xf]
    %v86 = vld [vmem:[#allocation5 + $0x5c] sm:$0xf]
    %v87 = vld [vmem:[#allocation5 + $0x60] sm:$0xf]
    %v88 = vld [vmem:[#allocation5 + $0x64] sm:$0xf]
    %v89 = vld [vmem:[#allocation5 + $0x68] sm:$0xf]
    %v90 = vld [vmem:[#allocation5 + $0x6c] sm:$0xf]
    %v91 = vld [vmem:[#allocation5 + $0x70] sm:$0xf]
    %v92 = vld [vmem:[#allocation5 + $0x74] sm:$0xf]
    %v93 = vld [vmem:[#allocation5 + $0x78] sm:$0xf]
    %v94 = vld [vmem:[#allocation5 + $0x7c] sm:$0xf]
    %v95 = vld [vmem:[#allocation7] sm:$0x1]
    %v97 = vlaneseq
    %v98 = vshrl.u32 %v97, 7
    %v99 = vsub.s32 0, %v98
    %v100 = vrot.slane %v95, %v99
    %v110 = vunpack.c.l.b16 %v55
    %v111 = vunpack.c.h.b16 %v55
    %v112 = vunpack.c.l.b16 %v56
    %v113 = vunpack.c.h.b16 %v56
    %v114 = vunpack.c.l.b16 %v57
    %v115 = vunpack.c.h.b16 %v57
    %v116 = vunpack.c.l.b16 %v58
    %v117 = vunpack.c.h.b16 %v58
    %v118 = vunpack.c.l.b16 %v59
    %v119 = vunpack.c.h.b16 %v59
    %v120 = vunpack.c.l.b16 %v60
    %v121 = vunpack.c.h.b16 %v60
    %v122 = vunpack.c.l.b16 %v61
    %v123 = vunpack.c.h.b16 %v61
    %v124 = vunpack.c.l.b16 %v62
    %v125 = vunpack.c.h.b16 %v62
    %v126 = vpack.c.b16 %v112, %v110
    %v127 = vpack.c.b16 %v113, %v111
    %v128 = vpack.c.b16 %v116, %v114
    %v129 = vpack.c.b16 %v117, %v115
    %v130 = vpack.c.b16 %v120, %v118
    %v131 = vpack.c.b16 %v121, %v119
    %v132 = vpack.c.b16 %v124, %v122
    %v133 = vpack.c.b16 %v125, %v123
    %v174 = vunpack.c.l.b16 %v63
    %v175 = vunpack.c.l.b16 %v64
    %v176 = vunpack.c.l.b16 %v65
    %v177 = vunpack.c.l.b16 %v66
    %v178 = vunpack.c.l.b16 %v67
    %v179 = vunpack.c.l.b16 %v68
    %v180 = vunpack.c.l.b16 %v69
    %v181 = vunpack.c.l.b16 %v70
    %v182 = vunpack.c.l.b16 %v71
    %v183 = vunpack.c.l.b16 %v72
    %v184 = vunpack.c.l.b16 %v73
    %v185 = vunpack.c.l.b16 %v74
    %v186 = vunpack.c.l.b16 %v75
    %v187 = vunpack.c.l.b16 %v76
    %v188 = vunpack.c.l.b16 %v77
    %v189 = vunpack.c.l.b16 %v78
    %v190 = vunpack.c.l.b16 %v79
    %v191 = vunpack.c.l.b16 %v80
    %v192 = vunpack.c.l.b16 %v81
    %v193 = vunpack.c.l.b16 %v82
    %v194 = vunpack.c.l.b16 %v83
    %v195 = vunpack.c.l.b16 %v84
    %v196 = vunpack.c.l.b16 %v85
    %v197 = vunpack.c.l.b16 %v86
    %v198 = vunpack.c.l.b16 %v87
    %v199 = vunpack.c.l.b16 %v88
    %v200 = vunpack.c.l.b16 %v89
    %v201 = vunpack.c.l.b16 %v90
    %v202 = vunpack.c.l.b16 %v91
    %v203 = vunpack.c.l.b16 %v92
    %v204 = vunpack.c.l.b16 %v93
    %v205 = vunpack.c.l.b16 %v94
    %v206 = vpack.c.b16 %v175, %v174
    %v207 = vpack.c.b16 %v177, %v176
    %v208 = vpack.c.b16 %v179, %v178
    %v209 = vpack.c.b16 %v181, %v180
    %v210 = vpack.c.b16 %v183, %v182
    %v211 = vpack.c.b16 %v185, %v184
    %v212 = vpack.c.b16 %v187, %v186
    %v213 = vpack.c.b16 %v189, %v188
    %v214 = vpack.c.b16 %v191, %v190
    %v215 = vpack.c.b16 %v193, %v192
    %v216 = vpack.c.b16 %v195, %v194
    %v217 = vpack.c.b16 %v197, %v196
    %v218 = vpack.c.b16 %v199, %v198
    %v219 = vpack.c.b16 %v201, %v200
    %v220 = vpack.c.b16 %v203, %v202
    %v221 = vpack.c.b16 %v205, %v204
    %238 = vmatprep.subr.bf16.mxu0 0
    %239 = vmatpush1.bf16.msra.mxu0 %v206
    %240 = vmatprep.subr.bf16.mxu0 0
    %241 = vmatpush1.bf16.msra.mxu0 %v207
    %242 = vmatprep.subr.bf16.mxu0 0
    %243 = vmatpush1.bf16.msra.mxu0 %v208
    %244 = vmatprep.subr.bf16.mxu0 0
    %245 = vmatpush1.bf16.msra.mxu0 %v209
    %246 = vmatprep.subr.bf16.mxu0 0
    %247 = vmatpush1.bf16.msra.mxu0 %v210
    %248 = vmatprep.subr.bf16.mxu0 0
    %249 = vmatpush1.bf16.msra.mxu0 %v211
    %250 = vmatprep.subr.bf16.mxu0 0
    %251 = vmatpush1.bf16.msra.mxu0 %v212
    %252 = vmatprep.subr.bf16.mxu0 0
    %253 = vmatpush1.bf16.msra.mxu0 %v213
    %254 = vmatprep.subr.bf16.mxu0 0
    %255 = vmatpush1.bf16.msra.mxu0 %v214
    %256 = vmatprep.subr.bf16.mxu0 0
    %257 = vmatpush1.bf16.msra.mxu0 %v215
    %258 = vmatprep.subr.bf16.mxu0 0
    %259 = vmatpush1.bf16.msra.mxu0 %v216
    %260 = vmatprep.subr.bf16.mxu0 0
    %261 = vmatpush1.bf16.msra.mxu0 %v217
    %262 = vmatprep.subr.bf16.mxu0 0
    %263 = vmatpush1.bf16.msra.mxu0 %v218
    %264 = vmatprep.subr.bf16.mxu0 0
    %265 = vmatpush1.bf16.msra.mxu0 %v219
    %266 = vmatprep.subr.bf16.mxu0 0
    %267 = vmatpush1.bf16.msra.mxu0 %v220
    %268 = vmatprep.subr.bf16.mxu0 0
    %269 = vmatpush1.bf16.msra.mxu0 %v221
    %270 = vmatprep.mubr.bf16.mxu0 %v127
    %271 = vmatmul.mubr.bf16.gmra.mrb[0].mxu0 %v126
    %v272 = vpop.f32.mrb[0].mxu0
    %v273 = vadd.f32 %v100, %v272
    %v274 = vpop.f32.mrb[0].mxu0
    %v275 = vpop.f32.mrb[0].mxu0
    %v276 = vadd.f32 %v100, %v275
    %v277 = vpop.f32.mrb[0].mxu0
    %278 = vmatprep.mubr.bf16.mxu0 %v129
    %279 = vmatmul.mubr.bf16.gmra.mrb[0].mxu0 %v128
    %v280 = vpop.f32.mrb[0].mxu0
    %v281 = vadd.f32 %v100, %v280
    %v282 = vpop.f32.mrb[0].mxu0
    %v283 = vpop.f32.mrb[0].mxu0
    %v284 = vadd.f32 %v100, %v283
    %v285 = vpop.f32.mrb[0].mxu0
    %286 = vmatprep.mubr.bf16.mxu0 %v131
    %287 = vmatmul.mubr.bf16.gmra.mrb[0].mxu0 %v130
    %v288 = vpop.f32.mrb[0].mxu0
    %v289 = vadd.f32 %v100, %v288
    %v290 = vpop.f32.mrb[0].mxu0
    %v291 = vpop.f32.mrb[0].mxu0
    %v292 = vadd.f32 %v100, %v291
    %v293 = vpop.f32.mrb[0].mxu0
    %294 = vmatprep.mubr.bf16.mxu0 %v133
    %295 = vmatmul.mubr.bf16.gmra.mrb[0].mxu0 %v132
    %v296 = vpop.f32.mrb[0].mxu0
    %v297 = vadd.f32 %v100, %v296
    %v298 = vpop.f32.mrb[0].mxu0
    %v299 = vpop.f32.mrb[0].mxu0
    %v300 = vadd.f32 %v100, %v299
    %v301 = vpop.f32.mrb[0].mxu0
    %302 = vdwg.mxu0
    %v303 = vpack.c.bf16 %v276, %v273
    %v304 = vpack.c.bf16 %v284, %v281
    %v305 = vpack.c.bf16 %v292, %v289
    %v306 = vpack.c.bf16 %v300, %v297
    %v311 = vunpack.c.l.b16 %v303
    %v312 = vunpack.c.h.b16 %v303
    %v313 = vunpack.c.l.b16 %v304
    %v314 = vunpack.c.h.b16 %v304
    %v315 = vunpack.c.l.b16 %v305
    %v316 = vunpack.c.h.b16 %v305
    %v317 = vunpack.c.l.b16 %v306
    %v318 = vunpack.c.h.b16 %v306
    %v319 = vpack.c.b16 %v311, %v311
    %v320 = vpack.c.b16 %v312, %v312
    %v321 = vpack.c.b16 %v313, %v313
    %v322 = vpack.c.b16 %v314, %v314
    %v323 = vpack.c.b16 %v315, %v315
    %v324 = vpack.c.b16 %v316, %v316
    %v325 = vpack.c.b16 %v317, %v317
    %v326 = vpack.c.b16 %v318, %v318
    %335 = vst [vmem:[#allocation8] sm:$0xf] %v319
    %336 = vst [vmem:[#allocation8 + $0x4] sm:$0xf] %v320
    %337 = vst [vmem:[#allocation8 + $0x8] sm:$0xf] %v321
    %338 = vst [vmem:[#allocation8 + $0xc] sm:$0xf] %v322
    %339 = vst [vmem:[#allocation8 + $0x10] sm:$0xf] %v323
    %340 = vst [vmem:[#allocation8 + $0x14] sm:$0xf] %v324
    %341 = vst [vmem:[#allocation8 + $0x18] sm:$0xf] %v325
    %342 = vst [vmem:[#allocation8 + $0x1c] sm:$0xf] %v326
    // Predicated region
    $region26: #{vit_forward.3} parent=1 // pred_check
      _
    $region27: #{vit_forward.3} parent=1 // pred_check_branch
      %344 = sbr.rel (0) target = $region29
    $region28: #{vit_forward.3} parent=1 // pred_region
      %s346 = ssub.s32 512, 512
      %347 = vsyncadd [#allocation4], %s346
      %s348 = sshll.u32 [#allocation8], 4
      %s349 = int_to_ptr.vmem [resolvable:$true] %s348
      %354 = dma.vmem_to_hbm [thread:$0]  %s349, 512, %s3, [#allocation4], 64, 64, 4
    $region29: #{vit_forward.3} parent=1 // pred_fallthru
      _
    // Predicated region
    $region30: #{vit_forward.3} parent=1 // pred_check
      _
    $region31: #{vit_forward.3} parent=1 // pred_check_branch
      %356 = sbr.rel (0) target = $region33
    $region32: #{vit_forward.3} parent=1 // pred_region
      %357 = dma.done [#allocation4], 512
    $region33: #{vit_forward.3} parent=1 // pred_fallthru
      _
    %358 = vsyncpa [#allocation3], 1
    %359 = vsyncpa [#allocation6], 1
    %360 = vsyncpa [#allocation4], 1

// kernel: vit_forward.5
$region0: #{vit_forward.5}
  #allocation0 [shape = 'u32[]', space=smem, size = 0x4, offset = 0x4, fixed_abs, tag = 'smem constant byte address 0x4 - core index']
  #allocation1 [shape = 'u32[144,128]{1,0:T(1,128)}', space=vmem, size = 0x12000, scoped, tag = 'internal scratch']
  %s0 = inlined_call_operand.hbm [shape: bf16[8,128], index: 0, kind: input, shape index: {}]
  %s1 = inlined_call_operand.hbm [shape: bf16[128,128], index: 1, kind: input, shape index: {}]
  %s2 = inlined_call_operand.hbm [shape: f32[1,128], index: 2, kind: input, shape index: {}]
  %s3 = inlined_call_operand.hbm [shape: f32[8,128], index: 3, kind: output, shape index: {}]
  %s4 = sld [smem:[#allocation0]]
  $region34: #{vit_forward.5} parent=0
    _
  %s6 = ssub.s32 1, %s4
  %s7 = scalar_select 0, %s6, %s4
  $region1: #{vit_forward.5} parent=0
    #allocation2 [shape = 'u8[2048]{0}', space=vmem, size = 0x800, scoped, tag = 'input window, operand 0, single buffered']
    #allocation3 [shape = 's32[1]{0}', space=sflag, size = 0x4, scoped, tag = 'scoped memory for vit_forward.5']
    #allocation4 [shape = 's32[1]{0}', space=sflag, size = 0x4, scoped, tag = 'scoped memory for vit_forward.5']
    #allocation5 [shape = 'u8[32768]{0}', space=vmem, size = 0x8000, scoped, tag = 'input window, operand 1, single buffered']
    #allocation6 [shape = 's32[1]{0}', space=sflag, size = 0x4, scoped, tag = 'scoped memory for vit_forward.5']
    #allocation7 [shape = 'u8[512]{0}', space=vmem, size = 0x400, scoped, tag = 'input window, operand 2, single buffered']
    #allocation8 [shape = 'u8[4096]{0}', space=vmem, size = 0x1000, scoped, tag = 'output window, operand 0, single buffered']
    %8 = vsyncpa [#allocation3], 0
    %9 = vsyncpa [#allocation6], 0
    %10 = vsyncpa [#allocation4], 0
    // Predicated region
    $region2: #{vit_forward.5} parent=1 // pred_check
      _
    $region3: #{vit_forward.5} parent=1 // pred_check_branch
      %12 = sbr.rel (0) target = $region5
    $region4: #{vit_forward.5} parent=1 // pred_region
      %s14 = ssub.s32 64, 64
      %15 = vsyncadd [#allocation3], %s14
      %s17 = sshll.u32 [#allocation2], 4
      %s18 = int_to_ptr.vmem [resolvable:$true] %s17
      %20 = dma.hbm_to_vmem [thread:$0]  %s0, 64, %s18, [#allocation3]
    $region5: #{vit_forward.5} parent=1 // pred_fallthru
      _
    // Predicated region
    $region6: #{vit_forward.5} parent=1 // pred_check
      _
    $region7: #{vit_forward.5} parent=1 // pred_check_branch
      %22 = sbr.rel (0) target = $region9
    $region8: #{vit_forward.5} parent=1 // pred_region
      %s24 = ssub.s32 1024, 1024
      %25 = vsyncadd [#allocation6], %s24
      %s26 = sshll.u32 [#allocation5], 4
      %s27 = int_to_ptr.vmem [resolvable:$true] %s26
      %32 = dma.hbm_to_vmem [thread:$0]  %s1, 1024, %s27, [#allocation6], 64, 64, 4
    $region9: #{vit_forward.5} parent=1 // pred_fallthru
      _
    // Predicated region
    $region10: #{vit_forward.5} parent=1 // pred_check
      _
    $region11: #{vit_forward.5} parent=1 // pred_check_branch
      %34 = sbr.rel (0) target = $region13
    $region12: #{vit_forward.5} parent=1 // pred_region
      %s36 = ssub.s32 16, 16
      %37 = vsyncadd [#allocation6], %s36
      %s39 = sshll.u32 [#allocation7], 4
      %s40 = int_to_ptr.vmem [resolvable:$true] %s39
      %42 = dma.hbm_to_vmem [thread:$0]  %s2, 16, %s40, [#allocation6]
    $region13: #{vit_forward.5} parent=1 // pred_fallthru
      _
    // Predicated region
    $region14: #{vit_forward.5} parent=1 // pred_check
      _
    $region15: #{vit_forward.5} parent=1 // pred_check_branch
      %44 = sbr.rel (0) target = $region17
    $region16: #{vit_forward.5} parent=1 // pred_region
      %45 = dma.done [#allocation3], 64
    $region17: #{vit_forward.5} parent=1 // pred_fallthru
      _
    // Predicated region
    $region18: #{vit_forward.5} parent=1 // pred_check
      _
    $region19: #{vit_forward.5} parent=1 // pred_check_branch
      %47 = sbr.rel (0) target = $region21
    $region20: #{vit_forward.5} parent=1 // pred_region
      %48 = dma.done [#allocation6], 1024
    $region21: #{vit_forward.5} parent=1 // pred_fallthru
      _
    // Predicated region
    $region22: #{vit_forward.5} parent=1 // pred_check
      _
    $region23: #{vit_forward.5} parent=1 // pred_check_branch
      %50 = sbr.rel (0) target = $region25
    $region24: #{vit_forward.5} parent=1 // pred_region
      %51 = dma.done [#allocation6], 16
    $region25: #{vit_forward.5} parent=1 // pred_fallthru
      _
    %v53 = vld [vmem:[#allocation2] sm:$0xf]
    %v54 = vld [vmem:[#allocation5] sm:$0xf]
    %v55 = vld [vmem:[#allocation5 + $0x4] sm:$0xf]
    %v56 = vld [vmem:[#allocation5 + $0x8] sm:$0xf]
    %v57 = vld [vmem:[#allocation5 + $0xc] sm:$0xf]
    %v58 = vld [vmem:[#allocation5 + $0x10] sm:$0xf]
    %v59 = vld [vmem:[#allocation5 + $0x14] sm:$0xf]
    %v60 = vld [vmem:[#allocation5 + $0x18] sm:$0xf]
    %v61 = vld [vmem:[#allocation5 + $0x1c] sm:$0xf]
    %v62 = vld [vmem:[#allocation5 + $0x20] sm:$0xf]
    %v63 = vld [vmem:[#allocation5 + $0x24] sm:$0xf]
    %v64 = vld [vmem:[#allocation5 + $0x28] sm:$0xf]
    %v65 = vld [vmem:[#allocation5 + $0x2c] sm:$0xf]
    %v66 = vld [vmem:[#allocation5 + $0x30] sm:$0xf]
    %v67 = vld [vmem:[#allocation5 + $0x34] sm:$0xf]
    %v68 = vld [vmem:[#allocation5 + $0x38] sm:$0xf]
    %v69 = vld [vmem:[#allocation5 + $0x3c] sm:$0xf]
    %v70 = vld [vmem:[#allocation7] sm:$0x1]
    %v72 = vlaneseq
    %v73 = vshrl.u32 %v72, 7
    %v74 = vsub.s32 0, %v73
    %v75 = vrot.slane %v70, %v74
    %v93 = vunpack.c.l.b16 %v54
    %v94 = vunpack.c.l.b16 %v55
    %v95 = vunpack.c.l.b16 %v56
    %v96 = vunpack.c.l.b16 %v57
    %v97 = vunpack.c.l.b16 %v58
    %v98 = vunpack.c.l.b16 %v59
    %v99 = vunpack.c.l.b16 %v60
    %v100 = vunpack.c.l.b16 %v61
    %v101 = vunpack.c.l.b16 %v62
    %v102 = vunpack.c.l.b16 %v63
    %v103 = vunpack.c.l.b16 %v64
    %v104 = vunpack.c.l.b16 %v65
    %v105 = vunpack.c.l.b16 %v66
    %v106 = vunpack.c.l.b16 %v67
    %v107 = vunpack.c.l.b16 %v68
    %v108 = vunpack.c.l.b16 %v69
    %v109 = vpack.c.b16 %v94, %v93
    %v110 = vpack.c.b16 %v96, %v95
    %v111 = vpack.c.b16 %v98, %v97
    %v112 = vpack.c.b16 %v100, %v99
    %v113 = vpack.c.b16 %v102, %v101
    %v114 = vpack.c.b16 %v104, %v103
    %v115 = vpack.c.b16 %v106, %v105
    %v116 = vpack.c.b16 %v108, %v107
    %125 = vmatprep.subr.bf16.mxu0 0
    %126 = vmatpush1.bf16.msra.mxu0 %v109
    %127 = vmatprep.subr.bf16.mxu0 0
    %128 = vmatpush1.bf16.msra.mxu0 %v110
    %129 = vmatprep.subr.bf16.mxu0 0
    %130 = vmatpush1.bf16.msra.mxu0 %v111
    %131 = vmatprep.subr.bf16.mxu0 0
    %132 = vmatpush1.bf16.msra.mxu0 %v112
    %133 = vmatprep.subr.bf16.mxu0 0
    %134 = vmatpush1.bf16.msra.mxu0 %v113
    %135 = vmatprep.subr.bf16.mxu0 0
    %136 = vmatpush1.bf16.msra.mxu0 %v114
    %137 = vmatprep.subr.bf16.mxu0 0
    %138 = vmatpush1.bf16.msra.mxu0 %v115
    %139 = vmatprep.subr.bf16.mxu0 0
    %140 = vmatpush1.bf16.msra.mxu0 %v116
    %141 = vmatprep.subr.bf16.mxu0 0
    %142 = vmatpush1.bf16.msra.mxu0 0
    %143 = vmatprep.subr.bf16.mxu0 0
    %144 = vmatpush1.bf16.msra.mxu0 0
    %145 = vmatprep.subr.bf16.mxu0 0
    %146 = vmatpush1.bf16.msra.mxu0 0
    %147 = vmatprep.subr.bf16.mxu0 0
    %148 = vmatpush1.bf16.msra.mxu0 0
    %149 = vmatprep.subr.bf16.mxu0 0
    %150 = vmatpush1.bf16.msra.mxu0 0
    %151 = vmatprep.subr.bf16.mxu0 0
    %152 = vmatpush1.bf16.msra.mxu0 0
    %153 = vmatprep.subr.bf16.mxu0 0
    %154 = vmatpush1.bf16.msra.mxu0 0
    %155 = vmatprep.subr.bf16.mxu0 0
    %156 = vmatpush1.bf16.msra.mxu0 0
    %157 = vmatprep.mubr.bf16.mxu0 0
    %158 = vmatmul.mubr.bf16.gmra.mrb[0].mxu0 %v53
    %v159 = vpop.f32.mrb[0].mxu0
    %v160 = vadd.f32 %v75, %v159
    %v161 = vpop.f32.mrb[0].mxu0
    %v162 = vpop.f32.mrb[0].mxu0
    %v163 = vpop.f32.mrb[0].mxu0
    %164 = vdwg.mxu0
    %165 = vst [vmem:[#allocation8] sm:$0xff] %v160
    // Predicated region
    $region26: #{vit_forward.5} parent=1 // pred_check
      _
    $region27: #{vit_forward.5} parent=1 // pred_check_branch
      %167 = sbr.rel (0) target = $region29
    $region28: #{vit_forward.5} parent=1 // pred_region
      %s169 = ssub.s32 128, 128
      %170 = vsyncadd [#allocation4], %s169
      %s172 = sshll.u32 [#allocation8], 4
      %s173 = int_to_ptr.vmem [resolvable:$true] %s172
      %175 = dma.vmem_to_hbm [thread:$0]  %s173, 128, %s3, [#allocation4]
    $region29: #{vit_forward.5} parent=1 // pred_fallthru
      _
    // Predicated region
    $region30: #{vit_forward.5} parent=1 // pred_check
      _
    $region31: #{vit_forward.5} parent=1 // pred_check_branch
      %177 = sbr.rel (0) target = $region33
    $region32: #{vit_forward.5} parent=1 // pred_region
      %178 = dma.done [#allocation4], 128
    $region33: #{vit_forward.5} parent=1 // pred_fallthru
      _
    %179 = vsyncpa [#allocation3], 1
    %180 = vsyncpa [#allocation6], 1
    %181 = vsyncpa [#allocation4], 1

// kernel: vit_forward.4
$region0: #{vit_forward.4}
  #allocation0 [shape = 'u32[]', space=smem, size = 0x4, offset = 0x4, fixed_abs, tag = 'smem constant byte address 0x4 - core index']
  #allocation1 [shape = 'u32[144,128]{1,0:T(1,128)}', space=vmem, size = 0x12000, scoped, tag = 'internal scratch']
  #allocation2 [shape = 'f32[2,32,128]{2,1,0:T(8,128)}', space=vmem, size = 0x8000, scoped, tag = 'scratch operand']
  %s0 = inlined_call_operand.hbm [shape: f32[4,32,128], index: 0, kind: input, shape index: {}]
  %s1 = inlined_call_operand.hbm [shape: bf16[2,128,384], index: 1, kind: input, shape index: {}]
  %s2 = inlined_call_operand.hbm [shape: f32[2,1,384], index: 2, kind: input, shape index: {}]
  %s3 = inlined_call_operand.hbm [shape: bf16[2,128,128], index: 3, kind: input, shape index: {}]
  %s4 = inlined_call_operand.hbm [shape: f32[2,1,128], index: 4, kind: input, shape index: {}]
  %s5 = inlined_call_operand.hbm [shape: f32[2,1,128], index: 5, kind: input, shape index: {}]
  %s6 = inlined_call_operand.hbm [shape: f32[2,1,128], index: 6, kind: input, shape index: {}]
  %s7 = inlined_call_operand.hbm [shape: bf16[2,128,256], index: 7, kind: input, shape index: {}]
  %s8 = inlined_call_operand.hbm [shape: f32[2,1,256], index: 8, kind: input, shape index: {}]
  %s9 = inlined_call_operand.hbm [shape: bf16[2,256,128], index: 9, kind: input, shape index: {}]
  %s10 = inlined_call_operand.hbm [shape: f32[2,1,128], index: 10, kind: input, shape index: {}]
  %s11 = inlined_call_operand.hbm [shape: f32[2,1,128], index: 11, kind: input, shape index: {}]
  %s12 = inlined_call_operand.hbm [shape: f32[2,1,128], index: 12, kind: input, shape index: {}]
  %s13 = inlined_call_operand.hbm [shape: f32[4,8,128], index: 13, kind: output, shape index: {}]
  %s14 = sld [smem:[#allocation0]]
  $region145: #{vit_forward.4} parent=0
    _
  %s16 = ssub.s32 1, %s14
  %s17 = scalar_select 0, %s16, %s14
  $region1: #{vit_forward.4} parent=0
    #allocation3 [shape = 'u8[65536]{0}', space=vmem, size = 0x10000, scoped, tag = 'input window, operand 0']
    #allocation4 [shape = 's32[2]{0}', space=sflag, size = 0x8, scoped, tag = 'scoped memory for vit_forward.4']
    #allocation5 [shape = 's32[2]{0}', space=sflag, size = 0x8, scoped, tag = 'scoped memory for vit_forward.4']
    #allocation6 [shape = 'u8[196608]{0}', space=vmem, size = 0x30000, scoped, tag = 'input window, operand 1']
    #allocation7 [shape = 's32[2]{0}', space=sflag, size = 0x8, scoped, tag = 'scoped memory for vit_forward.4']
    #allocation8 [shape = 'u8[3072]{0}', space=vmem, size = 0xc00, scoped, tag = 'input window, operand 2']
    #allocation9 [shape = 'u8[65536]{0}', space=vmem, size = 0x10000, scoped, tag = 'input window, operand 3']
    #allocation10 [shape = 's32[2]{0}', space=sflag, size = 0x8, scoped, tag = 'scoped memory for vit_forward.4']
    #allocation11 [shape = 'u8[1024]{0}', space=vmem, size = 0x400, scoped, tag = 'input window, operand 4']
    #allocation12 [shape = 'u8[1024]{0}', space=vmem, size = 0x400, scoped, tag = 'input window, operand 5']
    #allocation13 [shape = 's32[2]{0}', space=sflag, size = 0x8, scoped, tag = 'scoped memory for vit_forward.4']
    #allocation14 [shape = 'u8[1024]{0}', space=vmem, size = 0x400, scoped, tag = 'input window, operand 6']
    #allocation15 [shape = 'u8[131072]{0}', space=vmem, size = 0x20000, scoped, tag = 'input window, operand 7']
    #allocation16 [shape = 's32[2]{0}', space=sflag, size = 0x8, scoped, tag = 'scoped memory for vit_forward.4']
    #allocation17 [shape = 'u8[2048]{0}', space=vmem, size = 0x800, scoped, tag = 'input window, operand 8']
    #allocation18 [shape = 'u8[131072]{0}', space=vmem, size = 0x20000, scoped, tag = 'input window, operand 9']
    #allocation19 [shape = 's32[2]{0}', space=sflag, size = 0x8, scoped, tag = 'scoped memory for vit_forward.4']
    #allocation20 [shape = 'u8[1024]{0}', space=vmem, size = 0x400, scoped, tag = 'input window, operand 10']
    #allocation21 [shape = 'u8[1024]{0}', space=vmem, size = 0x400, scoped, tag = 'input window, operand 11']
    #allocation22 [shape = 's32[2]{0}', space=sflag, size = 0x8, scoped, tag = 'scoped memory for vit_forward.4']
    #allocation23 [shape = 'u8[1024]{0}', space=vmem, size = 0x400, scoped, tag = 'input window, operand 12']
    #allocation24 [shape = 'u8[16384]{0}', space=vmem, size = 0x4000, scoped, tag = 'output window, operand 0']
    %18 = vsyncpa [#allocation4], 0
    %s19 = scalar_lea.sflag [#allocation4], 1
    %20 = vsyncpa %s19, 0
    %21 = vsyncpa [#allocation7], 0
    %s22 = scalar_lea.sflag [#allocation7], 1
    %23 = vsyncpa %s22, 0
    %24 = vsyncpa [#allocation10], 0
    %s25 = scalar_lea.sflag [#allocation10], 1
    %26 = vsyncpa %s25, 0
    %27 = vsyncpa [#allocation13], 0
    %s28 = scalar_lea.sflag [#allocation13], 1
    %29 = vsyncpa %s28, 0
    %30 = vsyncpa [#allocation16], 0
    %s31 = scalar_lea.sflag [#allocation16], 1
    %32 = vsyncpa %s31, 0
    %33 = vsyncpa [#allocation19], 0
    %s34 = scalar_lea.sflag [#allocation19], 1
    %35 = vsyncpa %s34, 0
    %36 = vsyncpa [#allocation22], 0
    %s37 = scalar_lea.sflag [#allocation22], 1
    %38 = vsyncpa %s37, 0
    %39 = vsyncpa [#allocation5], 0
    %s40 = scalar_lea.sflag [#allocation5], 1
    %41 = vsyncpa %s40, 0
    loop: start=0, step=1, limit=10
    $region2: #{vit_forward.4} parent=1 // loop_pre_header
      _
    $region3: #{vit_forward.4} parent=1 // loop_header
      %s43 = sphi 0, %s47
      %p44 = scmp.ge.s32.totalorder %s43, 10
      %s50 = sphi 0, %s69
      %s51 = sphi 0, %s65
      %s52 = sphi 0, %s61
      %s53 = sphi 0, %s50
      %s54 = sphi 0, %s51
      %s55 = sphi 0, %s52
      %s56 = sphi 0, %s53
      %s57 = sphi 0, %s54
      %s58 = sphi 0, %s55
      %s72 = sphi 0, %s74
      %s75 = sphi 0, %s72
      %s76 = sphi 0, %s75
      %s92 = sphi 0, %s76
      %s98 = sphi 0, %s100
      %s101 = sphi 0, %s98
      %s102 = sphi 0, %s101
      %s118 = sphi 0, %s102
      %s124 = sphi 0, %s126
      %s127 = sphi 0, %s124
      %s128 = sphi 0, %s127
      %s144 = sphi 0, %s128
      %s150 = sphi 0, %s152
      %s153 = sphi 0, %s150
      %s154 = sphi 0, %s153
      %s170 = sphi 0, %s154
      %s176 = sphi 0, %s178
      %s179 = sphi 0, %s176
      %s180 = sphi 0, %s179
      %s196 = sphi 0, %s180
      %s202 = sphi 0, %s204
      %s205 = sphi 0, %s202
      %s206 = sphi 0, %s205
      %s222 = sphi 0, %s206
      %s228 = sphi 0, %s230
      %s231 = sphi 0, %s228
      %s232 = sphi 0, %s231
      %s248 = sphi 0, %s232
      %s254 = sphi 0, %s256
      %s257 = sphi 0, %s254
      %s258 = sphi 0, %s257
      %s274 = sphi 0, %s258
      %s280 = sphi 0, %s282
      %s283 = sphi 0, %s280
      %s284 = sphi 0, %s283
      %s300 = sphi 0, %s284
      %s306 = sphi 0, %s308
      %s309 = sphi 0, %s306
      %s310 = sphi 0, %s309
      %s326 = sphi 0, %s310
      %s332 = sphi 0, %s334
      %s335 = sphi 0, %s332
      %s336 = sphi 0, %s335
      %s352 = sphi 0, %s336
      %s358 = sphi 0, %s360
      %s361 = sphi 0, %s358
      %s362 = sphi 0, %s361
      %s378 = sphi 0, %s362
      %s384 = sphi 0, %s386
      %s387 = sphi 0, %s384
      %s388 = sphi 0, %s387
      %s404 = sphi 0, %s388
      %s410 = sphi 0, %s412
      %s413 = sphi 0, %s410
      %s414 = sphi 0, %s413
      %s430 = sphi 0, %s414
    $region4: #{vit_forward.4} parent=1 // loop_header_branch
      %46 = sbr.rel (%p44) target = $region8
    $region5: #{vit_forward.4} parent=1 // loop_body
      %s48 = ssub.s32 %s43, 1
      %s49 = ssub.s32 %s43, 2
      %s59 = sadd.s32 1, %s52
      %p60 = scmp.ge.s32.totalorder %s59, 2
      %s61 = scalar_select %p60, 0, %s59
      %s62 = sadd.s32 1, %s51
      %s63 = scalar_select %p60, %s62, %s51
      %p64 = scmp.ge.s32.totalorder %s63, 2
      %s65 = scalar_select %p64, 0, %s63
      %s66 = sadd.s32 1, %s50
      %s67 = scalar_select %p64, %s66, %s50
      %p68 = scmp.ge.s32.totalorder %s67, 2
      %s69 = scalar_select %p68, 0, %s67
      %s70 = ssub.s32 %s50, %s69
      %p71 = scmp.eq.s32.totalorder %s70, 0
      %s73 = sadd.s32 %s72, 1
      %s74 = scalar_select %p71, %s72, %s73
      %p77 = pneg %p71
      %p78 = scmp.eq.s32.totalorder %s43, 7
      %p79 = por %p77, %p78
      %p80 = scmp.ne.s32.totalorder %s72, %s75
      %p81 = scmp.eq.s32.totalorder %s43, 0
      %p82 = por %p80, %p81
      %p83 = scmp.ne.s32.totalorder %s72, %s75
      %p84 = scmp.eq.s32.totalorder %s48, 7
      %p85 = por %p83, %p84
      %p86 = scmp.ne.s32.totalorder %s75, %s76
      %p87 = scmp.eq.s32.totalorder %s48, 0
      %p88 = por %p86, %p87
      %p89 = scmp.ne.s32.totalorder %s75, %s76
      %p90 = scmp.eq.s32.totalorder %s49, 7
      %p91 = por %p89, %p90
      %p93 = scmp.ne.s32.totalorder %s76, %s92
      %p94 = scmp.eq.s32.totalorder %s49, 0
      %p95 = por %p93, %p94
      %s96 = ssub.s32 %s51, %s65
      %p97 = scmp.eq.s32.totalorder %s96, 0
      %s99 = sadd.s32 %s98, 1
      %s100 = scalar_select %p97, %s98, %s99
      %p103 = pneg %p97
      %p104 = scmp.eq.s32.totalorder %s43, 7
      %p105 = por %p103, %p104
      %p106 = scmp.ne.s32.totalorder %s98, %s101
      %p107 = scmp.eq.s32.totalorder %s43, 0
      %p108 = por %p106, %p107
      %p109 = scmp.ne.s32.totalorder %s98, %s101
      %p110 = scmp.eq.s32.totalorder %s48, 7
      %p111 = por %p109, %p110
      %p112 = scmp.ne.s32.totalorder %s101, %s102
      %p113 = scmp.eq.s32.totalorder %s48, 0
      %p114 = por %p112, %p113
      %p115 = scmp.ne.s32.totalorder %s101, %s102
      %p116 = scmp.eq.s32.totalorder %s49, 7
      %p117 = por %p115, %p116
      %p119 = scmp.ne.s32.totalorder %s102, %s118
      %p120 = scmp.eq.s32.totalorder %s49, 0
      %p121 = por %p119, %p120
      %s122 = ssub.s32 %s51, %s65
      %p123 = scmp.eq.s32.totalorder %s122, 0
      %s125 = sadd.s32 %s124, 1
      %s126 = scalar_select %p123, %s124, %s125
      %p129 = pneg %p123
      %p130 = scmp.eq.s32.totalorder %s43, 7
      %p131 = por %p129, %p130
      %p132 = scmp.ne.s32.totalorder %s124, %s127
      %p133 = scmp.eq.s32.totalorder %s43, 0
      %p134 = por %p132, %p133
      %p135 = scmp.ne.s32.totalorder %s124, %s127
      %p136 = scmp.eq.s32.totalorder %s48, 7
      %p137 = por %p135, %p136
      %p138 = scmp.ne.s32.totalorder %s127, %s128
      %p139 = scmp.eq.s32.totalorder %s48, 0
      %p140 = por %p138, %p139
      %p141 = scmp.ne.s32.totalorder %s127, %s128
      %p142 = scmp.eq.s32.totalorder %s49, 7
      %p143 = por %p141, %p142
      %p145 = scmp.ne.s32.totalorder %s128, %s144
      %p146 = scmp.eq.s32.totalorder %s49, 0
      %p147 = por %p145, %p146
      %s148 = ssub.s32 %s51, %s65
      %p149 = scmp.eq.s32.totalorder %s148, 0
      %s151 = sadd.s32 %s150, 1
      %s152 = scalar_select %p149, %s150, %s151
      %p155 = pneg %p149
      %p156 = scmp.eq.s32.totalorder %s43, 7
      %p157 = por %p155, %p156
      %p158 = scmp.ne.s32.totalorder %s150, %s153
      %p159 = scmp.eq.s32.totalorder %s43, 0
      %p160 = por %p158, %p159
      %p161 = scmp.ne.s32.totalorder %s150, %s153
      %p162 = scmp.eq.s32.totalorder %s48, 7
      %p163 = por %p161, %p162
      %p164 = scmp.ne.s32.totalorder %s153, %s154
      %p165 = scmp.eq.s32.totalorder %s48, 0
      %p166 = por %p164, %p165
      %p167 = scmp.ne.s32.totalorder %s153, %s154
      %p168 = scmp.eq.s32.totalorder %s49, 7
      %p169 = por %p167, %p168
      %p171 = scmp.ne.s32.totalorder %s154, %s170
      %p172 = scmp.eq.s32.totalorder %s49, 0
      %p173 = por %p171, %p172
      %s174 = ssub.s32 %s51, %s65
      %p175 = scmp.eq.s32.totalorder %s174, 0
      %s177 = sadd.s32 %s176, 1
      %s178 = scalar_select %p175, %s176, %s177
      %p181 = pneg %p175
      %p182 = scmp.eq.s32.totalorder %s43, 7
      %p183 = por %p181, %p182
      %p184 = scmp.ne.s32.totalorder %s176, %s179
      %p185 = scmp.eq.s32.totalorder %s43, 0
      %p186 = por %p184, %p185
      %p187 = scmp.ne.s32.totalorder %s176, %s179
      %p188 = scmp.eq.s32.totalorder %s48, 7
      %p189 = por %p187, %p188
      %p190 = scmp.ne.s32.totalorder %s179, %s180
      %p191 = scmp.eq.s32.totalorder %s48, 0
      %p192 = por %p190, %p191
      %p193 = scmp.ne.s32.totalorder %s179, %s180
      %p194 = scmp.eq.s32.totalorder %s49, 7
      %p195 = por %p193, %p194
      %p197 = scmp.ne.s32.totalorder %s180, %s196
      %p198 = scmp.eq.s32.totalorder %s49, 0
      %p199 = por %p197, %p198
      %s200 = ssub.s32 %s51, %s65
      %p201 = scmp.eq.s32.totalorder %s200, 0
      %s203 = sadd.s32 %s202, 1
      %s204 = scalar_select %p201, %s202, %s203
      %p207 = pneg %p201
      %p208 = scmp.eq.s32.totalorder %s43, 7
      %p209 = por %p207, %p208
      %p210 = scmp.ne.s32.totalorder %s202, %s205
      %p211 = scmp.eq.s32.totalorder %s43, 0
      %p212 = por %p210, %p211
      %p213 = scmp.ne.s32.totalorder %s202, %s205
      %p214 = scmp.eq.s32.totalorder %s48, 7
      %p215 = por %p213, %p214
      %p216 = scmp.ne.s32.totalorder %s205, %s206
      %p217 = scmp.eq.s32.totalorder %s48, 0
      %p218 = por %p216, %p217
      %p219 = scmp.ne.s32.totalorder %s205, %s206
      %p220 = scmp.eq.s32.totalorder %s49, 7
      %p221 = por %p219, %p220
      %p223 = scmp.ne.s32.totalorder %s206, %s222
      %p224 = scmp.eq.s32.totalorder %s49, 0
      %p225 = por %p223, %p224
      %s226 = ssub.s32 %s51, %s65
      %p227 = scmp.eq.s32.totalorder %s226, 0
      %s229 = sadd.s32 %s228, 1
      %s230 = scalar_select %p227, %s228, %s229
      %p233 = pneg %p227
      %p234 = scmp.eq.s32.totalorder %s43, 7
      %p235 = por %p233, %p234
      %p236 = scmp.ne.s32.totalorder %s228, %s231
      %p237 = scmp.eq.s32.totalorder %s43, 0
      %p238 = por %p236, %p237
      %p239 = scmp.ne.s32.totalorder %s228, %s231
      %p240 = scmp.eq.s32.totalorder %s48, 7
      %p241 = por %p239, %p240
      %p242 = scmp.ne.s32.totalorder %s231, %s232
      %p243 = scmp.eq.s32.totalorder %s48, 0
      %p244 = por %p242, %p243
      %p245 = scmp.ne.s32.totalorder %s231, %s232
      %p246 = scmp.eq.s32.totalorder %s49, 7
      %p247 = por %p245, %p246
      %p249 = scmp.ne.s32.totalorder %s232, %s248
      %p250 = scmp.eq.s32.totalorder %s49, 0
      %p251 = por %p249, %p250
      %s252 = ssub.s32 %s51, %s65
      %p253 = scmp.eq.s32.totalorder %s252, 0
      %s255 = sadd.s32 %s254, 1
      %s256 = scalar_select %p253, %s254, %s255
      %p259 = pneg %p253
      %p260 = scmp.eq.s32.totalorder %s43, 7
      %p261 = por %p259, %p260
      %p262 = scmp.ne.s32.totalorder %s254, %s257
      %p263 = scmp.eq.s32.totalorder %s43, 0
      %p264 = por %p262, %p263
      %p265 = scmp.ne.s32.totalorder %s254, %s257
      %p266 = scmp.eq.s32.totalorder %s48, 7
      %p267 = por %p265, %p266
      %p268 = scmp.ne.s32.totalorder %s257, %s258
      %p269 = scmp.eq.s32.totalorder %s48, 0
      %p270 = por %p268, %p269
      %p271 = scmp.ne.s32.totalorder %s257, %s258
      %p272 = scmp.eq.s32.totalorder %s49, 7
      %p273 = por %p271, %p272
      %p275 = scmp.ne.s32.totalorder %s258, %s274
      %p276 = scmp.eq.s32.totalorder %s49, 0
      %p277 = por %p275, %p276
      %s278 = ssub.s32 %s51, %s65
      %p279 = scmp.eq.s32.totalorder %s278, 0
      %s281 = sadd.s32 %s280, 1
      %s282 = scalar_select %p279, %s280, %s281
      %p285 = pneg %p279
      %p286 = scmp.eq.s32.totalorder %s43, 7
      %p287 = por %p285, %p286
      %p288 = scmp.ne.s32.totalorder %s280, %s283
      %p289 = scmp.eq.s32.totalorder %s43, 0
      %p290 = por %p288, %p289
      %p291 = scmp.ne.s32.totalorder %s280, %s283
      %p292 = scmp.eq.s32.totalorder %s48, 7
      %p293 = por %p291, %p292
      %p294 = scmp.ne.s32.totalorder %s283, %s284
      %p295 = scmp.eq.s32.totalorder %s48, 0
      %p296 = por %p294, %p295
      %p297 = scmp.ne.s32.totalorder %s283, %s284
      %p298 = scmp.eq.s32.totalorder %s49, 7
      %p299 = por %p297, %p298
      %p301 = scmp.ne.s32.totalorder %s284, %s300
      %p302 = scmp.eq.s32.totalorder %s49, 0
      %p303 = por %p301, %p302
      %s304 = ssub.s32 %s51, %s65
      %p305 = scmp.eq.s32.totalorder %s304, 0
      %s307 = sadd.s32 %s306, 1
      %s308 = scalar_select %p305, %s306, %s307
      %p311 = pneg %p305
      %p312 = scmp.eq.s32.totalorder %s43, 7
      %p313 = por %p311, %p312
      %p314 = scmp.ne.s32.totalorder %s306, %s309
      %p315 = scmp.eq.s32.totalorder %s43, 0
      %p316 = por %p314, %p315
      %p317 = scmp.ne.s32.totalorder %s306, %s309
      %p318 = scmp.eq.s32.totalorder %s48, 7
      %p319 = por %p317, %p318
      %p320 = scmp.ne.s32.totalorder %s309, %s310
      %p321 = scmp.eq.s32.totalorder %s48, 0
      %p322 = por %p320, %p321
      %p323 = scmp.ne.s32.totalorder %s309, %s310
      %p324 = scmp.eq.s32.totalorder %s49, 7
      %p325 = por %p323, %p324
      %p327 = scmp.ne.s32.totalorder %s310, %s326
      %p328 = scmp.eq.s32.totalorder %s49, 0
      %p329 = por %p327, %p328
      %s330 = ssub.s32 %s51, %s65
      %p331 = scmp.eq.s32.totalorder %s330, 0
      %s333 = sadd.s32 %s332, 1
      %s334 = scalar_select %p331, %s332, %s333
      %p337 = pneg %p331
      %p338 = scmp.eq.s32.totalorder %s43, 7
      %p339 = por %p337, %p338
      %p340 = scmp.ne.s32.totalorder %s332, %s335
      %p341 = scmp.eq.s32.totalorder %s43, 0
      %p342 = por %p340, %p341
      %p343 = scmp.ne.s32.totalorder %s332, %s335
      %p344 = scmp.eq.s32.totalorder %s48, 7
      %p345 = por %p343, %p344
      %p346 = scmp.ne.s32.totalorder %s335, %s336
      %p347 = scmp.eq.s32.totalorder %s48, 0
      %p348 = por %p346, %p347
      %p349 = scmp.ne.s32.totalorder %s335, %s336
      %p350 = scmp.eq.s32.totalorder %s49, 7
      %p351 = por %p349, %p350
      %p353 = scmp.ne.s32.totalorder %s336, %s352
      %p354 = scmp.eq.s32.totalorder %s49, 0
      %p355 = por %p353, %p354
      %s356 = ssub.s32 %s51, %s65
      %p357 = scmp.eq.s32.totalorder %s356, 0
      %s359 = sadd.s32 %s358, 1
      %s360 = scalar_select %p357, %s358, %s359
      %p363 = pneg %p357
      %p364 = scmp.eq.s32.totalorder %s43, 7
      %p365 = por %p363, %p364
      %p366 = scmp.ne.s32.totalorder %s358, %s361
      %p367 = scmp.eq.s32.totalorder %s43, 0
      %p368 = por %p366, %p367
      %p369 = scmp.ne.s32.totalorder %s358, %s361
      %p370 = scmp.eq.s32.totalorder %s48, 7
      %p371 = por %p369, %p370
      %p372 = scmp.ne.s32.totalorder %s361, %s362
      %p373 = scmp.eq.s32.totalorder %s48, 0
      %p374 = por %p372, %p373
      %p375 = scmp.ne.s32.totalorder %s361, %s362
      %p376 = scmp.eq.s32.totalorder %s49, 7
      %p377 = por %p375, %p376
      %p379 = scmp.ne.s32.totalorder %s362, %s378
      %p380 = scmp.eq.s32.totalorder %s49, 0
      %p381 = por %p379, %p380
      %s382 = ssub.s32 %s51, %s65
      %p383 = scmp.eq.s32.totalorder %s382, 0
      %s385 = sadd.s32 %s384, 1
      %s386 = scalar_select %p383, %s384, %s385
      %p389 = pneg %p383
      %p390 = scmp.eq.s32.totalorder %s43, 7
      %p391 = por %p389, %p390
      %p392 = scmp.ne.s32.totalorder %s384, %s387
      %p393 = scmp.eq.s32.totalorder %s43, 0
      %p394 = por %p392, %p393
      %p395 = scmp.ne.s32.totalorder %s384, %s387
      %p396 = scmp.eq.s32.totalorder %s48, 7
      %p397 = por %p395, %p396
      %p398 = scmp.ne.s32.totalorder %s387, %s388
      %p399 = scmp.eq.s32.totalorder %s48, 0
      %p400 = por %p398, %p399
      %p401 = scmp.ne.s32.totalorder %s387, %s388
      %p402 = scmp.eq.s32.totalorder %s49, 7
      %p403 = por %p401, %p402
      %p405 = scmp.ne.s32.totalorder %s388, %s404
      %p406 = scmp.eq.s32.totalorder %s49, 0
      %p407 = por %p405, %p406
      %s408 = ssub.s32 %s50, %s69
      %p409 = scmp.eq.s32.totalorder %s408, 0
      %s411 = sadd.s32 %s410, 1
      %s412 = scalar_select %p409, %s410, %s411
      %p415 = pneg %p409
      %p416 = scmp.eq.s32.totalorder %s43, 7
      %p417 = por %p415, %p416
      %p418 = scmp.ne.s32.totalorder %s410, %s413
      %p419 = scmp.eq.s32.totalorder %s43, 0
      %p420 = por %p418, %p419
      %p421 = scmp.ne.s32.totalorder %s410, %s413
      %p422 = scmp.eq.s32.totalorder %s48, 7
      %p423 = por %p421, %p422
      %p424 = scmp.ne.s32.totalorder %s413, %s414
      %p425 = scmp.eq.s32.totalorder %s48, 0
      %p426 = por %p424, %p425
      %p427 = scmp.ne.s32.totalorder %s413, %s414
      %p428 = scmp.eq.s32.totalorder %s49, 7
      %p429 = por %p427, %p428
      %p431 = scmp.ne.s32.totalorder %s414, %s430
      %p432 = scmp.eq.s32.totalorder %s49, 0
      %p433 = por %p431, %p432
      %p434 = scmp.le.s32.totalorder 1, %s43
      %p435 = scmp.lt.s32.totalorder %s43, 9
      %p436 = pnand %p434, %p435
      %p437 = pneg %p436
      // Predicated region
      $region9: #{vit_forward.4} parent=5 // pred_check
        _
      $region10: #{vit_forward.4} parent=5 // pred_check_branch
        %439 = sbr.rel (%p436) target = $region12
      $region11: #{vit_forward.4} parent=5 // pred_region
        %s440 = ssub.s32 %s43, 1
      $region12: #{vit_forward.4} parent=5 // pred_fallthru
        _
      %p441 = scmp.lt.s32.totalorder %s43, 8
      // Predicated region
      $region13: #{vit_forward.4} parent=5 // pred_check
        %p442 = pneg %p441
      $region14: #{vit_forward.4} parent=5 // pred_check_branch
        %444 = sbr.rel (%p442) target = $region16
      $region15: #{vit_forward.4} parent=5 // pred_region
        // Predicated region
        $region17: #{vit_forward.4} parent=15 // pred_check
          %p445 = pneg %p82
        $region18: #{vit_forward.4} parent=15 // pred_check_branch
          %447 = sbr.rel (%p445) target = $region20
        $region19: #{vit_forward.4} parent=15 // pred_region
          %s448 = sand.u32 %s72, 1
          %s449 = scalar_lea.sflag [#allocation4], %s448
          %s450 = sand.u32 %s72, 1
          %s451 = smul.addr %s450, 64
          %s452 = scalar_lea.vmem [#allocation3], %s451
          %s453 = smul.u32 2, %s50
          %s455 = ssub.s32 1024, 1024
          %456 = vsyncadd %s449, %s455
          %s457 = smul.addr %s453, 4
          %s458 = smul.addr %s457, 128
          %s459 = scalar_lea.hbm %s0, %s458
          %s460 = sshll.u32 %s452, 4
          %s461 = int_to_ptr.vmem [resolvable:$true] %s460
          %466 = dma.hbm_to_vmem [thread:$0]  %s459, 1024, %s461, %s449, 128, 128, 8
        $region20: #{vit_forward.4} parent=15 // pred_fallthru
          _
        // Predicated region
        $region21: #{vit_forward.4} parent=15 // pred_check
          %p467 = pneg %p108
        $region22: #{vit_forward.4} parent=15 // pred_check_branch
          %469 = sbr.rel (%p467) target = $region24
        $region23: #{vit_forward.4} parent=15 // pred_region
          %s470 = sand.u32 %s43, 1
          %s471 = scalar_lea.sflag [#allocation7], %s470
          %s472 = sand.u32 %s98, 1
          %s473 = smul.addr %s472, 192
          %s474 = scalar_lea.vmem [#allocation6], %s473
          %s476 = ssub.s32 3072, 3072
          %477 = vsyncadd %s471, %s476
          %s478 = smul.addr %s51, 48
          %s479 = smul.addr %s478, 64
          %s480 = scalar_lea.hbm %s1, %s479
          %s481 = sshll.u32 %s474, 4
          %s482 = int_to_ptr.vmem [resolvable:$true] %s481
          %487 = dma.hbm_to_vmem [thread:$0]  %s480, 3072, %s482, %s471, 192, 192, 12
        $region24: #{vit_forward.4} parent=15 // pred_fallthru
          _
        // Predicated region
        $region25: #{vit_forward.4} parent=15 // pred_check
          %p488 = pneg %p134
        $region26: #{vit_forward.4} parent=15 // pred_check_branch
          %490 = sbr.rel (%p488) target = $region28
        $region27: #{vit_forward.4} parent=15 // pred_region
          %s491 = sand.u32 %s43, 1
          %s492 = scalar_lea.sflag [#allocation7], %s491
          %s493 = sand.u32 %s124, 1
          %s494 = smul.addr %s493, 3
          %s495 = scalar_lea.vmem [#allocation8], %s494
          %s497 = ssub.s32 48, 48
          %498 = vsyncadd %s492, %s497
          %s499 = smul.addr %s51, 3
          %s500 = smul.addr %s499, 16
          %s501 = scalar_lea.hbm %s2, %s500
          %s503 = sshll.u32 %s495, 4
          %s504 = int_to_ptr.vmem [resolvable:$true] %s503
          %506 = dma.hbm_to_vmem [thread:$0]  %s501, 48, %s504, %s492
        $region28: #{vit_forward.4} parent=15 // pred_fallthru
          _
        // Predicated region
        $region29: #{vit_forward.4} parent=15 // pred_check
          %p507 = pneg %p160
        $region30: #{vit_forward.4} parent=15 // pred_check_branch
          %509 = sbr.rel (%p507) target = $region32
        $region31: #{vit_forward.4} parent=15 // pred_region
          %s510 = sand.u32 %s43, 1
          %s511 = scalar_lea.sflag [#allocation10], %s510
          %s512 = sand.u32 %s150, 1
          %s513 = smul.addr %s512, 64
          %s514 = scalar_lea.vmem [#allocation9], %s513
          %s516 = ssub.s32 1024, 1024
          %517 = vsyncadd %s511, %s516
          %s518 = smul.addr %s51, 16
          %s519 = smul.addr %s518, 64
          %s520 = scalar_lea.hbm %s3, %s519
          %s521 = sshll.u32 %s514, 4
          %s522 = int_to_ptr.vmem [resolvable:$true] %s521
          %527 = dma.hbm_to_vmem [thread:$0]  %s520, 1024, %s522, %s511, 64, 64, 4
        $region32: #{vit_forward.4} parent=15 // pred_fallthru
          _
        // Predicated region
        $region33: #{vit_forward.4} parent=15 // pred_check
          %p528 = pneg %p186
        $region34: #{vit_forward.4} parent=15 // pred_check_branch
          %530 = sbr.rel (%p528) target = $region36
        $region35: #{vit_forward.4} parent=15 // pred_region
          %s531 = sand.u32 %s43, 1
          %s532 = scalar_lea.sflag [#allocation10], %s531
          %s533 = sand.u32 %s176, 1
          %s534 = scalar_lea.vmem [#allocation11], %s533
          %s536 = ssub.s32 16, 16
          %537 = vsyncadd %s532, %s536
          %s538 = smul.addr %s51, 16
          %s539 = scalar_lea.hbm %s4, %s538
          %s541 = sshll.u32 %s534, 4
          %s542 = int_to_ptr.vmem [resolvable:$true] %s541
          %544 = dma.hbm_to_vmem [thread:$0]  %s539, 16, %s542, %s532
        $region36: #{vit_forward.4} parent=15 // pred_fallthru
          _
        // Predicated region
        $region37: #{vit_forward.4} parent=15 // pred_check
          %p545 = pneg %p212
        $region38: #{vit_forward.4} parent=15 // pred_check_branch
          %547 = sbr.rel (%p545) target = $region40
        $region39: #{vit_forward.4} parent=15 // pred_region
          %s548 = sand.u32 %s43, 1
          %s549 = scalar_lea.sflag [#allocation13], %s548
          %s550 = sand.u32 %s202, 1
          %s551 = scalar_lea.vmem [#allocation12], %s550
          %s553 = ssub.s32 16, 16
          %554 = vsyncadd %s549, %s553
          %s555 = smul.addr %s51, 16
          %s556 = scalar_lea.hbm %s5, %s555
          %s558 = sshll.u32 %s551, 4
          %s559 = int_to_ptr.vmem [resolvable:$true] %s558
          %561 = dma.hbm_to_vmem [thread:$0]  %s556, 16, %s559, %s549
        $region40: #{vit_forward.4} parent=15 // pred_fallthru
          _
        // Predicated region
        $region41: #{vit_forward.4} parent=15 // pred_check
          %p562 = pneg %p238
        $region42: #{vit_forward.4} parent=15 // pred_check_branch
          %564 = sbr.rel (%p562) target = $region44
        $region43: #{vit_forward.4} parent=15 // pred_region
          %s565 = sand.u32 %s43, 1
          %s566 = scalar_lea.sflag [#allocation13], %s565
          %s567 = sand.u32 %s228, 1
          %s568 = scalar_lea.vmem [#allocation14], %s567
          %s570 = ssub.s32 16, 16
          %571 = vsyncadd %s566, %s570
          %s572 = smul.addr %s51, 16
          %s573 = scalar_lea.hbm %s6, %s572
          %s575 = sshll.u32 %s568, 4
          %s576 = int_to_ptr.vmem [resolvable:$true] %s575
          %578 = dma.hbm_to_vmem [thread:$0]  %s573, 16, %s576, %s566
        $region44: #{vit_forward.4} parent=15 // pred_fallthru
          _
        // Predicated region
        $region45: #{vit_forward.4} parent=15 // pred_check
          %p579 = pneg %p264
        $region46: #{vit_forward.4} parent=15 // pred_check_branch
          %581 = sbr.rel (%p579) target = $region48
        $region47: #{vit_forward.4} parent=15 // pred_region
          %s582 = sand.u32 %s43, 1
          %s583 = scalar_lea.sflag [#allocation16], %s582
          %s584 = sand.u32 %s254, 1
          %s585 = smul.addr %s584, 128
          %s586 = scalar_lea.vmem [#allocation15], %s585
          %s588 = ssub.s32 2048, 2048
          %589 = vsyncadd %s583, %s588
          %s590 = smul.addr %s51, 32
          %s591 = smul.addr %s590, 64
          %s592 = scalar_lea.hbm %s7, %s591
          %s593 = sshll.u32 %s586, 4
          %s594 = int_to_ptr.vmem [resolvable:$true] %s593
          %599 = dma.hbm_to_vmem [thread:$0]  %s592, 2048, %s594, %s583, 128, 128, 8
        $region48: #{vit_forward.4} parent=15 // pred_fallthru
          _
        // Predicated region
        $region49: #{vit_forward.4} parent=15 // pred_check
          %p600 = pneg %p290
        $region50: #{vit_forward.4} parent=15 // pred_check_branch
          %602 = sbr.rel (%p600) target = $region52
        $region51: #{vit_forward.4} parent=15 // pred_region
          %s603 = sand.u32 %s43, 1
          %s604 = scalar_lea.sflag [#allocation16], %s603
          %s605 = sand.u32 %s280, 1
          %s606 = smul.addr %s605, 2
          %s607 = scalar_lea.vmem [#allocation17], %s606
          %s609 = ssub.s32 32, 32
          %610 = vsyncadd %s604, %s609
          %s611 = smul.addr %s51, 2
          %s612 = smul.addr %s611, 16
          %s613 = scalar_lea.hbm %s8, %s612
          %s615 = sshll.u32 %s607, 4
          %s616 = int_to_ptr.vmem [resolvable:$true] %s615
          %618 = dma.hbm_to_vmem [thread:$0]  %s613, 32, %s616, %s604
        $region52: #{vit_forward.4} parent=15 // pred_fallthru
          _
        // Predicated region
        $region53: #{vit_forward.4} parent=15 // pred_check
          %p619 = pneg %p316
        $region54: #{vit_forward.4} parent=15 // pred_check_branch
          %621 = sbr.rel (%p619) target = $region56
        $region55: #{vit_forward.4} parent=15 // pred_region
          %s622 = sand.u32 %s43, 1
          %s623 = scalar_lea.sflag [#allocation19], %s622
          %s624 = sand.u32 %s306, 1
          %s625 = smul.addr %s624, 128
          %s626 = scalar_lea.vmem [#allocation18], %s625
          %s628 = ssub.s32 2048, 2048
          %629 = vsyncadd %s623, %s628
          %s630 = smul.addr %s51, 32
          %s631 = smul.addr %s630, 64
          %s632 = scalar_lea.hbm %s9, %s631
          %s633 = sshll.u32 %s626, 4
          %s634 = int_to_ptr.vmem [resolvable:$true] %s633
          %639 = dma.hbm_to_vmem [thread:$0]  %s632, 2048, %s634, %s623, 64, 64, 4
        $region56: #{vit_forward.4} parent=15 // pred_fallthru
          _
        // Predicated region
        $region57: #{vit_forward.4} parent=15 // pred_check
          %p640 = pneg %p342
        $region58: #{vit_forward.4} parent=15 // pred_check_branch
          %642 = sbr.rel (%p640) target = $region60
        $region59: #{vit_forward.4} parent=15 // pred_region
          %s643 = sand.u32 %s43, 1
          %s644 = scalar_lea.sflag [#allocation19], %s643
          %s645 = sand.u32 %s332, 1
          %s646 = scalar_lea.vmem [#allocation20], %s645
          %s648 = ssub.s32 16, 16
          %649 = vsyncadd %s644, %s648
          %s650 = smul.addr %s51, 16
          %s651 = scalar_lea.hbm %s10, %s650
          %s653 = sshll.u32 %s646, 4
          %s654 = int_to_ptr.vmem [resolvable:$true] %s653
          %656 = dma.hbm_to_vmem [thread:$0]  %s651, 16, %s654, %s644
        $region60: #{vit_forward.4} parent=15 // pred_fallthru
          _
        // Predicated region
        $region61: #{vit_forward.4} parent=15 // pred_check
          %p657 = pneg %p368
        $region62: #{vit_forward.4} parent=15 // pred_check_branch
          %659 = sbr.rel (%p657) target = $region64
        $region63: #{vit_forward.4} parent=15 // pred_region
          %s660 = sand.u32 %s43, 1
          %s661 = scalar_lea.sflag [#allocation22], %s660
          %s662 = sand.u32 %s358, 1
          %s663 = scalar_lea.vmem [#allocation21], %s662
          %s665 = ssub.s32 16, 16
          %666 = vsyncadd %s661, %s665
          %s667 = smul.addr %s51, 16
          %s668 = scalar_lea.hbm %s11, %s667
          %s670 = sshll.u32 %s663, 4
          %s671 = int_to_ptr.vmem [resolvable:$true] %s670
          %673 = dma.hbm_to_vmem [thread:$0]  %s668, 16, %s671, %s661
        $region64: #{vit_forward.4} parent=15 // pred_fallthru
          _
        // Predicated region
        $region65: #{vit_forward.4} parent=15 // pred_check
          %p674 = pneg %p394
        $region66: #{vit_forward.4} parent=15 // pred_check_branch
          %676 = sbr.rel (%p674) target = $region68
        $region67: #{vit_forward.4} parent=15 // pred_region
          %s677 = sand.u32 %s43, 1
          %s678 = scalar_lea.sflag [#allocation22], %s677
          %s679 = sand.u32 %s384, 1
          %s680 = scalar_lea.vmem [#allocation23], %s679
          %s682 = ssub.s32 16, 16
          %683 = vsyncadd %s678, %s682
          %s684 = smul.addr %s51, 16
          %s685 = scalar_lea.hbm %s12, %s684
          %s687 = sshll.u32 %s680, 4
          %s688 = int_to_ptr.vmem [resolvable:$true] %s687
          %690 = dma.hbm_to_vmem [thread:$0]  %s685, 16, %s688, %s678
        $region68: #{vit_forward.4} parent=15 // pred_fallthru
          _
      $region16: #{vit_forward.4} parent=5 // pred_fallthru
        _
      %p691 = scmp.le.s32.totalorder 1, %s43
      %p692 = scmp.lt.s32.totalorder %s43, 9
      %p693 = pnand %p691, %p692
      %p694 = pneg %p693
      // Predicated region
      $region69: #{vit_forward.4} parent=5 // pred_check
        _
      $region70: #{vit_forward.4} parent=5 // pred_check_branch
        %696 = sbr.rel (%p693) target = $region72
      $region71: #{vit_forward.4} parent=5 // pred_region
        %s697 = ssub.s32 %s43, 1
        %s698 = sand.u32 %s75, 1
        %s699 = scalar_lea.sflag [#allocation4], %s698
        %s700 = sand.u32 %s75, 1
        %s701 = smul.addr %s700, 64
        %s702 = scalar_lea.vmem [#allocation3], %s701
        // Predicated region
        $region73: #{vit_forward.4} parent=71 // pred_check
          %p703 = pneg %p88
        $region74: #{vit_forward.4} parent=71 // pred_check_branch
          %705 = sbr.rel (%p703) target = $region76
        $region75: #{vit_forward.4} parent=71 // pred_region
          %706 = dma.done %s699, 1024
        $region76: #{vit_forward.4} parent=71 // pred_fallthru
          _
        %s707 = sand.u32 %s48, 1
        %s708 = scalar_lea.sflag [#allocation7], %s707
        %s709 = sand.u32 %s101, 1
        %s710 = smul.addr %s709, 192
        %s711 = scalar_lea.vmem [#allocation6], %s710
        // Predicated region
        $region77: #{vit_forward.4} parent=71 // pred_check
          %p712 = pneg %p114
        $region78: #{vit_forward.4} parent=71 // pred_check_branch
          %714 = sbr.rel (%p712) target = $region80
        $region79: #{vit_forward.4} parent=71 // pred_region
          %715 = dma.done %s708, 3072
        $region80: #{vit_forward.4} parent=71 // pred_fallthru
          _
        %s716 = sand.u32 %s48, 1
        %s717 = scalar_lea.sflag [#allocation7], %s716
        %s718 = sand.u32 %s127, 1
        %s719 = smul.addr %s718, 3
        %s720 = scalar_lea.vmem [#allocation8], %s719
        // Predicated region
        $region81: #{vit_forward.4} parent=71 // pred_check
          %p721 = pneg %p140
        $region82: #{vit_forward.4} parent=71 // pred_check_branch
          %723 = sbr.rel (%p721) target = $region84
        $region83: #{vit_forward.4} parent=71 // pred_region
          %724 = dma.done %s717, 48
        $region84: #{vit_forward.4} parent=71 // pred_fallthru
          _
        %s725 = sand.u32 %s48, 1
        %s726 = scalar_lea.sflag [#allocation10], %s725
        %s727 = sand.u32 %s153, 1
        %s728 = smul.addr %s727, 64
        %s729 = scalar_lea.vmem [#allocation9], %s728
        // Predicated region
        $region85: #{vit_forward.4} parent=71 // pred_check
          %p730 = pneg %p166
        $region86: #{vit_forward.4} parent=71 // pred_check_branch
          %732 = sbr.rel (%p730) target = $region88
        $region87: #{vit_forward.4} parent=71 // pred_region
          %733 = dma.done %s726, 1024
        $region88: #{vit_forward.4} parent=71 // pred_fallthru
          _
        %s734 = sand.u32 %s48, 1
        %s735 = scalar_lea.sflag [#allocation10], %s734
        %s736 = sand.u32 %s179, 1
        %s737 = scalar_lea.vmem [#allocation11], %s736
        // Predicated region
        $region89: #{vit_forward.4} parent=71 // pred_check
          %p738 = pneg %p192
        $region90: #{vit_forward.4} parent=71 // pred_check_branch
          %740 = sbr.rel (%p738) target = $region92
        $region91: #{vit_forward.4} parent=71 // pred_region
          %741 = dma.done %s735, 16
        $region92: #{vit_forward.4} parent=71 // pred_fallthru
          _
        %s742 = sand.u32 %s48, 1
        %s743 = scalar_lea.sflag [#allocation13], %s742
        %s744 = sand.u32 %s205, 1
        %s745 = scalar_lea.vmem [#allocation12], %s744
        // Predicated region
        $region93: #{vit_forward.4} parent=71 // pred_check
          %p746 = pneg %p218
        $region94: #{vit_forward.4} parent=71 // pred_check_branch
          %748 = sbr.rel (%p746) target = $region96
        $region95: #{vit_forward.4} parent=71 // pred_region
          %749 = dma.done %s743, 16
        $region96: #{vit_forward.4} parent=71 // pred_fallthru
          _
        %s750 = sand.u32 %s48, 1
        %s751 = scalar_lea.sflag [#allocation13], %s750
        %s752 = sand.u32 %s231, 1
        %s753 = scalar_lea.vmem [#allocation14], %s752
        // Predicated region
        $region97: #{vit_forward.4} parent=71 // pred_check
          %p754 = pneg %p244
        $region98: #{vit_forward.4} parent=71 // pred_check_branch
          %756 = sbr.rel (%p754) target = $region100
        $region99: #{vit_forward.4} parent=71 // pred_region
          %757 = dma.done %s751, 16
        $region100: #{vit_forward.4} parent=71 // pred_fallthru
          _
        %s758 = sand.u32 %s48, 1
        %s759 = scalar_lea.sflag [#allocation16], %s758
        %s760 = sand.u32 %s257, 1
        %s761 = smul.addr %s760, 128
        %s762 = scalar_lea.vmem [#allocation15], %s761
        // Predicated region
        $region101: #{vit_forward.4} parent=71 // pred_check
          %p763 = pneg %p270
        $region102: #{vit_forward.4} parent=71 // pred_check_branch
          %765 = sbr.rel (%p763) target = $region104
        $region103: #{vit_forward.4} parent=71 // pred_region
          %766 = dma.done %s759, 2048
        $region104: #{vit_forward.4} parent=71 // pred_fallthru
          _
        %s767 = sand.u32 %s48, 1
        %s768 = scalar_lea.sflag [#allocation16], %s767
        %s769 = sand.u32 %s283, 1
        %s770 = smul.addr %s769, 2
        %s771 = scalar_lea.vmem [#allocation17], %s770
        // Predicated region
        $region105: #{vit_forward.4} parent=71 // pred_check
          %p772 = pneg %p296
        $region106: #{vit_forward.4} parent=71 // pred_check_branch
          %774 = sbr.rel (%p772) target = $region108
        $region107: #{vit_forward.4} parent=71 // pred_region
          %775 = dma.done %s768, 32
        $region108: #{vit_forward.4} parent=71 // pred_fallthru
          _
        %s776 = sand.u32 %s48, 1
        %s777 = scalar_lea.sflag [#allocation19], %s776
        %s778 = sand.u32 %s309, 1
        %s779 = smul.addr %s778, 128
        %s780 = scalar_lea.vmem [#allocation18], %s779
        // Predicated region
        $region109: #{vit_forward.4} parent=71 // pred_check
          %p781 = pneg %p322
        $region110: #{vit_forward.4} parent=71 // pred_check_branch
          %783 = sbr.rel (%p781) target = $region112
        $region111: #{vit_forward.4} parent=71 // pred_region
          %784 = dma.done %s777, 2048
        $region112: #{vit_forward.4} parent=71 // pred_fallthru
          _
        %s785 = sand.u32 %s48, 1
        %s786 = scalar_lea.sflag [#allocation19], %s785
        %s787 = sand.u32 %s335, 1
        %s788 = scalar_lea.vmem [#allocation20], %s787
        // Predicated region
        $region113: #{vit_forward.4} parent=71 // pred_check
          %p789 = pneg %p348
        $region114: #{vit_forward.4} parent=71 // pred_check_branch
          %791 = sbr.rel (%p789) target = $region116
        $region115: #{vit_forward.4} parent=71 // pred_region
          %792 = dma.done %s786, 16
        $region116: #{vit_forward.4} parent=71 // pred_fallthru
          _
        %s793 = sand.u32 %s48, 1
        %s794 = scalar_lea.sflag [#allocation22], %s793
        %s795 = sand.u32 %s361, 1
        %s796 = scalar_lea.vmem [#allocation21], %s795
        // Predicated region
        $region117: #{vit_forward.4} parent=71 // pred_check
          %p797 = pneg %p374
        $region118: #{vit_forward.4} parent=71 // pred_check_branch
          %799 = sbr.rel (%p797) target = $region120
        $region119: #{vit_forward.4} parent=71 // pred_region
          %800 = dma.done %s794, 16
        $region120: #{vit_forward.4} parent=71 // pred_fallthru
          _
        %s801 = sand.u32 %s48, 1
        %s802 = scalar_lea.sflag [#allocation22], %s801
        %s803 = sand.u32 %s387, 1
        %s804 = scalar_lea.vmem [#allocation23], %s803
        // Predicated region
        $region121: #{vit_forward.4} parent=71 // pred_check
          %p805 = pneg %p400
        $region122: #{vit_forward.4} parent=71 // pred_check_branch
          %807 = sbr.rel (%p805) target = $region124
        $region123: #{vit_forward.4} parent=71 // pred_region
          %808 = dma.done %s802, 16
        $region124: #{vit_forward.4} parent=71 // pred_fallthru
          _
        %s809 = sand.u32 %s75, 1
        %s810 = scalar_lea.sflag [#allocation4], %s809
        %s811 = sand.u32 %s75, 1
        %s812 = smul.addr %s811, 64
        %s813 = scalar_lea.vmem [#allocation3], %s812
        %p814 = pneg %p88
        %p815 = pneg %p85
        %s816 = sand.u32 %s48, 1
        %s817 = scalar_lea.sflag [#allocation7], %s816
        %s818 = sand.u32 %s101, 1
        %s819 = smul.addr %s818, 192
        %s820 = scalar_lea.vmem [#allocation6], %s819
        %p821 = pneg %p114
        %p822 = pneg %p111
        %s823 = sand.u32 %s48, 1
        %s824 = scalar_lea.sflag [#allocation7], %s823
        %s825 = sand.u32 %s127, 1
        %s826 = smul.addr %s825, 3
        %s827 = scalar_lea.vmem [#allocation8], %s826
        %p828 = pneg %p140
        %p829 = pneg %p137
        %s830 = sand.u32 %s48, 1
        %s831 = scalar_lea.sflag [#allocation10], %s830
        %s832 = sand.u32 %s153, 1
        %s833 = smul.addr %s832, 64
        %s834 = scalar_lea.vmem [#allocation9], %s833
        %p835 = pneg %p166
        %p836 = pneg %p163
        %s837 = sand.u32 %s48, 1
        %s838 = scalar_lea.sflag [#allocation10], %s837
        %s839 = sand.u32 %s179, 1
        %s840 = scalar_lea.vmem [#allocation11], %s839
        %p841 = pneg %p192
        %p842 = pneg %p189
        %s843 = sand.u32 %s48, 1
        %s844 = scalar_lea.sflag [#allocation13], %s843
        %s845 = sand.u32 %s205, 1
        %s846 = scalar_lea.vmem [#allocation12], %s845
        %p847 = pneg %p218
        %p848 = pneg %p215
        %s849 = sand.u32 %s48, 1
        %s850 = scalar_lea.sflag [#allocation13], %s849
        %s851 = sand.u32 %s231, 1
        %s852 = scalar_lea.vmem [#allocation14], %s851
        %p853 = pneg %p244
        %p854 = pneg %p241
        %s855 = sand.u32 %s48, 1
        %s856 = scalar_lea.sflag [#allocation16], %s855
        %s857 = sand.u32 %s257, 1
        %s858 = smul.addr %s857, 128
        %s859 = scalar_lea.vmem [#allocation15], %s858
        %p860 = pneg %p270
        %p861 = pneg %p267
        %s862 = sand.u32 %s48, 1
        %s863 = scalar_lea.sflag [#allocation16], %s862
        %s864 = sand.u32 %s283, 1
        %s865 = smul.addr %s864, 2
        %s866 = scalar_lea.vmem [#allocation17], %s865
        %p867 = pneg %p296
        %p868 = pneg %p293
        %s869 = sand.u32 %s48, 1
        %s870 = scalar_lea.sflag [#allocation19], %s869
        %s871 = sand.u32 %s309, 1
        %s872 = smul.addr %s871, 128
        %s873 = scalar_lea.vmem [#allocation18], %s872
        %p874 = pneg %p322
        %p875 = pneg %p319
        %s876 = sand.u32 %s48, 1
        %s877 = scalar_lea.sflag [#allocation19], %s876
        %s878 = sand.u32 %s335, 1
        %s879 = scalar_lea.vmem [#allocation20], %s878
        %p880 = pneg %p348
        %p881 = pneg %p345
        %s882 = sand.u32 %s48, 1
        %s883 = scalar_lea.sflag [#allocation22], %s882
        %s884 = sand.u32 %s361, 1
        %s885 = scalar_lea.vmem [#allocation21], %s884
        %p886 = pneg %p374
        %p887 = pneg %p371
        %s888 = sand.u32 %s48, 1
        %s889 = scalar_lea.sflag [#allocation22], %s888
        %s890 = sand.u32 %s387, 1
        %s891 = scalar_lea.vmem [#allocation23], %s890
        %p892 = pneg %p400
        %p893 = pneg %p397
        %p894 = pneg %p426
        %p895 = pneg %p423
        %s896 = sand.u32 %s413, 1
        %s897 = scalar_lea.sflag [#allocation5], %s896
        %s898 = sand.u32 %s413, 1
        %s899 = smul.addr %s898, 16
        %s900 = scalar_lea.vmem [#allocation24], %s899
        %s901 = smul.u32 2, %s53
        %s902 = smul.u32 2, %s53
        %p904 = scmp.eq.s32.totalorder %s54, 0
        // Predicated region
        $region125: #{vit_forward.4} parent=71 // pred_check
          %p905 = pneg %p904
        $region126: #{vit_forward.4} parent=71 // pred_check_branch
          %907 = sbr.rel (%p905) target = $region128
        $region127: #{vit_forward.4} parent=71 // pred_region
          %s908 = smul.u32 %s55, 32
          %s909 = scalar_lea.vmem %s702, %s908 [#allocation3]
          %v910 = vld [vmem:[%s909] sm:$0xff]
          %v911 = vld [vmem:[%s909 + $0x8] sm:$0xff]
          %v912 = vld [vmem:[%s909 + $0x10] sm:$0xff]
          %v913 = vld [vmem:[%s909 + $0x18] sm:$0xff]
          %s914 = scalar_lea.vmem [#allocation2], %s908
          %915 = vst [vmem:[%s914] sm:$0xff] %v910
          %916 = vst [vmem:[%s914 + $0x8] sm:$0xff] %v911
          %917 = vst [vmem:[%s914 + $0x10] sm:$0xff] %v912
          %918 = vst [vmem:[%s914 + $0x18] sm:$0xff] %v913
        $region128: #{vit_forward.4} parent=71 // pred_fallthru
          _
        %s919 = smul.u32 %s55, 32
        %s920 = scalar_lea.vmem [#allocation2], %s919
        %v921 = vld [vmem:[%s920] sm:$0xff]
        %v922 = vld [vmem:[%s920 + $0x8] sm:$0xff]
        %v923 = vld [vmem:[%s920 + $0x10] sm:$0xff]
        %v924 = vld [vmem:[%s920 + $0x18] sm:$0xff]
        %v925 = vpack.c.bf16 %v922, %v921
        %v926 = vpack.c.bf16 %v924, %v923
        %v927 = vld [vmem:[%s711] sm:$0xff]
        %v928 = vld [vmem:[%s711 + $0x8] sm:$0xf]
        %v929 = vld [vmem:[%s711 + $0xc] sm:$0xff]
        %v930 = vld [vmem:[%s711 + $0x14] sm:$0xf]
        %v931 = vld [vmem:[%s711 + $0x18] sm:$0xff]
        %v932 = vld [vmem:[%s711 + $0x20] sm:$0xf]
        %v933 = vld [vmem:[%s711 + $0x24] sm:$0xff]
        %v934 = vld [vmem:[%s711 + $0x2c] sm:$0xf]
        %v935 = vld [vmem:[%s711 + $0x30] sm:$0xff]
        %v936 = vld [vmem:[%s711 + $0x38] sm:$0xf]
        %v937 = vld [vmem:[%s711 + $0x3c] sm:$0xff]
        %v938 = vld [vmem:[%s711 + $0x44] sm:$0xf]
        %v939 = vld [vmem:[%s711 + $0x48] sm:$0xff]
        %v940 = vld [vmem:[%s711 + $0x50] sm:$0xf]
        %v941 = vld [vmem:[%s711 + $0x54] sm:$0xff]
        %v942 = vld [vmem:[%s711 + $0x5c] sm:$0xf]
        %v943 = vld [vmem:[%s711 + $0x60] sm:$0xff]
        %v944 = vld [vmem:[%s711 + $0x68] sm:$0xf]
        %v945 = vld [vmem:[%s711 + $0x6c] sm:$0xff]
        %v946 = vld [vmem:[%s711 + $0x74] sm:$0xf]
        %v947 = vld [vmem:[%s711 + $0x78] sm:$0xff]
        %v948 = vld [vmem:[%s711 + $0x80] sm:$0xf]
        %v949 = vld [vmem:[%s711 + $0x84] sm:$0xff]
        %v950 = vld [vmem:[%s711 + $0x8c] sm:$0xf]
        %v951 = vld [vmem:[%s711 + $0x90] sm:$0xff]
        %v952 = vld [vmem:[%s711 + $0x98] sm:$0xf]
        %v953 = vld [vmem:[%s711 + $0x9c] sm:$0xff]
        %v954 = vld [vmem:[%s711 + $0xa4] sm:$0xf]
        %v955 = vld [vmem:[%s711 + $0xa8] sm:$0xff]
        %v956 = vld [vmem:[%s711 + $0xb0] sm:$0xf]
        %v957 = vld [vmem:[%s711 + $0xb4] sm:$0xff]
        %v958 = vld [vmem:[%s711 + $0xbc] sm:$0xf]
        %v959 = vld [vmem:[%s720] sm:$0x7]
        %v961 = vlaneseq
        %v962 = vshrl.u32 %v961, 7
        %v963 = vsub.s32 0, %v962
        %v964 = vrot.slane %v959, %v963
        %v965 = vlaneseq
        %v966 = vshrl.u32 %v965, 7
        %v967 = vsub.s32 1, %v966
        %v968 = vrot.slane %v959, %v967
        %v969 = vlaneseq
        %v970 = vshrl.u32 %v969, 7
        %v971 = vsub.s32 2, %v970
        %v972 = vrot.slane %v959, %v971
        %v1008 = vunpack.c.l.b16 %v927
        %v1009 = vunpack.c.h.b16 %v927
        %v1010 = vunpack.c.l.b16 %v928
        %v1011 = vunpack.c.l.b16 %v929
        %v1012 = vunpack.c.h.b16 %v929
        %v1013 = vunpack.c.l.b16 %v930
        %v1014 = vunpack.c.l.b16 %v931
        %v1015 = vunpack.c.h.b16 %v931
        %v1016 = vunpack.c.l.b16 %v932
        %v1017 = vunpack.c.l.b16 %v933
        %v1018 = vunpack.c.h.b16 %v933
        %v1019 = vunpack.c.l.b16 %v934
        %v1020 = vunpack.c.l.b16 %v935
        %v1021 = vunpack.c.h.b16 %v935
        %v1022 = vunpack.c.l.b16 %v936
        %v1023 = vunpack.c.l.b16 %v937
        %v1024 = vunpack.c.h.b16 %v937
        %v1025 = vunpack.c.l.b16 %v938
        %v1026 = vunpack.c.l.b16 %v939
        %v1027 = vunpack.c.h.b16 %v939
        %v1028 = vunpack.c.l.b16 %v940
        %v1029 = vunpack.c.l.b16 %v941
        %v1030 = vunpack.c.h.b16 %v941
        %v1031 = vunpack.c.l.b16 %v942
        %v1032 = vunpack.c.l.b16 %v943
        %v1033 = vunpack.c.h.b16 %v943
        %v1034 = vunpack.c.l.b16 %v944
        %v1035 = vunpack.c.l.b16 %v945
        %v1036 = vunpack.c.h.b16 %v945
        %v1037 = vunpack.c.l.b16 %v946
        %v1038 = vunpack.c.l.b16 %v947
        %v1039 = vunpack.c.h.b16 %v947
        %v1040 = vunpack.c.l.b16 %v948
        %v1041 = vunpack.c.l.b16 %v949
        %v1042 = vunpack.c.h.b16 %v949
        %v1043 = vunpack.c.l.b16 %v950
        %v1044 = vunpack.c.l.b16 %v951
        %v1045 = vunpack.c.h.b16 %v951
        %v1046 = vunpack.c.l.b16 %v952
        %v1047 = vunpack.c.l.b16 %v953
        %v1048 = vunpack.c.h.b16 %v953
        %v1049 = vunpack.c.l.b16 %v954
        %v1050 = vunpack.c.l.b16 %v955
        %v1051 = vunpack.c.h.b16 %v955
        %v1052 = vunpack.c.l.b16 %v956
        %v1053 = vunpack.c.l.b16 %v957
        %v1054 = vunpack.c.h.b16 %v957
        %v1055 = vunpack.c.l.b16 %v958
        %v1056 = vpack.c.b16 %v1011, %v1008
        %v1057 = vpack.c.b16 %v1012, %v1009
        %v1058 = vpack.c.b16 %v1013, %v1010
        %v1059 = vpack.c.b16 %v1017, %v1014
        %v1060 = vpack.c.b16 %v1018, %v1015
        %v1061 = vpack.c.b16 %v1019, %v1016
        %v1062 = vpack.c.b16 %v1023, %v1020
        %v1063 = vpack.c.b16 %v1024, %v1021
        %v1064 = vpack.c.b16 %v1025, %v1022
        %v1065 = vpack.c.b16 %v1029, %v1026
        %v1066 = vpack.c.b16 %v1030, %v1027
        %v1067 = vpack.c.b16 %v1031, %v1028
        %v1068 = vpack.c.b16 %v1035, %v1032
        %v1069 = vpack.c.b16 %v1036, %v1033
        %v1070 = vpack.c.b16 %v1037, %v1034
        %v1071 = vpack.c.b16 %v1041, %v1038
        %v1072 = vpack.c.b16 %v1042, %v1039
        %v1073 = vpack.c.b16 %v1043, %v1040
        %v1074 = vpack.c.b16 %v1047, %v1044
        %v1075 = vpack.c.b16 %v1048, %v1045
        %v1076 = vpack.c.b16 %v1049, %v1046
        %v1077 = vpack.c.b16 %v1053, %v1050
        %v1078 = vpack.c.b16 %v1054, %v1051
        %v1079 = vpack.c.b16 %v1055, %v1052
        %1104 = vmatprep.subr.bf16.mxu0 %v1057
        %1105 = vmatpush1.bf16.msra.mxu0 %v1056
        %1106 = vmatprep.subr.bf16.mxu0 %v1060
        %1107 = vmatpush1.bf16.msra.mxu0 %v1059
        %1108 = vmatprep.subr.bf16.mxu0 %v1063
        %1109 = vmatpush1.bf16.msra.mxu0 %v1062
        %1110 = vmatprep.subr.bf16.mxu0 %v1066
        %1111 = vmatpush1.bf16.msra.mxu0 %v1065
        %1112 = vmatprep.subr.bf16.mxu0 %v1069
        %1113 = vmatpush1.bf16.msra.mxu0 %v1068
        %1114 = vmatprep.subr.bf16.mxu0 %v1072
        %1115 = vmatpush1.bf16.msra.mxu0 %v1071
        %1116 = vmatprep.subr.bf16.mxu0 %v1075
        %1117 = vmatpush1.bf16.msra.mxu0 %v1074
        %1118 = vmatprep.subr.bf16.mxu0 %v1078
        %1119 = vmatpush1.bf16.msra.mxu0 %v1077
        %1120 = vmatprep.subr.bf16.mxu0 0
        %1121 = vmatpush1.bf16.msra.mxu0 0
        %1122 = vmatprep.subr.bf16.mxu0 0
        %1123 = vmatpush1.bf16.msra.mxu0 0
        %1124 = vmatprep.subr.bf16.mxu0 0
        %1125 = vmatpush1.bf16.msra.mxu0 0
        %1126 = vmatprep.subr.bf16.mxu0 0
        %1127 = vmatpush1.bf16.msra.mxu0 0
        %1128 = vmatprep.subr.bf16.mxu0 0
        %1129 = vmatpush1.bf16.msra.mxu0 0
        %1130 = vmatprep.subr.bf16.mxu0 0
        %1131 = vmatpush1.bf16.msra.mxu0 0
        %1132 = vmatprep.subr.bf16.mxu0 0
        %1133 = vmatpush1.bf16.msra.mxu0 0
        %1134 = vmatprep.subr.bf16.mxu0 0
        %1135 = vmatpush1.bf16.msra.mxu0 0
        %1136 = vmatprep.mubr.bf16.mxu0 0
        %1137 = vmatmul.mubr.bf16.gmra.mrb[0].mxu0 %v925
        %v1138 = vpop.f32.mrb[0].mxu0
        %v1139 = vadd.f32 %v964, %v1138
        %v1140 = vpop.f32.mrb[0].mxu0
        %v1141 = vadd.f32 %v968, %v1140
        %v1142 = vpop.f32.mrb[0].mxu0
        %v1143 = vadd.f32 %v964, %v1142
        %v1144 = vpop.f32.mrb[0].mxu0
        %v1145 = vadd.f32 %v968, %v1144
        %1146 = vmatprep.mubr.bf16.mxu0 0
        %1147 = vmatmul.mubr.bf16.gmra.mrb[0].mxu0 %v926
        %v1148 = vpop.f32.mrb[0].mxu0
        %v1149 = vadd.f32 %v964, %v1148
        %v1150 = vpop.f32.mrb[0].mxu0
        %v1151 = vadd.f32 %v968, %v1150
        %v1152 = vpop.f32.mrb[0].mxu0
        %v1153 = vadd.f32 %v964, %v1152
        %v1154 = vpop.f32.mrb[0].mxu0
        %v1155 = vadd.f32 %v968, %v1154
        %1156 = vdwg.mxu0
        %1157 = vmatprep.subr.bf16.mxu0 0
        %1158 = vmatpush1.bf16.msra.mxu0 %v1058
        %1159 = vmatprep.subr.bf16.mxu0 0
        %1160 = vmatpush1.bf16.msra.mxu0 %v1061
        %1161 = vmatprep.subr.bf16.mxu0 0
        %1162 = vmatpush1.bf16.msra.mxu0 %v1064
        %1163 = vmatprep.subr.bf16.mxu0 0
        %1164 = vmatpush1.bf16.msra.mxu0 %v1067
        %1165 = vmatprep.subr.bf16.mxu0 0
        %1166 = vmatpush1.bf16.msra.mxu0 %v1070
        %1167 = vmatprep.subr.bf16.mxu0 0
        %1168 = vmatpush1.bf16.msra.mxu0 %v1073
        %1169 = vmatprep.subr.bf16.mxu0 0
        %1170 = vmatpush1.bf16.msra.mxu0 %v1076
        %1171 = vmatprep.subr.bf16.mxu0 0
        %1172 = vmatpush1.bf16.msra.mxu0 %v1079
        %1173 = vmatprep.subr.bf16.mxu0 0
        %1174 = vmatpush1.bf16.msra.mxu0 0
        %1175 = vmatprep.subr.bf16.mxu0 0
        %1176 = vmatpush1.bf16.msra.mxu0 0
        %1177 = vmatprep.subr.bf16.mxu0 0
        %1178 = vmatpush1.bf16.msra.mxu0 0
        %1179 = vmatprep.subr.bf16.mxu0 0
        %1180 = vmatpush1.bf16.msra.mxu0 0
        %1181 = vmatprep.subr.bf16.mxu0 0
        %1182 = vmatpush1.bf16.msra.mxu0 0
        %1183 = vmatprep.subr.bf16.mxu0 0
        %1184 = vmatpush1.bf16.msra.mxu0 0
        %1185 = vmatprep.subr.bf16.mxu0 0
        %1186 = vmatpush1.bf16.msra.mxu0 0
        %1187 = vmatprep.subr.bf16.mxu0 0
        %1188 = vmatpush1.bf16.msra.mxu0 0
        %1189 = vmatprep.mubr.bf16.mxu0 0
        %1190 = vmatmul.mubr.bf16.gmra.mrb[0].mxu0 %v925
        %v1191 = vpop.f32.mrb[0].mxu0
        %v1192 = vadd.f32 %v972, %v1191
        %v1193 = vpop.f32.mrb[0].mxu0
        %v1194 = vpop.f32.mrb[0].mxu0
        %v1195 = vadd.f32 %v972, %v1194
        %v1196 = vpop.f32.mrb[0].mxu0
        %1197 = vmatprep.mubr.bf16.mxu0 0
        %1198 = vmatmul.mubr.bf16.gmra.mrb[0].mxu0 %v926
        %v1199 = vpop.f32.mrb[0].mxu0
        %v1200 = vadd.f32 %v972, %v1199
        %v1201 = vpop.f32.mrb[0].mxu0
        %v1202 = vpop.f32.mrb[0].mxu0
        %v1203 = vadd.f32 %v972, %v1202
        %v1204 = vpop.f32.mrb[0].mxu0
        %1205 = vdwg.mxu0
        %v1206 = vpack.c.bf16 %v1143, %v1139
        %v1207 = vpack.c.bf16 %v1153, %v1149
        %v1208 = vpack.c.bf16 %v1145, %v1141
        %v1209 = vpack.c.bf16 %v1155, %v1151
        %v1210 = vpack.c.bf16 %v1195, %v1192
        %v1211 = vpack.c.bf16 %v1203, %v1200
        %vm1212 = vcmask 261120
        %v1214 = vsel %vm1212, %v1206, 0
        %v1217 = vsel %vm1212, %v1207, 0
        %v1220 = vsel %vm1212, %v1208, 0
        %v1223 = vsel %vm1212, %v1209, 0
        %1225 = vmatprep.subr.bf16.mxu0 0
        %1226 = vmatpush1.bf16.xpose.msra.mxu0 %v1220
        %1227 = vmatprep.subr.bf16.mxu0 0
        %1228 = vmatpush1.bf16.xpose.msra.mxu0 %v1223
        %1229 = vmatprep.subr.bf16.mxu0 0
        %1230 = vmatpush1.bf16.xpose.msra.mxu0 0
        %1231 = vmatprep.subr.bf16.mxu0 0
        %1232 = vmatpush1.bf16.xpose.msra.mxu0 0
        %1233 = vmatprep.subr.bf16.mxu0 0
        %1234 = vmatpush1.bf16.xpose.msra.mxu0 0
        %1235 = vmatprep.subr.bf16.mxu0 0
        %1236 = vmatpush1.bf16.xpose.msra.mxu0 0
        %1237 = vmatprep.subr.bf16.mxu0 0
        %1238 = vmatpush1.bf16.xpose.msra.mxu0 0
        %1239 = vmatprep.subr.bf16.mxu0 0
        %1240 = vmatpush1.bf16.xpose.msra.mxu0 0
        %1241 = vmatprep.subr.bf16.mxu0 0
        %1242 = vmatpush1.bf16.xpose.msra.mxu0 0
        %1243 = vmatprep.subr.bf16.mxu0 0
        %1244 = vmatpush1.bf16.xpose.msra.mxu0 0
        %1245 = vmatprep.subr.bf16.mxu0 0
        %1246 = vmatpush1.bf16.xpose.msra.mxu0 0
        %1247 = vmatprep.subr.bf16.mxu0 0
        %1248 = vmatpush1.bf16.xpose.msra.mxu0 0
        %1249 = vmatprep.subr.bf16.mxu0 0
        %1250 = vmatpush1.bf16.xpose.msra.mxu0 0
        %1251 = vmatprep.subr.bf16.mxu0 0
        %1252 = vmatpush1.bf16.xpose.msra.mxu0 0
        %1253 = vmatprep.subr.bf16.mxu0 0
        %1254 = vmatpush1.bf16.xpose.msra.mxu0 0
        %1255 = vmatprep.subr.bf16.mxu0 0
        %1256 = vmatpush1.bf16.xpose.msra.mxu0 0
        %1257 = vmatprep.mubr.bf16.mxu0 0
        %1258 = vmatmul.mubr.bf16.gmra.mrb[0].mxu0 %v1214
        %v1259 = vpop.f32.mrb[0].mxu0
        %v1260 = vadd.f32 0.0, %v1259
        %v1261 = vpop.f32.mrb[0].mxu0
        %v1262 = vpop.f32.mrb[0].mxu0
        %v1263 = vadd.f32 0.0, %v1262
        %v1264 = vpop.f32.mrb[0].mxu0
        %1265 = vmatprep.mubr.bf16.mxu0 0
        %1266 = vmatmul.mubr.bf16.gmra.mrb[0].mxu0 %v1217
        %v1267 = vpop.f32.mrb[0].mxu0
        %v1268 = vadd.f32 0.0, %v1267
        %v1269 = vpop.f32.mrb[0].mxu0
        %v1270 = vpop.f32.mrb[0].mxu0
        %v1271 = vadd.f32 0.0, %v1270
        %v1272 = vpop.f32.mrb[0].mxu0
        %1273 = vdwg.mxu0
        %v1274 = vlaneseq
        %v1275 = vand.u32 %v1274, 127
        %vm1276 = vcmp.lt.s32.totalorder %v1275, 17
        %v1277 = vsel %vm1276, %v1260, -1e+30
        %v1278 = vsel %vm1276, %v1263, -1e+30
        %v1279 = vsel %vm1276, %v1268, -1e+30
        %v1280 = vsel %vm1276, %v1271, -1e+30
        %v1281 = vsel %vm1212, %v1277, -inf
        %1282 = vmax.xlane.f32.xlu0 %v1281
        %v1283 = vpop.xlane.xlu0 %1282
        %v1284 = vsel %vm1212, %v1278, -inf
        %1285 = vmax.xlane.f32.xlu0 %v1284
        %v1286 = vpop.xlane.xlu0 %1285
        %v1287 = vsel %vm1212, %v1279, -inf
        %1288 = vmax.xlane.f32.xlu0 %v1287
        %v1289 = vpop.xlane.xlu0 %1288
        %v1290 = vsel %vm1212, %v1280, -inf
        %1291 = vmax.xlane.f32.xlu0 %v1290
        %v1292 = vpop.xlane.xlu0 %1291
        %v1293 = vsub.f32 %v1277, %v1283
        %v1294 = vsub.f32 %v1278, %v1286
        %v1295 = vsub.f32 %v1279, %v1289
        %v1296 = vsub.f32 %v1280, %v1292
        %v1297 = vmul.f32 %v1293, 1.442695
        %v1298 = vpow.pop %v1297
        %v1299 = vmul.f32 %v1294, 1.442695
        %v1300 = vpow.pop %v1299
        %v1301 = vmul.f32 %v1295, 1.442695
        %v1302 = vpow.pop %v1301
        %v1303 = vmul.f32 %v1296, 1.442695
        %v1304 = vpow.pop %v1303
        %v1305 = vsel %vm1212, %v1298, 0.0
        %1306 = vadd.xlane.f32.xlu0 %v1305
        %v1307 = vpop.xlane.xlu0 %1306
        %v1308 = vsel %vm1212, %v1300, 0.0
        %1309 = vadd.xlane.f32.xlu0 %v1308
        %v1310 = vpop.xlane.xlu0 %1309
        %v1311 = vsel %vm1212, %v1302, 0.0
        %1312 = vadd.xlane.f32.xlu0 %v1311
        %v1313 = vpop.xlane.xlu0 %1312
        %v1314 = vsel %vm1212, %v1304, 0.0
        %1315 = vadd.xlane.f32.xlu0 %v1314
        %v1316 = vpop.xlane.xlu0 %1315
        %v1317 = vrcp.pop %v1307
        %v1318 = vrcp.pop %v1310
        %v1319 = vrcp.pop %v1313
        %v1320 = vrcp.pop %v1316
        %v1321 = vmul.f32 %v1298, %v1317
        %v1322 = vmul.f32 %v1300, %v1318
        %v1323 = vmul.f32 %v1302, %v1319
        %v1324 = vmul.f32 %v1304, %v1320
        %v1325 = vpack.c.bf16 %v1322, %v1321
        %v1326 = vpack.c.bf16 %v1324, %v1323
        %v1328 = vsel %vm1212, %v1325, 0
        %v1331 = vsel %vm1212, %v1326, 0
        %1333 = vmatprep.subr.bf16.mxu0 0
        %1334 = vmatpush1.bf16.msra.mxu0 %v1210
        %1335 = vmatprep.subr.bf16.mxu0 0
        %1336 = vmatpush1.bf16.msra.mxu0 %v1211
        %1337 = vmatprep.subr.bf16.mxu0 0
        %1338 = vmatpush1.bf16.msra.mxu0 0
        %1339 = vmatprep.subr.bf16.mxu0 0
        %1340 = vmatpush1.bf16.msra.mxu0 0
        %1341 = vmatprep.subr.bf16.mxu0 0
        %1342 = vmatpush1.bf16.msra.mxu0 0
        %1343 = vmatprep.subr.bf16.mxu0 0
        %1344 = vmatpush1.bf16.msra.mxu0 0
        %1345 = vmatprep.subr.bf16.mxu0 0
        %1346 = vmatpush1.bf16.msra.mxu0 0
        %1347 = vmatprep.subr.bf16.mxu0 0
        %1348 = vmatpush1.bf16.msra.mxu0 0
        %1349 = vmatprep.subr.bf16.mxu0 0
        %1350 = vmatpush1.bf16.msra.mxu0 0
        %1351 = vmatprep.subr.bf16.mxu0 0
        %1352 = vmatpush1.bf16.msra.mxu0 0
        %1353 = vmatprep.subr.bf16.mxu0 0
        %1354 = vmatpush1.bf16.msra.mxu0 0
        %1355 = vmatprep.subr.bf16.mxu0 0
        %1356 = vmatpush1.bf16.msra.mxu0 0
        %1357 = vmatprep.subr.bf16.mxu0 0
        %1358 = vmatpush1.bf16.msra.mxu0 0
        %1359 = vmatprep.subr.bf16.mxu0 0
        %1360 = vmatpush1.bf16.msra.mxu0 0
        %1361 = vmatprep.subr.bf16.mxu0 0
        %1362 = vmatpush1.bf16.msra.mxu0 0
        %1363 = vmatprep.subr.bf16.mxu0 0
        %1364 = vmatpush1.bf16.msra.mxu0 0
        %1365 = vmatprep.mubr.bf16.mxu0 0
        %1366 = vmatmul.mubr.bf16.gmra.mrb[0].mxu0 %v1328
        %v1367 = vpop.f32.mrb[0].mxu0
        %v1368 = vadd.f32 0.0, %v1367
        %v1369 = vpop.f32.mrb[0].mxu0
        %v1370 = vpop.f32.mrb[0].mxu0
        %v1371 = vadd.f32 0.0, %v1370
        %v1372 = vpop.f32.mrb[0].mxu0
        %1373 = vmatprep.mubr.bf16.mxu0 0
        %1374 = vmatmul.mubr.bf16.gmra.mrb[0].mxu0 %v1331
        %v1375 = vpop.f32.mrb[0].mxu0
        %v1376 = vadd.f32 0.0, %v1375
        %v1377 = vpop.f32.mrb[0].mxu0
        %v1378 = vpop.f32.mrb[0].mxu0
        %v1379 = vadd.f32 0.0, %v1378
        %v1380 = vpop.f32.mrb[0].mxu0
        %1381 = vdwg.mxu0
        %v1382 = vpack.c.bf16 %v1371, %v1368
        %v1383 = vpack.c.bf16 %v1379, %v1376
        %v1384 = vld [vmem:[%s729] sm:$0xf]
        %v1385 = vld [vmem:[%s729 + $0x4] sm:$0xf]
        %v1386 = vld [vmem:[%s729 + $0x8] sm:$0xf]
        %v1387 = vld [vmem:[%s729 + $0xc] sm:$0xf]
        %1390 = vrot.lane.b32.xlu0 %v1206, 96
        %v1391 = vpop.permute.xlu0 %1390
        %1392 = vrot.lane.b32.xlu0 %v1207, 96
        %v1393 = vpop.permute.xlu0 %1392
        %1396 = vrot.lane.b32.xlu0 %v1208, 96
        %v1397 = vpop.permute.xlu0 %1396
        %1398 = vrot.lane.b32.xlu0 %v1209, 96
        %v1399 = vpop.permute.xlu0 %1398
        %v1401 = vsel %vm1212, %v1391, 0
        %v1404 = vsel %vm1212, %v1393, 0
        %v1407 = vsel %vm1212, %v1397, 0
        %v1410 = vsel %vm1212, %v1399, 0
        %1412 = vmatprep.subr.bf16.mxu0 0
        %1413 = vmatpush1.bf16.xpose.msra.mxu0 %v1407
        %1414 = vmatprep.subr.bf16.mxu0 0
        %1415 = vmatpush1.bf16.xpose.msra.mxu0 %v1410
        %1416 = vmatprep.subr.bf16.mxu0 0
        %1417 = vmatpush1.bf16.xpose.msra.mxu0 0
        %1418 = vmatprep.subr.bf16.mxu0 0
        %1419 = vmatpush1.bf16.xpose.msra.mxu0 0
        %1420 = vmatprep.subr.bf16.mxu0 0
        %1421 = vmatpush1.bf16.xpose.msra.mxu0 0
        %1422 = vmatprep.subr.bf16.mxu0 0
        %1423 = vmatpush1.bf16.xpose.msra.mxu0 0
        %1424 = vmatprep.subr.bf16.mxu0 0
        %1425 = vmatpush1.bf16.xpose.msra.mxu0 0
        %1426 = vmatprep.subr.bf16.mxu0 0
        %1427 = vmatpush1.bf16.xpose.msra.mxu0 0
        %1428 = vmatprep.subr.bf16.mxu0 0
        %1429 = vmatpush1.bf16.xpose.msra.mxu0 0
        %1430 = vmatprep.subr.bf16.mxu0 0
        %1431 = vmatpush1.bf16.xpose.msra.mxu0 0
        %1432 = vmatprep.subr.bf16.mxu0 0
        %1433 = vmatpush1.bf16.xpose.msra.mxu0 0
        %1434 = vmatprep.subr.bf16.mxu0 0
        %1435 = vmatpush1.bf16.xpose.msra.mxu0 0
        %1436 = vmatprep.subr.bf16.mxu0 0
        %1437 = vmatpush1.bf16.xpose.msra.mxu0 0
        %1438 = vmatprep.subr.bf16.mxu0 0
        %1439 = vmatpush1.bf16.xpose.msra.mxu0 0
        %1440 = vmatprep.subr.bf16.mxu0 0
        %1441 = vmatpush1.bf16.xpose.msra.mxu0 0
        %1442 = vmatprep.subr.bf16.mxu0 0
        %1443 = vmatpush1.bf16.xpose.msra.mxu0 0
        %1444 = vmatprep.mubr.bf16.mxu0 0
        %1445 = vmatmul.mubr.bf16.gmra.mrb[0].mxu0 %v1401
        %v1446 = vpop.f32.mrb[0].mxu0
        %v1447 = vadd.f32 0.0, %v1446
        %v1448 = vpop.f32.mrb[0].mxu0
        %v1449 = vpop.f32.mrb[0].mxu0
        %v1450 = vadd.f32 0.0, %v1449
        %v1451 = vpop.f32.mrb[0].mxu0
        %1452 = vmatprep.mubr.bf16.mxu0 0
        %1453 = vmatmul.mubr.bf16.gmra.mrb[0].mxu0 %v1404
        %v1454 = vpop.f32.mrb[0].mxu0
        %v1455 = vadd.f32 0.0, %v1454
        %v1456 = vpop.f32.mrb[0].mxu0
        %v1457 = vpop.f32.mrb[0].mxu0
        %v1458 = vadd.f32 0.0, %v1457
        %v1459 = vpop.f32.mrb[0].mxu0
        %1460 = vdwg.mxu0
        %v1461 = vsel %vm1276, %v1447, -1e+30
        %v1462 = vsel %vm1276, %v1450, -1e+30
        %v1463 = vsel %vm1276, %v1455, -1e+30
        %v1464 = vsel %vm1276, %v1458, -1e+30
        %v1465 = vsel %vm1212, %v1461, -inf
        %1466 = vmax.xlane.f32.xlu0 %v1465
        %v1467 = vpop.xlane.xlu0 %1466
        %v1468 = vsel %vm1212, %v1462, -inf
        %1469 = vmax.xlane.f32.xlu0 %v1468
        %v1470 = vpop.xlane.xlu0 %1469
        %v1471 = vsel %vm1212, %v1463, -inf
        %1472 = vmax.xlane.f32.xlu0 %v1471
        %v1473 = vpop.xlane.xlu0 %1472
        %v1474 = vsel %vm1212, %v1464, -inf
        %1475 = vmax.xlane.f32.xlu0 %v1474
        %v1476 = vpop.xlane.xlu0 %1475
        %v1477 = vsub.f32 %v1461, %v1467
        %v1478 = vsub.f32 %v1462, %v1470
        %v1479 = vsub.f32 %v1463, %v1473
        %v1480 = vsub.f32 %v1464, %v1476
        %v1481 = vmul.f32 %v1477, 1.442695
        %v1482 = vpow.pop %v1481
        %v1483 = vmul.f32 %v1478, 1.442695
        %v1484 = vpow.pop %v1483
        %v1485 = vmul.f32 %v1479, 1.442695
        %v1486 = vpow.pop %v1485
        %v1487 = vmul.f32 %v1480, 1.442695
        %v1488 = vpow.pop %v1487
        %v1489 = vsel %vm1212, %v1482, 0.0
        %1490 = vadd.xlane.f32.xlu0 %v1489
        %v1491 = vpop.xlane.xlu0 %1490
        %v1492 = vsel %vm1212, %v1484, 0.0
        %1493 = vadd.xlane.f32.xlu0 %v1492
        %v1494 = vpop.xlane.xlu0 %1493
        %v1495 = vsel %vm1212, %v1486, 0.0
        %1496 = vadd.xlane.f32.xlu0 %v1495
        %v1497 = vpop.xlane.xlu0 %1496
        %v1498 = vsel %vm1212, %v1488, 0.0
        %1499 = vadd.xlane.f32.xlu0 %v1498
        %v1500 = vpop.xlane.xlu0 %1499
        %v1501 = vrcp.pop %v1491
        %v1502 = vrcp.pop %v1494
        %v1503 = vrcp.pop %v1497
        %v1504 = vrcp.pop %v1500
        %v1505 = vmul.f32 %v1482, %v1501
        %v1506 = vmul.f32 %v1484, %v1502
        %v1507 = vmul.f32 %v1486, %v1503
        %v1508 = vmul.f32 %v1488, %v1504
        %v1509 = vpack.c.bf16 %v1506, %v1505
        %v1510 = vpack.c.bf16 %v1508, %v1507
        %1513 = vrot.lane.b32.xlu0 %v1210, 96
        %v1514 = vpop.permute.xlu0 %1513
        %1515 = vrot.lane.b32.xlu0 %v1211, 96
        %v1516 = vpop.permute.xlu0 %1515
        %v1520 = vsel %vm1212, %v1509, 0
        %v1523 = vsel %vm1212, %v1510, 0
        %1525 = vmatprep.subr.bf16.mxu0 0
        %1526 = vmatpush1.bf16.msra.mxu0 %v1514
        %1527 = vmatprep.subr.bf16.mxu0 0
        %1528 = vmatpush1.bf16.msra.mxu0 %v1516
        %1529 = vmatprep.subr.bf16.mxu0 0
        %1530 = vmatpush1.bf16.msra.mxu0 0
        %1531 = vmatprep.subr.bf16.mxu0 0
        %1532 = vmatpush1.bf16.msra.mxu0 0
        %1533 = vmatprep.subr.bf16.mxu0 0
        %1534 = vmatpush1.bf16.msra.mxu0 0
        %1535 = vmatprep.subr.bf16.mxu0 0
        %1536 = vmatpush1.bf16.msra.mxu0 0
        %1537 = vmatprep.subr.bf16.mxu0 0
        %1538 = vmatpush1.bf16.msra.mxu0 0
        %1539 = vmatprep.subr.bf16.mxu0 0
        %1540 = vmatpush1.bf16.msra.mxu0 0
        %1541 = vmatprep.subr.bf16.mxu0 0
        %1542 = vmatpush1.bf16.msra.mxu0 0
        %1543 = vmatprep.subr.bf16.mxu0 0
        %1544 = vmatpush1.bf16.msra.mxu0 0
        %1545 = vmatprep.subr.bf16.mxu0 0
        %1546 = vmatpush1.bf16.msra.mxu0 0
        %1547 = vmatprep.subr.bf16.mxu0 0
        %1548 = vmatpush1.bf16.msra.mxu0 0
        %1549 = vmatprep.subr.bf16.mxu0 0
        %1550 = vmatpush1.bf16.msra.mxu0 0
        %1551 = vmatprep.subr.bf16.mxu0 0
        %1552 = vmatpush1.bf16.msra.mxu0 0
        %1553 = vmatprep.subr.bf16.mxu0 0
        %1554 = vmatpush1.bf16.msra.mxu0 0
        %1555 = vmatprep.subr.bf16.mxu0 0
        %1556 = vmatpush1.bf16.msra.mxu0 0
        %1557 = vmatprep.mubr.bf16.mxu0 0
        %1558 = vmatmul.mubr.bf16.gmra.mrb[0].mxu0 %v1520
        %v1559 = vpop.f32.mrb[0].mxu0
        %v1560 = vadd.f32 0.0, %v1559
        %v1561 = vpop.f32.mrb[0].mxu0
        %v1562 = vpop.f32.mrb[0].mxu0
        %v1563 = vadd.f32 0.0, %v1562
        %v1564 = vpop.f32.mrb[0].mxu0
        %1565 = vmatprep.mubr.bf16.mxu0 0
        %1566 = vmatmul.mubr.bf16.gmra.mrb[0].mxu0 %v1523
        %v1567 = vpop.f32.mrb[0].mxu0
        %v1568 = vadd.f32 0.0, %v1567
        %v1569 = vpop.f32.mrb[0].mxu0
        %v1570 = vpop.f32.mrb[0].mxu0
        %v1571 = vadd.f32 0.0, %v1570
        %v1572 = vpop.f32.mrb[0].mxu0
        %1573 = vdwg.mxu0
        %v1574 = vpack.c.bf16 %v1563, %v1560
        %v1575 = vpack.c.bf16 %v1571, %v1568
        %v1576 = vld [vmem:[%s729 + $0x10] sm:$0xf]
        %v1577 = vld [vmem:[%s729 + $0x14] sm:$0xf]
        %v1578 = vld [vmem:[%s729 + $0x18] sm:$0xf]
        %v1579 = vld [vmem:[%s729 + $0x1c] sm:$0xf]
        %v1584 = vunpack.c.l.b16 %v1576
        %v1585 = vunpack.c.l.b16 %v1577
        %v1586 = vunpack.c.l.b16 %v1578
        %v1587 = vunpack.c.l.b16 %v1579
        %v1588 = vpack.c.b16 %v1585, %v1584
        %v1589 = vpack.c.b16 %v1587, %v1586
        %v1593 = vsel %vm1212, %v1574, 0
        %v1596 = vsel %vm1212, %v1575, 0
        %1598 = vmatprep.subr.bf16.mxu0 0
        %1599 = vmatpush1.bf16.msra.mxu0 %v1588
        %1600 = vmatprep.subr.bf16.mxu0 0
        %1601 = vmatpush1.bf16.msra.mxu0 %v1589
        %1602 = vmatprep.subr.bf16.mxu0 0
        %1603 = vmatpush1.bf16.msra.mxu0 0
        %1604 = vmatprep.subr.bf16.mxu0 0
        %1605 = vmatpush1.bf16.msra.mxu0 0
        %1606 = vmatprep.subr.bf16.mxu0 0
        %1607 = vmatpush1.bf16.msra.mxu0 0
        %1608 = vmatprep.subr.bf16.mxu0 0
        %1609 = vmatpush1.bf16.msra.mxu0 0
        %1610 = vmatprep.subr.bf16.mxu0 0
        %1611 = vmatpush1.bf16.msra.mxu0 0
        %1612 = vmatprep.subr.bf16.mxu0 0
        %1613 = vmatpush1.bf16.msra.mxu0 0
        %1614 = vmatprep.subr.bf16.mxu0 0
        %1615 = vmatpush1.bf16.msra.mxu0 0
        %1616 = vmatprep.subr.bf16.mxu0 0
        %1617 = vmatpush1.bf16.msra.mxu0 0
        %1618 = vmatprep.subr.bf16.mxu0 0
        %1619 = vmatpush1.bf16.msra.mxu0 0
        %1620 = vmatprep.subr.bf16.mxu0 0
        %1621 = vmatpush1.bf16.msra.mxu0 0
        %1622 = vmatprep.subr.bf16.mxu0 0
        %1623 = vmatpush1.bf16.msra.mxu0 0
        %1624 = vmatprep.subr.bf16.mxu0 0
        %1625 = vmatpush1.bf16.msra.mxu0 0
        %1626 = vmatprep.subr.bf16.mxu0 0
        %1627 = vmatpush1.bf16.msra.mxu0 0
        %1628 = vmatprep.subr.bf16.mxu0 0
        %1629 = vmatpush1.bf16.msra.mxu0 0
        %1630 = vmatprep.mubr.bf16.mxu0 0
        %1631 = vmatmul.mubr.bf16.gmra.mrb[0].mxu0 %v1593
        %v1632 = vpop.f32.mrb[0].mxu0
        %v1633 = vadd.f32 0.0, %v1632
        %v1634 = vpop.f32.mrb[0].mxu0
        %v1635 = vpop.f32.mrb[0].mxu0
        %v1636 = vadd.f32 0.0, %v1635
        %v1637 = vpop.f32.mrb[0].mxu0
        %1638 = vmatprep.mubr.bf16.mxu0 0
        %1639 = vmatmul.mubr.bf16.gmra.mrb[0].mxu0 %v1596
        %v1640 = vpop.f32.mrb[0].mxu0
        %v1641 = vadd.f32 0.0, %v1640
        %v1642 = vpop.f32.mrb[0].mxu0
        %v1643 = vpop.f32.mrb[0].mxu0
        %v1644 = vadd.f32 0.0, %v1643
        %v1645 = vpop.f32.mrb[0].mxu0
        %1646 = vdwg.mxu0
        %v1651 = vunpack.c.l.b16 %v1384
        %v1652 = vunpack.c.l.b16 %v1385
        %v1653 = vunpack.c.l.b16 %v1386
        %v1654 = vunpack.c.l.b16 %v1387
        %v1655 = vpack.c.b16 %v1652, %v1651
        %v1656 = vpack.c.b16 %v1654, %v1653
        %v1660 = vsel %vm1212, %v1382, 0
        %v1663 = vsel %vm1212, %v1383, 0
        %1665 = vmatprep.subr.bf16.mxu0 0
        %1666 = vmatpush1.bf16.msra.mxu0 %v1655
        %1667 = vmatprep.subr.bf16.mxu0 0
        %1668 = vmatpush1.bf16.msra.mxu0 %v1656
        %1669 = vmatprep.subr.bf16.mxu0 0
        %1670 = vmatpush1.bf16.msra.mxu0 0
        %1671 = vmatprep.subr.bf16.mxu0 0
        %1672 = vmatpush1.bf16.msra.mxu0 0
        %1673 = vmatprep.subr.bf16.mxu0 0
        %1674 = vmatpush1.bf16.msra.mxu0 0
        %1675 = vmatprep.subr.bf16.mxu0 0
        %1676 = vmatpush1.bf16.msra.mxu0 0
        %1677 = vmatprep.subr.bf16.mxu0 0
        %1678 = vmatpush1.bf16.msra.mxu0 0
        %1679 = vmatprep.subr.bf16.mxu0 0
        %1680 = vmatpush1.bf16.msra.mxu0 0
        %1681 = vmatprep.subr.bf16.mxu0 0
        %1682 = vmatpush1.bf16.msra.mxu0 0
        %1683 = vmatprep.subr.bf16.mxu0 0
        %1684 = vmatpush1.bf16.msra.mxu0 0
        %1685 = vmatprep.subr.bf16.mxu0 0
        %1686 = vmatpush1.bf16.msra.mxu0 0
        %1687 = vmatprep.subr.bf16.mxu0 0
        %1688 = vmatpush1.bf16.msra.mxu0 0
        %1689 = vmatprep.subr.bf16.mxu0 0
        %1690 = vmatpush1.bf16.msra.mxu0 0
        %1691 = vmatprep.subr.bf16.mxu0 0
        %1692 = vmatpush1.bf16.msra.mxu0 0
        %1693 = vmatprep.subr.bf16.mxu0 0
        %1694 = vmatpush1.bf16.msra.mxu0 0
        %1695 = vmatprep.subr.bf16.mxu0 0
        %1696 = vmatpush1.bf16.msra.mxu0 0
        %1697 = vmatprep.mubr.bf16.mxu0 0
        %1698 = vmatmul.mubr.bf16.gmra.mrb[0].mxu0 %v1660
        %v1699 = vpop.f32.mrb[0].mxu0
        %v1700 = vadd.f32 %v1633, %v1699
        %v1701 = vpop.f32.mrb[0].mxu0
        %v1702 = vpop.f32.mrb[0].mxu0
        %v1703 = vadd.f32 %v1636, %v1702
        %v1704 = vpop.f32.mrb[0].mxu0
        %1705 = vmatprep.mubr.bf16.mxu0 0
        %1706 = vmatmul.mubr.bf16.gmra.mrb[0].mxu0 %v1663
        %v1707 = vpop.f32.mrb[0].mxu0
        %v1708 = vadd.f32 %v1641, %v1707
        %v1709 = vpop.f32.mrb[0].mxu0
        %v1710 = vpop.f32.mrb[0].mxu0
        %v1711 = vadd.f32 %v1644, %v1710
        %v1712 = vpop.f32.mrb[0].mxu0
        %1713 = vdwg.mxu0
        %1714 = vrot.lane.b32.xlu0 %v1206, 64
        %v1715 = vpop.permute.xlu0 %1714
        %1716 = vrot.lane.b32.xlu0 %v1207, 64
        %v1717 = vpop.permute.xlu0 %1716
        %1718 = vrot.lane.b32.xlu0 %v1208, 64
        %v1719 = vpop.permute.xlu0 %1718
        %1720 = vrot.lane.b32.xlu0 %v1209, 64
        %v1721 = vpop.permute.xlu0 %1720
        %v1723 = vsel %vm1212, %v1715, 0
        %v1726 = vsel %vm1212, %v1717, 0
        %v1729 = vsel %vm1212, %v1719, 0
        %v1732 = vsel %vm1212, %v1721, 0
        %1734 = vmatprep.subr.bf16.mxu0 0
        %1735 = vmatpush1.bf16.xpose.msra.mxu0 %v1729
        %1736 = vmatprep.subr.bf16.mxu0 0
        %1737 = vmatpush1.bf16.xpose.msra.mxu0 %v1732
        %1738 = vmatprep.subr.bf16.mxu0 0
        %1739 = vmatpush1.bf16.xpose.msra.mxu0 0
        %1740 = vmatprep.subr.bf16.mxu0 0
        %1741 = vmatpush1.bf16.xpose.msra.mxu0 0
        %1742 = vmatprep.subr.bf16.mxu0 0
        %1743 = vmatpush1.bf16.xpose.msra.mxu0 0
        %1744 = vmatprep.subr.bf16.mxu0 0
        %1745 = vmatpush1.bf16.xpose.msra.mxu0 0
        %1746 = vmatprep.subr.bf16.mxu0 0
        %1747 = vmatpush1.bf16.xpose.msra.mxu0 0
        %1748 = vmatprep.subr.bf16.mxu0 0
        %1749 = vmatpush1.bf16.xpose.msra.mxu0 0
        %1750 = vmatprep.subr.bf16.mxu0 0
        %1751 = vmatpush1.bf16.xpose.msra.mxu0 0
        %1752 = vmatprep.subr.bf16.mxu0 0
        %1753 = vmatpush1.bf16.xpose.msra.mxu0 0
        %1754 = vmatprep.subr.bf16.mxu0 0
        %1755 = vmatpush1.bf16.xpose.msra.mxu0 0
        %1756 = vmatprep.subr.bf16.mxu0 0
        %1757 = vmatpush1.bf16.xpose.msra.mxu0 0
        %1758 = vmatprep.subr.bf16.mxu0 0
        %1759 = vmatpush1.bf16.xpose.msra.mxu0 0
        %1760 = vmatprep.subr.bf16.mxu0 0
        %1761 = vmatpush1.bf16.xpose.msra.mxu0 0
        %1762 = vmatprep.subr.bf16.mxu0 0
        %1763 = vmatpush1.bf16.xpose.msra.mxu0 0
        %1764 = vmatprep.subr.bf16.mxu0 0
        %1765 = vmatpush1.bf16.xpose.msra.mxu0 0
        %1766 = vmatprep.mubr.bf16.mxu0 0
        %1767 = vmatmul.mubr.bf16.gmra.mrb[0].mxu0 %v1723
        %v1768 = vpop.f32.mrb[0].mxu0
        %v1769 = vadd.f32 0.0, %v1768
        %v1770 = vpop.f32.mrb[0].mxu0
        %v1771 = vpop.f32.mrb[0].mxu0
        %v1772 = vadd.f32 0.0, %v1771
        %v1773 = vpop.f32.mrb[0].mxu0
        %1774 = vmatprep.mubr.bf16.mxu0 0
        %1775 = vmatmul.mubr.bf16.gmra.mrb[0].mxu0 %v1726
        %v1776 = vpop.f32.mrb[0].mxu0
        %v1777 = vadd.f32 0.0, %v1776
        %v1778 = vpop.f32.mrb[0].mxu0
        %v1779 = vpop.f32.mrb[0].mxu0
        %v1780 = vadd.f32 0.0, %v1779
        %v1781 = vpop.f32.mrb[0].mxu0
        %1782 = vdwg.mxu0
        %v1783 = vsel %vm1276, %v1769, -1e+30
        %v1784 = vsel %vm1276, %v1772, -1e+30
        %v1785 = vsel %vm1276, %v1777, -1e+30
        %v1786 = vsel %vm1276, %v1780, -1e+30
        %v1787 = vsel %vm1212, %v1783, -inf
        %1788 = vmax.xlane.f32.xlu0 %v1787
        %v1789 = vpop.xlane.xlu0 %1788
        %v1790 = vsel %vm1212, %v1784, -inf
        %1791 = vmax.xlane.f32.xlu0 %v1790
        %v1792 = vpop.xlane.xlu0 %1791
        %v1793 = vsel %vm1212, %v1785, -inf
        %1794 = vmax.xlane.f32.xlu0 %v1793
        %v1795 = vpop.xlane.xlu0 %1794
        %v1796 = vsel %vm1212, %v1786, -inf
        %1797 = vmax.xlane.f32.xlu0 %v1796
        %v1798 = vpop.xlane.xlu0 %1797
        %v1799 = vsub.f32 %v1783, %v1789
        %v1800 = vsub.f32 %v1784, %v1792
        %v1801 = vsub.f32 %v1785, %v1795
        %v1802 = vsub.f32 %v1786, %v1798
        %v1803 = vmul.f32 %v1799, 1.442695
        %v1804 = vpow.pop %v1803
        %v1805 = vmul.f32 %v1800, 1.442695
        %v1806 = vpow.pop %v1805
        %v1807 = vmul.f32 %v1801, 1.442695
        %v1808 = vpow.pop %v1807
        %v1809 = vmul.f32 %v1802, 1.442695
        %v1810 = vpow.pop %v1809
        %v1811 = vsel %vm1212, %v1804, 0.0
        %1812 = vadd.xlane.f32.xlu0 %v1811
        %v1813 = vpop.xlane.xlu0 %1812
        %v1814 = vsel %vm1212, %v1806, 0.0
        %1815 = vadd.xlane.f32.xlu0 %v1814
        %v1816 = vpop.xlane.xlu0 %1815
        %v1817 = vsel %vm1212, %v1808, 0.0
        %1818 = vadd.xlane.f32.xlu0 %v1817
        %v1819 = vpop.xlane.xlu0 %1818
        %v1820 = vsel %vm1212, %v1810, 0.0
        %1821 = vadd.xlane.f32.xlu0 %v1820
        %v1822 = vpop.xlane.xlu0 %1821
        %v1823 = vrcp.pop %v1813
        %v1824 = vrcp.pop %v1816
        %v1825 = vrcp.pop %v1819
        %v1826 = vrcp.pop %v1822
        %v1827 = vmul.f32 %v1804, %v1823
        %v1828 = vmul.f32 %v1806, %v1824
        %v1829 = vmul.f32 %v1808, %v1825
        %v1830 = vmul.f32 %v1810, %v1826
        %v1831 = vpack.c.bf16 %v1828, %v1827
        %v1832 = vpack.c.bf16 %v1830, %v1829
        %1833 = vrot.lane.b32.xlu0 %v1210, 64
        %v1834 = vpop.permute.xlu0 %1833
        %1835 = vrot.lane.b32.xlu0 %v1211, 64
        %v1836 = vpop.permute.xlu0 %1835
        %v1840 = vsel %vm1212, %v1831, 0
        %v1843 = vsel %vm1212, %v1832, 0
        %1845 = vmatprep.subr.bf16.mxu0 0
        %1846 = vmatpush1.bf16.msra.mxu0 %v1834
        %1847 = vmatprep.subr.bf16.mxu0 0
        %1848 = vmatpush1.bf16.msra.mxu0 %v1836
        %1849 = vmatprep.subr.bf16.mxu0 0
        %1850 = vmatpush1.bf16.msra.mxu0 0
        %1851 = vmatprep.subr.bf16.mxu0 0
        %1852 = vmatpush1.bf16.msra.mxu0 0
        %1853 = vmatprep.subr.bf16.mxu0 0
        %1854 = vmatpush1.bf16.msra.mxu0 0
        %1855 = vmatprep.subr.bf16.mxu0 0
        %1856 = vmatpush1.bf16.msra.mxu0 0
        %1857 = vmatprep.subr.bf16.mxu0 0
        %1858 = vmatpush1.bf16.msra.mxu0 0
        %1859 = vmatprep.subr.bf16.mxu0 0
        %1860 = vmatpush1.bf16.msra.mxu0 0
        %1861 = vmatprep.subr.bf16.mxu0 0
        %1862 = vmatpush1.bf16.msra.mxu0 0
        %1863 = vmatprep.subr.bf16.mxu0 0
        %1864 = vmatpush1.bf16.msra.mxu0 0
        %1865 = vmatprep.subr.bf16.mxu0 0
        %1866 = vmatpush1.bf16.msra.mxu0 0
        %1867 = vmatprep.subr.bf16.mxu0 0
        %1868 = vmatpush1.bf16.msra.mxu0 0
        %1869 = vmatprep.subr.bf16.mxu0 0
        %1870 = vmatpush1.bf16.msra.mxu0 0
        %1871 = vmatprep.subr.bf16.mxu0 0
        %1872 = vmatpush1.bf16.msra.mxu0 0
        %1873 = vmatprep.subr.bf16.mxu0 0
        %1874 = vmatpush1.bf16.msra.mxu0 0
        %1875 = vmatprep.subr.bf16.mxu0 0
        %1876 = vmatpush1.bf16.msra.mxu0 0
        %1877 = vmatprep.mubr.bf16.mxu0 0
        %1878 = vmatmul.mubr.bf16.gmra.mrb[0].mxu0 %v1840
        %v1879 = vpop.f32.mrb[0].mxu0
        %v1880 = vadd.f32 0.0, %v1879
        %v1881 = vpop.f32.mrb[0].mxu0
        %v1882 = vpop.f32.mrb[0].mxu0
        %v1883 = vadd.f32 0.0, %v1882
        %v1884 = vpop.f32.mrb[0].mxu0
        %1885 = vmatprep.mubr.bf16.mxu0 0
        %1886 = vmatmul.mubr.bf16.gmra.mrb[0].mxu0 %v1843
        %v1887 = vpop.f32.mrb[0].mxu0
        %v1888 = vadd.f32 0.0, %v1887
        %v1889 = vpop.f32.mrb[0].mxu0
        %v1890 = vpop.f32.mrb[0].mxu0
        %v1891 = vadd.f32 0.0, %v1890
        %v1892 = vpop.f32.mrb[0].mxu0
        %1893 = vdwg.mxu0
        %v1894 = vpack.c.bf16 %v1883, %v1880
        %v1895 = vpack.c.bf16 %v1891, %v1888
        %v1896 = vld [vmem:[%s729 + $0x20] sm:$0xf]
        %v1897 = vld [vmem:[%s729 + $0x24] sm:$0xf]
        %v1898 = vld [vmem:[%s729 + $0x28] sm:$0xf]
        %v1899 = vld [vmem:[%s729 + $0x2c] sm:$0xf]
        %v1904 = vunpack.c.l.b16 %v1896
        %v1905 = vunpack.c.l.b16 %v1897
        %v1906 = vunpack.c.l.b16 %v1898
        %v1907 = vunpack.c.l.b16 %v1899
        %v1908 = vpack.c.b16 %v1905, %v1904
        %v1909 = vpack.c.b16 %v1907, %v1906
        %v1913 = vsel %vm1212, %v1894, 0
        %v1916 = vsel %vm1212, %v1895, 0
        %1918 = vmatprep.subr.bf16.mxu0 0
        %1919 = vmatpush1.bf16.msra.mxu0 %v1908
        %1920 = vmatprep.subr.bf16.mxu0 0
        %1921 = vmatpush1.bf16.msra.mxu0 %v1909
        %1922 = vmatprep.subr.bf16.mxu0 0
        %1923 = vmatpush1.bf16.msra.mxu0 0
        %1924 = vmatprep.subr.bf16.mxu0 0
        %1925 = vmatpush1.bf16.msra.mxu0 0
        %1926 = vmatprep.subr.bf16.mxu0 0
        %1927 = vmatpush1.bf16.msra.mxu0 0
        %1928 = vmatprep.subr.bf16.mxu0 0
        %1929 = vmatpush1.bf16.msra.mxu0 0
        %1930 = vmatprep.subr.bf16.mxu0 0
        %1931 = vmatpush1.bf16.msra.mxu0 0
        %1932 = vmatprep.subr.bf16.mxu0 0
        %1933 = vmatpush1.bf16.msra.mxu0 0
        %1934 = vmatprep.subr.bf16.mxu0 0
        %1935 = vmatpush1.bf16.msra.mxu0 0
        %1936 = vmatprep.subr.bf16.mxu0 0
        %1937 = vmatpush1.bf16.msra.mxu0 0
        %1938 = vmatprep.subr.bf16.mxu0 0
        %1939 = vmatpush1.bf16.msra.mxu0 0
        %1940 = vmatprep.subr.bf16.mxu0 0
        %1941 = vmatpush1.bf16.msra.mxu0 0
        %1942 = vmatprep.subr.bf16.mxu0 0
        %1943 = vmatpush1.bf16.msra.mxu0 0
        %1944 = vmatprep.subr.bf16.mxu0 0
        %1945 = vmatpush1.bf16.msra.mxu0 0
        %1946 = vmatprep.subr.bf16.mxu0 0
        %1947 = vmatpush1.bf16.msra.mxu0 0
        %1948 = vmatprep.subr.bf16.mxu0 0
        %1949 = vmatpush1.bf16.msra.mxu0 0
        %1950 = vmatprep.mubr.bf16.mxu0 0
        %1951 = vmatmul.mubr.bf16.gmra.mrb[0].mxu0 %v1913
        %v1952 = vpop.f32.mrb[0].mxu0
        %v1953 = vadd.f32 0.0, %v1952
        %v1954 = vpop.f32.mrb[0].mxu0
        %v1955 = vpop.f32.mrb[0].mxu0
        %v1956 = vadd.f32 0.0, %v1955
        %v1957 = vpop.f32.mrb[0].mxu0
        %1958 = vmatprep.mubr.bf16.mxu0 0
        %1959 = vmatmul.mubr.bf16.gmra.mrb[0].mxu0 %v1916
        %v1960 = vpop.f32.mrb[0].mxu0
        %v1961 = vadd.f32 0.0, %v1960
        %v1962 = vpop.f32.mrb[0].mxu0
        %v1963 = vpop.f32.mrb[0].mxu0
        %v1964 = vadd.f32 0.0, %v1963
        %v1965 = vpop.f32.mrb[0].mxu0
        %1966 = vdwg.mxu0
        %v1967 = vadd.f32 %v1700, %v1953
        %v1968 = vadd.f32 %v1703, %v1956
        %v1969 = vadd.f32 %v1708, %v1961
        %v1970 = vadd.f32 %v1711, %v1964
        %1971 = vrot.lane.b32.xlu0 %v1206, 32
        %v1972 = vpop.permute.xlu0 %1971
        %1973 = vrot.lane.b32.xlu0 %v1207, 32
        %v1974 = vpop.permute.xlu0 %1973
        %1975 = vrot.lane.b32.xlu0 %v1208, 32
        %v1976 = vpop.permute.xlu0 %1975
        %1977 = vrot.lane.b32.xlu0 %v1209, 32
        %v1978 = vpop.permute.xlu0 %1977
        %v1980 = vsel %vm1212, %v1972, 0
        %v1983 = vsel %vm1212, %v1974, 0
        %v1986 = vsel %vm1212, %v1976, 0
        %v1989 = vsel %vm1212, %v1978, 0
        %1991 = vmatprep.subr.bf16.mxu0 0
        %1992 = vmatpush1.bf16.xpose.msra.mxu0 %v1986
        %1993 = vmatprep.subr.bf16.mxu0 0
        %1994 = vmatpush1.bf16.xpose.msra.mxu0 %v1989
        %1995 = vmatprep.subr.bf16.mxu0 0
        %1996 = vmatpush1.bf16.xpose.msra.mxu0 0
        %1997 = vmatprep.subr.bf16.mxu0 0
        %1998 = vmatpush1.bf16.xpose.msra.mxu0 0
        %1999 = vmatprep.subr.bf16.mxu0 0
        %2000 = vmatpush1.bf16.xpose.msra.mxu0 0
        %2001 = vmatprep.subr.bf16.mxu0 0
        %2002 = vmatpush1.bf16.xpose.msra.mxu0 0
        %2003 = vmatprep.subr.bf16.mxu0 0
        %2004 = vmatpush1.bf16.xpose.msra.mxu0 0
        %2005 = vmatprep.subr.bf16.mxu0 0
        %2006 = vmatpush1.bf16.xpose.msra.mxu0 0
        %2007 = vmatprep.subr.bf16.mxu0 0
        %2008 = vmatpush1.bf16.xpose.msra.mxu0 0
        %2009 = vmatprep.subr.bf16.mxu0 0
        %2010 = vmatpush1.bf16.xpose.msra.mxu0 0
        %2011 = vmatprep.subr.bf16.mxu0 0
        %2012 = vmatpush1.bf16.xpose.msra.mxu0 0
        %2013 = vmatprep.subr.bf16.mxu0 0
        %2014 = vmatpush1.bf16.xpose.msra.mxu0 0
        %2015 = vmatprep.subr.bf16.mxu0 0
        %2016 = vmatpush1.bf16.xpose.msra.mxu0 0
        %2017 = vmatprep.subr.bf16.mxu0 0
        %2018 = vmatpush1.bf16.xpose.msra.mxu0 0
        %2019 = vmatprep.subr.bf16.mxu0 0
        %2020 = vmatpush1.bf16.xpose.msra.mxu0 0
        %2021 = vmatprep.subr.bf16.mxu0 0
        %2022 = vmatpush1.bf16.xpose.msra.mxu0 0
        %2023 = vmatprep.mubr.bf16.mxu0 0
        %2024 = vmatmul.mubr.bf16.gmra.mrb[0].mxu0 %v1980
        %v2025 = vpop.f32.mrb[0].mxu0
        %v2026 = vadd.f32 0.0, %v2025
        %v2027 = vpop.f32.mrb[0].mxu0
        %v2028 = vpop.f32.mrb[0].mxu0
        %v2029 = vadd.f32 0.0, %v2028
        %v2030 = vpop.f32.mrb[0].mxu0
        %2031 = vmatprep.mubr.bf16.mxu0 0
        %2032 = vmatmul.mubr.bf16.gmra.mrb[0].mxu0 %v1983
        %v2033 = vpop.f32.mrb[0].mxu0
        %v2034 = vadd.f32 0.0, %v2033
        %v2035 = vpop.f32.mrb[0].mxu0
        %v2036 = vpop.f32.mrb[0].mxu0
        %v2037 = vadd.f32 0.0, %v2036
        %v2038 = vpop.f32.mrb[0].mxu0
        %2039 = vdwg.mxu0
        %v2040 = vsel %vm1276, %v2026, -1e+30
        %v2041 = vsel %vm1276, %v2029, -1e+30
        %v2042 = vsel %vm1276, %v2034, -1e+30
        %v2043 = vsel %vm1276, %v2037, -1e+30
        %v2044 = vsel %vm1212, %v2040, -inf
        %2045 = vmax.xlane.f32.xlu0 %v2044
        %v2046 = vpop.xlane.xlu0 %2045
        %v2047 = vsel %vm1212, %v2041, -inf
        %2048 = vmax.xlane.f32.xlu0 %v2047
        %v2049 = vpop.xlane.xlu0 %2048
        %v2050 = vsel %vm1212, %v2042, -inf
        %2051 = vmax.xlane.f32.xlu0 %v2050
        %v2052 = vpop.xlane.xlu0 %2051
        %v2053 = vsel %vm1212, %v2043, -inf
        %2054 = vmax.xlane.f32.xlu0 %v2053
        %v2055 = vpop.xlane.xlu0 %2054
        %v2056 = vsub.f32 %v2040, %v2046
        %v2057 = vsub.f32 %v2041, %v2049
        %v2058 = vsub.f32 %v2042, %v2052
        %v2059 = vsub.f32 %v2043, %v2055
        %v2060 = vmul.f32 %v2056, 1.442695
        %v2061 = vpow.pop %v2060
        %v2062 = vmul.f32 %v2057, 1.442695
        %v2063 = vpow.pop %v2062
        %v2064 = vmul.f32 %v2058, 1.442695
        %v2065 = vpow.pop %v2064
        %v2066 = vmul.f32 %v2059, 1.442695
        %v2067 = vpow.pop %v2066
        %v2068 = vsel %vm1212, %v2061, 0.0
        %2069 = vadd.xlane.f32.xlu0 %v2068
        %v2070 = vpop.xlane.xlu0 %2069
        %v2071 = vsel %vm1212, %v2063, 0.0
        %2072 = vadd.xlane.f32.xlu0 %v2071
        %v2073 = vpop.xlane.xlu0 %2072
        %v2074 = vsel %vm1212, %v2065, 0.0
        %2075 = vadd.xlane.f32.xlu0 %v2074
        %v2076 = vpop.xlane.xlu0 %2075
        %v2077 = vsel %vm1212, %v2067, 0.0
        %2078 = vadd.xlane.f32.xlu0 %v2077
        %v2079 = vpop.xlane.xlu0 %2078
        %v2080 = vrcp.pop %v2070
        %v2081 = vrcp.pop %v2073
        %v2082 = vrcp.pop %v2076
        %v2083 = vrcp.pop %v2079
        %v2084 = vmul.f32 %v2061, %v2080
        %v2085 = vmul.f32 %v2063, %v2081
        %v2086 = vmul.f32 %v2065, %v2082
        %v2087 = vmul.f32 %v2067, %v2083
        %v2088 = vpack.c.bf16 %v2085, %v2084
        %v2089 = vpack.c.bf16 %v2087, %v2086
        %2090 = vrot.lane.b32.xlu0 %v1210, 32
        %v2091 = vpop.permute.xlu0 %2090
        %2092 = vrot.lane.b32.xlu0 %v1211, 32
        %v2093 = vpop.permute.xlu0 %2092
        %v2097 = vsel %vm1212, %v2088, 0
        %v2100 = vsel %vm1212, %v2089, 0
        %2102 = vmatprep.subr.bf16.mxu0 0
        %2103 = vmatpush1.bf16.msra.mxu0 %v2091
        %2104 = vmatprep.subr.bf16.mxu0 0
        %2105 = vmatpush1.bf16.msra.mxu0 %v2093
        %2106 = vmatprep.subr.bf16.mxu0 0
        %2107 = vmatpush1.bf16.msra.mxu0 0
        %2108 = vmatprep.subr.bf16.mxu0 0
        %2109 = vmatpush1.bf16.msra.mxu0 0
        %2110 = vmatprep.subr.bf16.mxu0 0
        %2111 = vmatpush1.bf16.msra.mxu0 0
        %2112 = vmatprep.subr.bf16.mxu0 0
        %2113 = vmatpush1.bf16.msra.mxu0 0
        %2114 = vmatprep.subr.bf16.mxu0 0
        %2115 = vmatpush1.bf16.msra.mxu0 0
        %2116 = vmatprep.subr.bf16.mxu0 0
        %2117 = vmatpush1.bf16.msra.mxu0 0
        %2118 = vmatprep.subr.bf16.mxu0 0
        %2119 = vmatpush1.bf16.msra.mxu0 0
        %2120 = vmatprep.subr.bf16.mxu0 0
        %2121 = vmatpush1.bf16.msra.mxu0 0
        %2122 = vmatprep.subr.bf16.mxu0 0
        %2123 = vmatpush1.bf16.msra.mxu0 0
        %2124 = vmatprep.subr.bf16.mxu0 0
        %2125 = vmatpush1.bf16.msra.mxu0 0
        %2126 = vmatprep.subr.bf16.mxu0 0
        %2127 = vmatpush1.bf16.msra.mxu0 0
        %2128 = vmatprep.subr.bf16.mxu0 0
        %2129 = vmatpush1.bf16.msra.mxu0 0
        %2130 = vmatprep.subr.bf16.mxu0 0
        %2131 = vmatpush1.bf16.msra.mxu0 0
        %2132 = vmatprep.subr.bf16.mxu0 0
        %2133 = vmatpush1.bf16.msra.mxu0 0
        %2134 = vmatprep.mubr.bf16.mxu0 0
        %2135 = vmatmul.mubr.bf16.gmra.mrb[0].mxu0 %v2097
        %v2136 = vpop.f32.mrb[0].mxu0
        %v2137 = vadd.f32 0.0, %v2136
        %v2138 = vpop.f32.mrb[0].mxu0
        %v2139 = vpop.f32.mrb[0].mxu0
        %v2140 = vadd.f32 0.0, %v2139
        %v2141 = vpop.f32.mrb[0].mxu0
        %2142 = vmatprep.mubr.bf16.mxu0 0
        %2143 = vmatmul.mubr.bf16.gmra.mrb[0].mxu0 %v2100
        %v2144 = vpop.f32.mrb[0].mxu0
        %v2145 = vadd.f32 0.0, %v2144
        %v2146 = vpop.f32.mrb[0].mxu0
        %v2147 = vpop.f32.mrb[0].mxu0
        %v2148 = vadd.f32 0.0, %v2147
        %v2149 = vpop.f32.mrb[0].mxu0
        %2150 = vdwg.mxu0
        %v2151 = vpack.c.bf16 %v2140, %v2137
        %v2152 = vpack.c.bf16 %v2148, %v2145
        %v2153 = vld [vmem:[%s729 + $0x30] sm:$0xf]
        %v2154 = vld [vmem:[%s729 + $0x34] sm:$0xf]
        %v2155 = vld [vmem:[%s729 + $0x38] sm:$0xf]
        %v2156 = vld [vmem:[%s729 + $0x3c] sm:$0xf]
        %v2161 = vunpack.c.l.b16 %v2153
        %v2162 = vunpack.c.l.b16 %v2154
        %v2163 = vunpack.c.l.b16 %v2155
        %v2164 = vunpack.c.l.b16 %v2156
        %v2165 = vpack.c.b16 %v2162, %v2161
        %v2166 = vpack.c.b16 %v2164, %v2163
        %v2170 = vsel %vm1212, %v2151, 0
        %v2173 = vsel %vm1212, %v2152, 0
        %2175 = vmatprep.subr.bf16.mxu0 0
        %2176 = vmatpush1.bf16.msra.mxu0 %v2165
        %2177 = vmatprep.subr.bf16.mxu0 0
        %2178 = vmatpush1.bf16.msra.mxu0 %v2166
        %2179 = vmatprep.subr.bf16.mxu0 0
        %2180 = vmatpush1.bf16.msra.mxu0 0
        %2181 = vmatprep.subr.bf16.mxu0 0
        %2182 = vmatpush1.bf16.msra.mxu0 0
        %2183 = vmatprep.subr.bf16.mxu0 0
        %2184 = vmatpush1.bf16.msra.mxu0 0
        %2185 = vmatprep.subr.bf16.mxu0 0
        %2186 = vmatpush1.bf16.msra.mxu0 0
        %2187 = vmatprep.subr.bf16.mxu0 0
        %2188 = vmatpush1.bf16.msra.mxu0 0
        %2189 = vmatprep.subr.bf16.mxu0 0
        %2190 = vmatpush1.bf16.msra.mxu0 0
        %2191 = vmatprep.subr.bf16.mxu0 0
        %2192 = vmatpush1.bf16.msra.mxu0 0
        %2193 = vmatprep.subr.bf16.mxu0 0
        %2194 = vmatpush1.bf16.msra.mxu0 0
        %2195 = vmatprep.subr.bf16.mxu0 0
        %2196 = vmatpush1.bf16.msra.mxu0 0
        %2197 = vmatprep.subr.bf16.mxu0 0
        %2198 = vmatpush1.bf16.msra.mxu0 0
        %2199 = vmatprep.subr.bf16.mxu0 0
        %2200 = vmatpush1.bf16.msra.mxu0 0
        %2201 = vmatprep.subr.bf16.mxu0 0
        %2202 = vmatpush1.bf16.msra.mxu0 0
        %2203 = vmatprep.subr.bf16.mxu0 0
        %2204 = vmatpush1.bf16.msra.mxu0 0
        %2205 = vmatprep.subr.bf16.mxu0 0
        %2206 = vmatpush1.bf16.msra.mxu0 0
        %2207 = vmatprep.mubr.bf16.mxu0 0
        %2208 = vmatmul.mubr.bf16.gmra.mrb[0].mxu0 %v2170
        %v2209 = vpop.f32.mrb[0].mxu0
        %v2210 = vadd.f32 0.0, %v2209
        %v2211 = vpop.f32.mrb[0].mxu0
        %v2212 = vpop.f32.mrb[0].mxu0
        %v2213 = vadd.f32 0.0, %v2212
        %v2214 = vpop.f32.mrb[0].mxu0
        %2215 = vmatprep.mubr.bf16.mxu0 0
        %2216 = vmatmul.mubr.bf16.gmra.mrb[0].mxu0 %v2173
        %v2217 = vpop.f32.mrb[0].mxu0
        %v2218 = vadd.f32 0.0, %v2217
        %v2219 = vpop.f32.mrb[0].mxu0
        %v2220 = vpop.f32.mrb[0].mxu0
        %v2221 = vadd.f32 0.0, %v2220
        %v2222 = vpop.f32.mrb[0].mxu0
        %2223 = vdwg.mxu0
        %v2224 = vadd.f32 %v1967, %v2210
        %v2225 = vadd.f32 %v1968, %v2213
        %v2226 = vadd.f32 %v1969, %v2218
        %v2227 = vadd.f32 %v1970, %v2221
        %v2228 = vld [vmem:[%s737] sm:$0x1]
        %v2230 = vlaneseq
        %v2231 = vshrl.u32 %v2230, 7
        %v2232 = vsub.s32 0, %v2231
        %v2233 = vrot.slane %v2228, %v2232
        %v2235 = vadd.f32 %v2224, %v2233
        %v2236 = vadd.f32 %v2225, %v2233
        %v2237 = vadd.f32 %v2226, %v2233
        %v2238 = vadd.f32 %v2227, %v2233
        %v2239 = vadd.f32 %v921, %v2235
        %v2240 = vadd.f32 %v922, %v2236
        %v2241 = vadd.f32 %v923, %v2237
        %v2242 = vadd.f32 %v924, %v2238
        %v2243 = vld [vmem:[%s745] sm:$0x1]
        %v2244 = vld [vmem:[%s753] sm:$0x1]
        %2245 = vadd.xlane.f32.xlu0 %v2239
        %v2246 = vpop.xlane.xlu0 %2245
        %2247 = vadd.xlane.f32.xlu0 %v2240
        %v2248 = vpop.xlane.xlu0 %2247
        %2249 = vadd.xlane.f32.xlu0 %v2241
        %v2250 = vpop.xlane.xlu0 %2249
        %2251 = vadd.xlane.f32.xlu0 %v2242
        %v2252 = vpop.xlane.xlu0 %2251
        %v2253 = vrcp.pop 128.0
        %v2254 = vmul.f32 %v2246, %v2253
        %v2255 = vmul.f32 %v2248, %v2253
        %v2256 = vmul.f32 %v2250, %v2253
        %v2257 = vmul.f32 %v2252, %v2253
        %v2258 = vsub.f32 %v2239, %v2254
        %v2259 = vsub.f32 %v2240, %v2255
        %v2260 = vsub.f32 %v2241, %v2256
        %v2261 = vsub.f32 %v2242, %v2257
        %v2262 = vmul.f32 %v2258, %v2258
        %v2263 = vmul.f32 %v2259, %v2259
        %v2264 = vmul.f32 %v2260, %v2260
        %v2265 = vmul.f32 %v2261, %v2261
        %2266 = vadd.xlane.f32.xlu0 %v2262
        %v2267 = vpop.xlane.xlu0 %2266
        %2268 = vadd.xlane.f32.xlu0 %v2263
        %v2269 = vpop.xlane.xlu0 %2268
        %2270 = vadd.xlane.f32.xlu0 %v2264
        %v2271 = vpop.xlane.xlu0 %2270
        %2272 = vadd.xlane.f32.xlu0 %v2265
        %v2273 = vpop.xlane.xlu0 %2272
        %v2274 = vmul.f32 %v2267, %v2253
        %v2275 = vmul.f32 %v2269, %v2253
        %v2276 = vmul.f32 %v2271, %v2253
        %v2277 = vmul.f32 %v2273, %v2253
        %v2278 = vadd.f32 %v2274, 1e-05
        %v2279 = vadd.f32 %v2275, 1e-05
        %v2280 = vadd.f32 %v2276, 1e-05
        %v2281 = vadd.f32 %v2277, 1e-05
        %v2282 = vrsqrt.pop %v2278
        %v2283 = vrsqrt.pop %v2279
        %v2284 = vrsqrt.pop %v2280
        %v2285 = vrsqrt.pop %v2281
        %v2286 = vmul.f32 %v2258, %v2282
        %v2287 = vmul.f32 %v2259, %v2283
        %v2288 = vmul.f32 %v2260, %v2284
        %v2289 = vmul.f32 %v2261, %v2285
        %v2291 = vlaneseq
        %v2292 = vshrl.u32 %v2291, 7
        %v2293 = vsub.s32 0, %v2292
        %v2294 = vrot.slane %v2243, %v2293
        %v2296 = vmul.f32 %v2286, %v2294
        %v2297 = vmul.f32 %v2287, %v2294
        %v2298 = vmul.f32 %v2288, %v2294
        %v2299 = vmul.f32 %v2289, %v2294
        %v2301 = vlaneseq
        %v2302 = vshrl.u32 %v2301, 7
        %v2303 = vsub.s32 0, %v2302
        %v2304 = vrot.slane %v2244, %v2303
        %v2306 = vadd.f32 %v2296, %v2304
        %v2307 = vadd.f32 %v2297, %v2304
        %v2308 = vadd.f32 %v2298, %v2304
        %v2309 = vadd.f32 %v2299, %v2304
        %v2310 = vpack.c.bf16 %v2307, %v2306
        %v2311 = vpack.c.bf16 %v2309, %v2308
        %v2312 = vld [vmem:[%s762] sm:$0xff]
        %v2313 = vld [vmem:[%s762 + $0x8] sm:$0xff]
        %v2314 = vld [vmem:[%s762 + $0x10] sm:$0xff]
        %v2315 = vld [vmem:[%s762 + $0x18] sm:$0xff]
        %v2316 = vld [vmem:[%s762 + $0x20] sm:$0xff]
        %v2317 = vld [vmem:[%s762 + $0x28] sm:$0xff]
        %v2318 = vld [vmem:[%s762 + $0x30] sm:$0xff]
        %v2319 = vld [vmem:[%s762 + $0x38] sm:$0xff]
        %v2320 = vld [vmem:[%s762 + $0x40] sm:$0xff]
        %v2321 = vld [vmem:[%s762 + $0x48] sm:$0xff]
        %v2322 = vld [vmem:[%s762 + $0x50] sm:$0xff]
        %v2323 = vld [vmem:[%s762 + $0x58] sm:$0xff]
        %v2324 = vld [vmem:[%s762 + $0x60] sm:$0xff]
        %v2325 = vld [vmem:[%s762 + $0x68] sm:$0xff]
        %v2326 = vld [vmem:[%s762 + $0x70] sm:$0xff]
        %v2327 = vld [vmem:[%s762 + $0x78] sm:$0xff]
        %v2328 = vld [vmem:[%s771] sm:$0x3]
        %v2330 = vlaneseq
        %v2331 = vshrl.u32 %v2330, 7
        %v2332 = vsub.s32 0, %v2331
        %v2333 = vrot.slane %v2328, %v2332
        %v2334 = vlaneseq
        %v2335 = vshrl.u32 %v2334, 7
        %v2336 = vsub.s32 1, %v2335
        %v2337 = vrot.slane %v2328, %v2336
        %v2356 = vunpack.c.l.b16 %v2312
        %v2357 = vunpack.c.h.b16 %v2312
        %v2358 = vunpack.c.l.b16 %v2313
        %v2359 = vunpack.c.h.b16 %v2313
        %v2360 = vunpack.c.l.b16 %v2314
        %v2361 = vunpack.c.h.b16 %v2314
        %v2362 = vunpack.c.l.b16 %v2315
        %v2363 = vunpack.c.h.b16 %v2315
        %v2364 = vunpack.c.l.b16 %v2316
        %v2365 = vunpack.c.h.b16 %v2316
        %v2366 = vunpack.c.l.b16 %v2317
        %v2367 = vunpack.c.h.b16 %v2317
        %v2368 = vunpack.c.l.b16 %v2318
        %v2369 = vunpack.c.h.b16 %v2318
        %v2370 = vunpack.c.l.b16 %v2319
        %v2371 = vunpack.c.h.b16 %v2319
        %v2372 = vunpack.c.l.b16 %v2320
        %v2373 = vunpack.c.h.b16 %v2320
        %v2374 = vunpack.c.l.b16 %v2321
        %v2375 = vunpack.c.h.b16 %v2321
        %v2376 = vunpack.c.l.b16 %v2322
        %v2377 = vunpack.c.h.b16 %v2322
        %v2378 = vunpack.c.l.b16 %v2323
        %v2379 = vunpack.c.h.b16 %v2323
        %v2380 = vunpack.c.l.b16 %v2324
        %v2381 = vunpack.c.h.b16 %v2324
        %v2382 = vunpack.c.l.b16 %v2325
        %v2383 = vunpack.c.h.b16 %v2325
        %v2384 = vunpack.c.l.b16 %v2326
        %v2385 = vunpack.c.h.b16 %v2326
        %v2386 = vunpack.c.l.b16 %v2327
        %v2387 = vunpack.c.h.b16 %v2327
        %v2388 = vpack.c.b16 %v2358, %v2356
        %v2389 = vpack.c.b16 %v2359, %v2357
        %v2390 = vpack.c.b16 %v2362, %v2360
        %v2391 = vpack.c.b16 %v2363, %v2361
        %v2392 = vpack.c.b16 %v2366, %v2364
        %v2393 = vpack.c.b16 %v2367, %v2365
        %v2394 = vpack.c.b16 %v2370, %v2368
        %v2395 = vpack.c.b16 %v2371, %v2369
        %v2396 = vpack.c.b16 %v2374, %v2372
        %v2397 = vpack.c.b16 %v2375, %v2373
        %v2398 = vpack.c.b16 %v2378, %v2376
        %v2399 = vpack.c.b16 %v2379, %v2377
        %v2400 = vpack.c.b16 %v2382, %v2380
        %v2401 = vpack.c.b16 %v2383, %v2381
        %v2402 = vpack.c.b16 %v2386, %v2384
        %v2403 = vpack.c.b16 %v2387, %v2385
        %2420 = vmatprep.subr.bf16.mxu0 %v2389
        %2421 = vmatpush1.bf16.msra.mxu0 %v2388
        %2422 = vmatprep.subr.bf16.mxu0 %v2391
        %2423 = vmatpush1.bf16.msra.mxu0 %v2390
        %2424 = vmatprep.subr.bf16.mxu0 %v2393
        %2425 = vmatpush1.bf16.msra.mxu0 %v2392
        %2426 = vmatprep.subr.bf16.mxu0 %v2395
        %2427 = vmatpush1.bf16.msra.mxu0 %v2394
        %2428 = vmatprep.subr.bf16.mxu0 %v2397
        %2429 = vmatpush1.bf16.msra.mxu0 %v2396
        %2430 = vmatprep.subr.bf16.mxu0 %v2399
        %2431 = vmatpush1.bf16.msra.mxu0 %v2398
        %2432 = vmatprep.subr.bf16.mxu0 %v2401
        %2433 = vmatpush1.bf16.msra.mxu0 %v2400
        %2434 = vmatprep.subr.bf16.mxu0 %v2403
        %2435 = vmatpush1.bf16.msra.mxu0 %v2402
        %2436 = vmatprep.subr.bf16.mxu0 0
        %2437 = vmatpush1.bf16.msra.mxu0 0
        %2438 = vmatprep.subr.bf16.mxu0 0
        %2439 = vmatpush1.bf16.msra.mxu0 0
        %2440 = vmatprep.subr.bf16.mxu0 0
        %2441 = vmatpush1.bf16.msra.mxu0 0
        %2442 = vmatprep.subr.bf16.mxu0 0
        %2443 = vmatpush1.bf16.msra.mxu0 0
        %2444 = vmatprep.subr.bf16.mxu0 0
        %2445 = vmatpush1.bf16.msra.mxu0 0
        %2446 = vmatprep.subr.bf16.mxu0 0
        %2447 = vmatpush1.bf16.msra.mxu0 0
        %2448 = vmatprep.subr.bf16.mxu0 0
        %2449 = vmatpush1.bf16.msra.mxu0 0
        %2450 = vmatprep.subr.bf16.mxu0 0
        %2451 = vmatpush1.bf16.msra.mxu0 0
        %2452 = vmatprep.mubr.bf16.mxu0 0
        %2453 = vmatmul.mubr.bf16.gmra.mrb[0].mxu0 %v2310
        %v2454 = vpop.f32.mrb[0].mxu0
        %v2455 = vadd.f32 %v2333, %v2454
        %v2456 = vpop.f32.mrb[0].mxu0
        %v2457 = vadd.f32 %v2337, %v2456
        %v2458 = vpop.f32.mrb[0].mxu0
        %v2459 = vadd.f32 %v2333, %v2458
        %v2460 = vpop.f32.mrb[0].mxu0
        %v2461 = vadd.f32 %v2337, %v2460
        %2462 = vmatprep.mubr.bf16.mxu0 0
        %2463 = vmatmul.mubr.bf16.gmra.mrb[0].mxu0 %v2311
        %v2464 = vpop.f32.mrb[0].mxu0
        %v2465 = vadd.f32 %v2333, %v2464
        %v2466 = vpop.f32.mrb[0].mxu0
        %v2467 = vadd.f32 %v2337, %v2466
        %v2468 = vpop.f32.mrb[0].mxu0
        %v2469 = vadd.f32 %v2333, %v2468
        %v2470 = vpop.f32.mrb[0].mxu0
        %v2471 = vadd.f32 %v2337, %v2470
        %2472 = vdwg.mxu0
        %v2473 = vmax.f32 %v2455, 0.0
        %v2474 = vmax.f32 %v2457, 0.0
        %v2475 = vmax.f32 %v2459, 0.0
        %v2476 = vmax.f32 %v2461, 0.0
        %v2477 = vmax.f32 %v2465, 0.0
        %v2478 = vmax.f32 %v2467, 0.0
        %v2479 = vmax.f32 %v2469, 0.0
        %v2480 = vmax.f32 %v2471, 0.0
        %v2481 = vpack.c.bf16 %v2475, %v2473
        %v2482 = vpack.c.bf16 %v2476, %v2474
        %v2483 = vpack.c.bf16 %v2479, %v2477
        %v2484 = vpack.c.bf16 %v2480, %v2478
        %v2485 = vld [vmem:[%s780] sm:$0xf]
        %v2486 = vld [vmem:[%s780 + $0x4] sm:$0xf]
        %v2487 = vld [vmem:[%s780 + $0x8] sm:$0xf]
        %v2488 = vld [vmem:[%s780 + $0xc] sm:$0xf]
        %v2489 = vld [vmem:[%s780 + $0x10] sm:$0xf]
        %v2490 = vld [vmem:[%s780 + $0x14] sm:$0xf]
        %v2491 = vld [vmem:[%s780 + $0x18] sm:$0xf]
        %v2492 = vld [vmem:[%s780 + $0x1c] sm:$0xf]
        %v2493 = vld [vmem:[%s780 + $0x20] sm:$0xf]
        %v2494 = vld [vmem:[%s780 + $0x24] sm:$0xf]
        %v2495 = vld [vmem:[%s780 + $0x28] sm:$0xf]
        %v2496 = vld [vmem:[%s780 + $0x2c] sm:$0xf]
        %v2497 = vld [vmem:[%s780 + $0x30] sm:$0xf]
        %v2498 = vld [vmem:[%s780 + $0x34] sm:$0xf]
        %v2499 = vld [vmem:[%s780 + $0x38] sm:$0xf]
        %v2500 = vld [vmem:[%s780 + $0x3c] sm:$0xf]
        %v2501 = vld [vmem:[%s780 + $0x40] sm:$0xf]
        %v2502 = vld [vmem:[%s780 + $0x44] sm:$0xf]
        %v2503 = vld [vmem:[%s780 + $0x48] sm:$0xf]
        %v2504 = vld [vmem:[%s780 + $0x4c] sm:$0xf]
        %v2505 = vld [vmem:[%s780 + $0x50] sm:$0xf]
        %v2506 = vld [vmem:[%s780 + $0x54] sm:$0xf]
        %v2507 = vld [vmem:[%s780 + $0x58] sm:$0xf]
        %v2508 = vld [vmem:[%s780 + $0x5c] sm:$0xf]
        %v2509 = vld [vmem:[%s780 + $0x60] sm:$0xf]
        %v2510 = vld [vmem:[%s780 + $0x64] sm:$0xf]
        %v2511 = vld [vmem:[%s780 + $0x68] sm:$0xf]
        %v2512 = vld [vmem:[%s780 + $0x6c] sm:$0xf]
        %v2513 = vld [vmem:[%s780 + $0x70] sm:$0xf]
        %v2514 = vld [vmem:[%s780 + $0x74] sm:$0xf]
        %v2515 = vld [vmem:[%s780 + $0x78] sm:$0xf]
        %v2516 = vld [vmem:[%s780 + $0x7c] sm:$0xf]
        %v2517 = vld [vmem:[%s788] sm:$0x1]
        %v2519 = vlaneseq
        %v2520 = vshrl.u32 %v2519, 7
        %v2521 = vsub.s32 0, %v2520
        %v2522 = vrot.slane %v2517, %v2521
        %v2556 = vunpack.c.l.b16 %v2485
        %v2557 = vunpack.c.l.b16 %v2486
        %v2558 = vunpack.c.l.b16 %v2487
        %v2559 = vunpack.c.l.b16 %v2488
        %v2560 = vunpack.c.l.b16 %v2489
        %v2561 = vunpack.c.l.b16 %v2490
        %v2562 = vunpack.c.l.b16 %v2491
        %v2563 = vunpack.c.l.b16 %v2492
        %v2564 = vunpack.c.l.b16 %v2493
        %v2565 = vunpack.c.l.b16 %v2494
        %v2566 = vunpack.c.l.b16 %v2495
        %v2567 = vunpack.c.l.b16 %v2496
        %v2568 = vunpack.c.l.b16 %v2497
        %v2569 = vunpack.c.l.b16 %v2498
        %v2570 = vunpack.c.l.b16 %v2499
        %v2571 = vunpack.c.l.b16 %v2500
        %v2572 = vunpack.c.l.b16 %v2501
        %v2573 = vunpack.c.l.b16 %v2502
        %v2574 = vunpack.c.l.b16 %v2503
        %v2575 = vunpack.c.l.b16 %v2504
        %v2576 = vunpack.c.l.b16 %v2505
        %v2577 = vunpack.c.l.b16 %v2506
        %v2578 = vunpack.c.l.b16 %v2507
        %v2579 = vunpack.c.l.b16 %v2508
        %v2580 = vunpack.c.l.b16 %v2509
        %v2581 = vunpack.c.l.b16 %v2510
        %v2582 = vunpack.c.l.b16 %v2511
        %v2583 = vunpack.c.l.b16 %v2512
        %v2584 = vunpack.c.l.b16 %v2513
        %v2585 = vunpack.c.l.b16 %v2514
        %v2586 = vunpack.c.l.b16 %v2515
        %v2587 = vunpack.c.l.b16 %v2516
        %v2588 = vpack.c.b16 %v2557, %v2556
        %v2589 = vpack.c.b16 %v2559, %v2558
        %v2590 = vpack.c.b16 %v2561, %v2560
        %v2591 = vpack.c.b16 %v2563, %v2562
        %v2592 = vpack.c.b16 %v2565, %v2564
        %v2593 = vpack.c.b16 %v2567, %v2566
        %v2594 = vpack.c.b16 %v2569, %v2568
        %v2595 = vpack.c.b16 %v2571, %v2570
        %v2596 = vpack.c.b16 %v2573, %v2572
        %v2597 = vpack.c.b16 %v2575, %v2574
        %v2598 = vpack.c.b16 %v2577, %v2576
        %v2599 = vpack.c.b16 %v2579, %v2578
        %v2600 = vpack.c.b16 %v2581, %v2580
        %v2601 = vpack.c.b16 %v2583, %v2582
        %v2602 = vpack.c.b16 %v2585, %v2584
        %v2603 = vpack.c.b16 %v2587, %v2586
        %2620 = vmatprep.subr.bf16.mxu0 0
        %2621 = vmatpush1.bf16.msra.mxu0 %v2588
        %2622 = vmatprep.subr.bf16.mxu0 0
        %2623 = vmatpush1.bf16.msra.mxu0 %v2589
        %2624 = vmatprep.subr.bf16.mxu0 0
        %2625 = vmatpush1.bf16.msra.mxu0 %v2590
        %2626 = vmatprep.subr.bf16.mxu0 0
        %2627 = vmatpush1.bf16.msra.mxu0 %v2591
        %2628 = vmatprep.subr.bf16.mxu0 0
        %2629 = vmatpush1.bf16.msra.mxu0 %v2592
        %2630 = vmatprep.subr.bf16.mxu0 0
        %2631 = vmatpush1.bf16.msra.mxu0 %v2593
        %2632 = vmatprep.subr.bf16.mxu0 0
        %2633 = vmatpush1.bf16.msra.mxu0 %v2594
        %2634 = vmatprep.subr.bf16.mxu0 0
        %2635 = vmatpush1.bf16.msra.mxu0 %v2595
        %2636 = vmatprep.subr.bf16.mxu0 0
        %2637 = vmatpush1.bf16.msra.mxu0 %v2596
        %2638 = vmatprep.subr.bf16.mxu0 0
        %2639 = vmatpush1.bf16.msra.mxu0 %v2597
        %2640 = vmatprep.subr.bf16.mxu0 0
        %2641 = vmatpush1.bf16.msra.mxu0 %v2598
        %2642 = vmatprep.subr.bf16.mxu0 0
        %2643 = vmatpush1.bf16.msra.mxu0 %v2599
        %2644 = vmatprep.subr.bf16.mxu0 0
        %2645 = vmatpush1.bf16.msra.mxu0 %v2600
        %2646 = vmatprep.subr.bf16.mxu0 0
        %2647 = vmatpush1.bf16.msra.mxu0 %v2601
        %2648 = vmatprep.subr.bf16.mxu0 0
        %2649 = vmatpush1.bf16.msra.mxu0 %v2602
        %2650 = vmatprep.subr.bf16.mxu0 0
        %2651 = vmatpush1.bf16.msra.mxu0 %v2603
        %2652 = vmatprep.mubr.bf16.mxu0 %v2482
        %2653 = vmatmul.mubr.bf16.gmra.mrb[0].mxu0 %v2481
        %v2654 = vpop.f32.mrb[0].mxu0
        %v2655 = vadd.f32 %v2522, %v2654
        %v2656 = vpop.f32.mrb[0].mxu0
        %v2657 = vpop.f32.mrb[0].mxu0
        %v2658 = vadd.f32 %v2522, %v2657
        %v2659 = vpop.f32.mrb[0].mxu0
        %2660 = vmatprep.mubr.bf16.mxu0 %v2484
        %2661 = vmatmul.mubr.bf16.gmra.mrb[0].mxu0 %v2483
        %v2662 = vpop.f32.mrb[0].mxu0
        %v2663 = vadd.f32 %v2522, %v2662
        %v2664 = vpop.f32.mrb[0].mxu0
        %v2665 = vpop.f32.mrb[0].mxu0
        %v2666 = vadd.f32 %v2522, %v2665
        %v2667 = vpop.f32.mrb[0].mxu0
        %2668 = vdwg.mxu0
        %v2669 = vadd.f32 %v2306, %v2655
        %v2670 = vadd.f32 %v2307, %v2658
        %v2671 = vadd.f32 %v2308, %v2663
        %v2672 = vadd.f32 %v2309, %v2666
        %v2673 = vld [vmem:[%s796] sm:$0x1]
        %v2674 = vld [vmem:[%s804] sm:$0x1]
        %2675 = vadd.xlane.f32.xlu0 %v2669
        %v2676 = vpop.xlane.xlu0 %2675
        %2677 = vadd.xlane.f32.xlu0 %v2670
        %v2678 = vpop.xlane.xlu0 %2677
        %2679 = vadd.xlane.f32.xlu0 %v2671
        %v2680 = vpop.xlane.xlu0 %2679
        %2681 = vadd.xlane.f32.xlu0 %v2672
        %v2682 = vpop.xlane.xlu0 %2681
        %v2683 = vmul.f32 %v2676, %v2253
        %v2684 = vmul.f32 %v2678, %v2253
        %v2685 = vmul.f32 %v2680, %v2253
        %v2686 = vmul.f32 %v2682, %v2253
        %v2687 = vsub.f32 %v2669, %v2683
        %v2688 = vsub.f32 %v2670, %v2684
        %v2689 = vsub.f32 %v2671, %v2685
        %v2690 = vsub.f32 %v2672, %v2686
        %v2691 = vmul.f32 %v2687, %v2687
        %v2692 = vmul.f32 %v2688, %v2688
        %v2693 = vmul.f32 %v2689, %v2689
        %v2694 = vmul.f32 %v2690, %v2690
        %2695 = vadd.xlane.f32.xlu0 %v2691
        %v2696 = vpop.xlane.xlu0 %2695
        %2697 = vadd.xlane.f32.xlu0 %v2692
        %v2698 = vpop.xlane.xlu0 %2697
        %2699 = vadd.xlane.f32.xlu0 %v2693
        %v2700 = vpop.xlane.xlu0 %2699
        %2701 = vadd.xlane.f32.xlu0 %v2694
        %v2702 = vpop.xlane.xlu0 %2701
        %v2703 = vmul.f32 %v2696, %v2253
        %v2704 = vmul.f32 %v2698, %v2253
        %v2705 = vmul.f32 %v2700, %v2253
        %v2706 = vmul.f32 %v2702, %v2253
        %v2707 = vadd.f32 %v2703, 1e-05
        %v2708 = vadd.f32 %v2704, 1e-05
        %v2709 = vadd.f32 %v2705, 1e-05
        %v2710 = vadd.f32 %v2706, 1e-05
        %v2711 = vrsqrt.pop %v2707
        %v2712 = vrsqrt.pop %v2708
        %v2713 = vrsqrt.pop %v2709
        %v2714 = vrsqrt.pop %v2710
        %v2715 = vmul.f32 %v2687, %v2711
        %v2716 = vmul.f32 %v2688, %v2712
        %v2717 = vmul.f32 %v2689, %v2713
        %v2718 = vmul.f32 %v2690, %v2714
        %v2720 = vlaneseq
        %v2721 = vshrl.u32 %v2720, 7
        %v2722 = vsub.s32 0, %v2721
        %v2723 = vrot.slane %v2673, %v2722
        %v2725 = vmul.f32 %v2715, %v2723
        %v2726 = vmul.f32 %v2716, %v2723
        %v2727 = vmul.f32 %v2717, %v2723
        %v2728 = vmul.f32 %v2718, %v2723
        %v2730 = vlaneseq
        %v2731 = vshrl.u32 %v2730, 7
        %v2732 = vsub.s32 0, %v2731
        %v2733 = vrot.slane %v2674, %v2732
        %v2735 = vadd.f32 %v2725, %v2733
        %v2736 = vadd.f32 %v2726, %v2733
        %v2737 = vadd.f32 %v2727, %v2733
        %v2738 = vadd.f32 %v2728, %v2733
        %2739 = vst [vmem:[%s920] sm:$0xff] %v2735
        %2740 = vst [vmem:[%s920 + $0x8] sm:$0xff] %v2736
        %2741 = vst [vmem:[%s920 + $0x10] sm:$0xff] %v2737
        %2742 = vst [vmem:[%s920 + $0x18] sm:$0xff] %v2738
        %p2743 = scmp.eq.s32.totalorder %s54, 1
        // Predicated region
        $region129: #{vit_forward.4} parent=71 // pred_check
          %p2744 = pneg %p2743
        $region130: #{vit_forward.4} parent=71 // pred_check_branch
          %2746 = sbr.rel (%p2744) target = $region132
        $region131: #{vit_forward.4} parent=71 // pred_region
          %s2747 = smul.u32 %s55, 8
          %s2748 = scalar_lea.vmem %s900, %s2747 [#allocation24]
          %2749 = vst [vmem:[%s2748] sm:$0xff] %v2735
        $region132: #{vit_forward.4} parent=71 // pred_fallthru
          _
        %s2750 = sand.u32 %s413, 1
        %s2751 = scalar_lea.sflag [#allocation5], %s2750
        %s2752 = sand.u32 %s413, 1
        %s2753 = smul.addr %s2752, 16
        %s2754 = scalar_lea.vmem [#allocation24], %s2753
        // Predicated region
        $region133: #{vit_forward.4} parent=71 // pred_check
          %p2755 = pneg %p423
        $region134: #{vit_forward.4} parent=71 // pred_check_branch
          %2757 = sbr.rel (%p2755) target = $region136
        $region135: #{vit_forward.4} parent=71 // pred_region
          %s2758 = smul.u32 2, %s53
          %s2760 = ssub.s32 256, 256
          %2761 = vsyncadd %s2751, %s2760
          %s2762 = smul.addr %s2758, 128
          %s2763 = scalar_lea.hbm %s13, %s2762
          %s2764 = sshll.u32 %s2754, 4
          %s2765 = int_to_ptr.vmem [resolvable:$true] %s2764
          %2770 = dma.vmem_to_hbm [thread:$0]  %s2765, 256, %s2763, %s2751, 128, 128, 8
        $region136: #{vit_forward.4} parent=71 // pred_fallthru
          _
      $region72: #{vit_forward.4} parent=5 // pred_fallthru
        _
      %p2771 = scmp.le.s32.totalorder 2, %s43
      // Predicated region
      $region137: #{vit_forward.4} parent=5 // pred_check
        %p2772 = pneg %p2771
      $region138: #{vit_forward.4} parent=5 // pred_check_branch
        %2774 = sbr.rel (%p2772) target = $region140
      $region139: #{vit_forward.4} parent=5 // pred_region
        %s2775 = ssub.s32 %s43, 2
        // Predicated region
        $region141: #{vit_forward.4} parent=139 // pred_check
          %p2776 = pneg %p429
        $region142: #{vit_forward.4} parent=139 // pred_check_branch
          %2778 = sbr.rel (%p2776) target = $region144
        $region143: #{vit_forward.4} parent=139 // pred_region
          %s2779 = sand.u32 %s414, 1
          %s2780 = scalar_lea.sflag [#allocation5], %s2779
          %s2781 = sand.u32 %s414, 1
          %s2782 = smul.addr %s2781, 16
          %s2783 = scalar_lea.vmem [#allocation24], %s2782
          %2784 = dma.done %s2780, 256
        $region144: #{vit_forward.4} parent=139 // pred_fallthru
          _
      $region140: #{vit_forward.4} parent=5 // pred_fallthru
        _
    $region6: #{vit_forward.4} parent=1 // loop_footer
      %s47 = sadd.s32 1, %s43
    $region7: #{vit_forward.4} parent=1 // loop_footer_branch
      %42 = sbr.rel target = $region3
    $region8: #{vit_forward.4} parent=1 // loop_exit
      _
    %2785 = vsyncpa [#allocation4], 1
    %s2786 = scalar_lea.sflag [#allocation4], 1
    %2787 = vsyncpa %s2786, 1
    %2788 = vsyncpa [#allocation7], 1
    %s2789 = scalar_lea.sflag [#allocation7], 1
    %2790 = vsyncpa %s2789, 1
    %2791 = vsyncpa [#allocation10], 1
    %s2792 = scalar_lea.sflag [#allocation10], 1
    %2793 = vsyncpa %s2792, 1
    %2794 = vsyncpa [#allocation13], 1
    %s2795 = scalar_lea.sflag [#allocation13], 1
    %2796 = vsyncpa %s2795, 1
    %2797 = vsyncpa [#allocation16], 1
    %s2798 = scalar_lea.sflag [#allocation16], 1
    %2799 = vsyncpa %s2798, 1
    %2800 = vsyncpa [#allocation19], 1
    %s2801 = scalar_lea.sflag [#allocation19], 1
    %2802 = vsyncpa %s2801, 1
    %2803 = vsyncpa [#allocation22], 1
    %s2804 = scalar_lea.sflag [#allocation22], 1
    %2805 = vsyncpa %s2804, 1
    %2806 = vsyncpa [#allocation5], 1
    %s2807 = scalar_lea.sflag [#allocation5], 1
    %2808 = vsyncpa %s2807, 1

</llo_original>
